<compile_context>
chip_gen: v5e
topology: v5e:2x2
jax: 0.10.0
libtpu: 0.0.40
codegen_flags: <defaults>
</compile_context>

<pallas_src>
import jax
import jax.numpy as jnp
import numpy as np
from jax import lax
from jax.experimental import pallas as pl
from jax.experimental.pallas import tpu as pltpu

C_IN = 128
C_MID = 64
C_OUT = 3
EPS = 1e-5

# conv2 tap tables for the sub-pixel decomposition:
#   output phase p (0/1), kernel offset d (0..2)  ->  (source phase, +-1 shift)
_TAB = (((1, -1), (0, 0), (1, 0)),    # p = 0
        ((0, 0), (1, 0), (0, 1)))     # p = 1


def _albedo_kernel(xp_ref, wup_ref, w1_ref, s1_ref, t1_ref,
                   w2_ref, s2_ref, t2_ref, w3t_ref, b3_ref,
                   out_ref, a1pad_ref):
    C = C_IN
    H = xp_ref.shape[1] - 2
    W = xp_ref.shape[2] - 2
    P = H * W

    # --- re-zero only the 1-pixel halo of the conv2 scratch (interior is
    #     fully overwritten below); cheap and correct on every core. ---
    zr = jnp.zeros((4, 1, W + 2, C), jnp.float32)
    a1pad_ref[:, 0:1, :, :] = zr
    a1pad_ref[:, H + 1:H + 2, :, :] = zr
    zc = jnp.zeros((4, H + 2, 1, C), jnp.float32)
    a1pad_ref[:, :, 0:1, :] = zc
    a1pad_ref[:, :, W + 1:W + 2, :] = zc

    wup = wup_ref[...]                    # (16, 128) f32, phase-decomposed dw weights
    w1 = w1_ref[...]                      # (128, 128) bf16
    s1 = s1_ref[...]                      # (1, 128) f32
    t1 = t1_ref[...]                      # (1, 128) f32

    # ---- upsample (4 sub-pixel phases, 4 taps each) + conv1 (1x1 + BN + ReLU) ----
    for pr in range(2):
        for pc in range(2):
            q = pr * 2 + pc
            up = jnp.zeros((H, W, C), jnp.float32)
            for a in range(2):
                for b in range(2):
                    tap = xp_ref[0, pr + a:pr + a + H, pc + b:pc + b + W, :]
                    up = up + tap * wup[q * 4 + a * 2 + b]     # per-channel weight
            u = up.reshape(P, C).astype(jnp.bfloat16)
            a1 = jnp.dot(u, w1, preferred_element_type=jnp.float32)
            a1 = jnp.maximum(a1 * s1 + t1, 0.0)                # folded BN + ReLU
            a1pad_ref[q, 1:1 + H, 1:1 + W, :] = a1.reshape(H, W, C)

    s2 = s2_ref[...]                      # (1, 64) f32
    t2 = t2_ref[...]                      # (1, 64) f32
    w3t = w3t_ref[...]                    # (3, 64) bf16
    b3 = b3_ref[...]                      # (3, 1) f32

    # ---- conv2 (3x3 + BN + ReLU) + conv3 (1x1 + bias), per output phase ----
    for pr in range(2):
        for pc in range(2):
            acc = jnp.zeros((P, C_MID), jnp.float32)
            for dh in range(3):
                qr, di = _TAB[pr][dh]
                taps = []
                for dw in range(3):
                    qc, dj = _TAB[pc][dw]
                    q = qr * 2 + qc
                    t = a1pad_ref[q, 1 + di:1 + di + H, 1 + dj:1 + dj + W, :]
                    taps.append(t.reshape(P, C))
                patch = jnp.concatenate(taps, axis=1).astype(jnp.bfloat16)   # (P, 384)
                acc = acc + jnp.dot(patch, w2_ref[dh],
                                    preferred_element_type=jnp.float32)
            a2 = jnp.maximum(acc * s2 + t2, 0.0).astype(jnp.bfloat16)        # (P, 64)
            # conv3 computed channels-first for a lane-dense store: (3, P)
            o = lax.dot_general(w3t, a2, (((1,), (1,)), ((), ())),
                                preferred_element_type=jnp.float32) + b3
            out_ref[0, pr, pc] = o


def albedo_generation_net(x_nchw, params):
    """x_nchw: (N, 128, H, W) float32 -> (N, 3, 2H, 2W) float32 (PyTorch NCHW)."""
    N, C, H, W = x_nchw.shape
    assert C == C_IN
    H2, W2 = 2 * H, 2 * W
    P = H * W

    # --- glue: NCHW -> NHWC, zero-pad spatially by 1 (halo for the up-conv) ---
    x = jnp.transpose(x_nchw, (0, 2, 3, 1)).astype(jnp.float32)
    xp = jnp.pad(x, ((0, 0), (1, 1), (1, 1), (0, 0)))            # (N, H+2, W+2, 128)

    # --- glue: parameter massaging (phase weights, BN folding, bf16 weights) ---
    wup = params["w_up"][:, 0]                                   # (128, 4, 4)
    rows = []
    for pr in range(2):
        for pc in range(2):
            for a in range(2):
                for b in range(2):
                    rows.append(wup[:, 3 - pr - 2 * a, 3 - pc - 2 * b])
    wup_k = jnp.stack(rows, axis=0)                              # (16, 128)

    s1 = params["bn1_g"] / jnp.sqrt(params["bn1_rv"] + EPS)
    t1 = (params["b1"] - params["bn1_rm"]) * s1 + params["bn1_b"]
    w1_k = params["w1"][:, :, 0, 0].T.astype(jnp.bfloat16)       # (128 in, 128 out)

    s2 = params["bn2_g"] / jnp.sqrt(params["bn2_rv"] + EPS)
    t2 = (params["b2"] - params["bn2_rm"]) * s2 + params["bn2_b"]
    w2_k = jnp.transpose(params["w2"], (2, 3, 1, 0))             # (3, 3, 128, 64)
    w2_k = w2_k.reshape(3, 3 * C_IN, C_MID).astype(jnp.bfloat16)  # (3, 384, 64)

    w3t_k = params["w3"][:, :, 0, 0].astype(jnp.bfloat16)        # (3, 64) = (out, in)
    b3_k = params["b3"].reshape(C_OUT, 1)

    # --- explicit VMEM budget (floor at default 32 MiB, cap below v7x physical) ---
    in_block_bytes = ((H + 2) * (W + 2) * C_IN * 4
                      + 16 * C_IN * 4 + C_IN * C_IN * 2 + 4 * C_IN * 4
                      + 3 * 3 * C_IN * C_MID * 2 + 4 * C_MID * 4
                      + C_OUT * C_MID * 2 + C_OUT * 4)
    out_block_bytes = 2 * 2 * C_OUT * P * 4
    scratch_bytes = 4 * (H + 2) * (W + 2) * C_IN * 4
    tmp_bytes = P * 3 * C_IN * 4 + 6 * P * C_IN * 4              # im2col / up / a1 temps
    vmem_limit = int(min(max(2 * (in_block_bytes + out_block_bytes)
                             + scratch_bytes + tmp_bytes + (8 << 20),
                             32 << 20), 48 << 20))

    out6 = pl.pallas_call(
        _albedo_kernel,
        out_shape=jax.ShapeDtypeStruct((N, 2, 2, C_OUT, P), jnp.float32),
        grid_spec=pltpu.PrefetchScalarGridSpec(
            num_scalar_prefetch=0,
            grid=(N,),
            in_specs=[
                pl.BlockSpec((1, H + 2, W + 2, C_IN), lambda n: (n, 0, 0, 0)),
                pl.BlockSpec((16, C_IN), lambda n: (0, 0)),
                pl.BlockSpec((C_IN, C_IN), lambda n: (0, 0)),
                pl.BlockSpec((1, C_IN), lambda n: (0, 0)),
                pl.BlockSpec((1, C_IN), lambda n: (0, 0)),
                pl.BlockSpec((3, 3 * C_IN, C_MID), lambda n: (0, 0, 0)),
                pl.BlockSpec((1, C_MID), lambda n: (0, 0)),
                pl.BlockSpec((1, C_MID), lambda n: (0, 0)),
                pl.BlockSpec((C_OUT, C_MID), lambda n: (0, 0)),
                pl.BlockSpec((C_OUT, 1), lambda n: (0, 0)),
            ],
            out_specs=pl.BlockSpec((1, 2, 2, C_OUT, P), lambda n: (n, 0, 0, 0, 0)),
            scratch_shapes=[pltpu.VMEM((4, H + 2, W + 2, C_IN), jnp.float32)],
        ),
        compiler_params=pltpu.CompilerParams(
            dimension_semantics=("parallel",),
            vmem_limit_bytes=vmem_limit),
    )(xp, wup_k, w1_k, s1.reshape(1, C_IN), t1.reshape(1, C_IN),
      w2_k, s2.reshape(1, C_MID), t2.reshape(1, C_MID), w3t_k, b3_k)

    # --- glue: interleave the 4 sub-pixel phases and go back to NCHW ---
    out = out6.reshape(N, 2, 2, C_OUT, H, W)
    out = jnp.transpose(out, (0, 3, 4, 1, 5, 2)).reshape(N, C_OUT, H2, W2)
    return out


def init_params(key):
    ks = jax.random.split(key, 16)
    f32 = jnp.float32
    return {
        "w_up":   0.10 * jax.random.normal(ks[0], (128, 1, 4, 4), f32),
        "w1":     0.10 * jax.random.normal(ks[1], (128, 128, 1, 1), f32),
        "b1":     0.10 * jax.random.normal(ks[2], (128,), f32),
        "bn1_g":  1.0 + 0.10 * jax.random.normal(ks[3], (128,), f32),
        "bn1_b":  0.10 * jax.random.normal(ks[4], (128,), f32),
        "bn1_rm": 0.10 * jax.random.normal(ks[5], (128,), f32),
        "bn1_rv": 1.0 + 0.50 * jnp.abs(jax.random.normal(ks[6], (128,), f32)),
        "w2":     0.05 * jax.random.normal(ks[7], (64, 128, 3, 3), f32),
        "b2":     0.10 * jax.random.normal(ks[8], (64,), f32),
        "bn2_g":  1.0 + 0.10 * jax.random.normal(ks[9], (64,), f32),
        "bn2_b":  0.10 * jax.random.normal(ks[10], (64,), f32),
        "bn2_rm": 0.10 * jax.random.normal(ks[11], (64,), f32),
        "bn2_rv": 1.0 + 0.50 * jnp.abs(jax.random.normal(ks[12], (64,), f32)),
        "w3":     0.10 * jax.random.normal(ks[13], (3, 64, 1, 1), f32),
        "b3":     0.10 * jax.random.normal(ks[14], (3,), f32),
    }


def reference_forward(x, p):
    """Pure-JAX reference (lax convs) mirroring the PyTorch forward (eval-mode BN)."""
    dn = ("NCHW", "OIHW", "NCHW")
    # ConvTranspose2d(128,128,4,2,1,groups=128,bias=False) via dilated conv
    wflip = p["w_up"][:, :, ::-1, ::-1]
    y = lax.conv_general_dilated(x, wflip, (1, 1), ((2, 2), (2, 2)),
                                 lhs_dilation=(2, 2), dimension_numbers=dn,
                                 feature_group_count=128)

    def conv_bn_relu(y, w, b, g, be, rm, rv, pad):
        y = lax.conv_general_dilated(y, w, (1, 1), ((pad, pad), (pad, pad)),
                                     dimension_numbers=dn)
        y = y + b[None, :, None, None]
        y = (y - rm[None, :, None, None]) / jnp.sqrt(rv + EPS)[None, :, None, None]
        y = y * g[None, :, None, None] + be[None, :, None, None]
        return jnp.maximum(y, 0.0)

    y = conv_bn_relu(y, p["w1"], p["b1"], p["bn1_g"], p["bn1_b"],
                     p["bn1_rm"], p["bn1_rv"], 0)
    y = conv_bn_relu(y, p["w2"], p["b2"], p["bn2_g"], p["bn2_b"],
                     p["bn2_rm"], p["bn2_rv"], 1)
    y = lax.conv_general_dilated(y, p["w3"], (1, 1), ((0, 0), (0, 0)),
                                 dimension_numbers=dn)
    return y + p["b3"][None, :, None, None]


if __name__ == "__main__":
    key = jax.random.PRNGKey(0)
    kx, kp = jax.random.split(key)

    # Small shapes consistent with the module: 128-channel feature map, 8x8 spatial.
    x = jax.random.normal(kx, (2, 128, 8, 8), jnp.float32)   # NCHW (PyTorch style)
    params = init_params(kp)

    out = albedo_generation_net(x, params)
    out = jax.block_until_ready(out)
    assert out.shape == (2, 3, 16, 16), out.shape

    ref = reference_forward(x, params)
    np.testing.assert_allclose(np.asarray(out), np.asarray(ref), rtol=2e-2, atol=2e-2)

    print("KERNEL_OK")
</pallas_src>

<mosaic_0001>
module attributes {stable_mosaic.version = 11 : i64} {
  func.func @_albedo_kernel(%arg0: i32, %arg1: memref<1x10x10x128xf32, #tpu.memory_space<vmem>>, %arg2: memref<16x128xf32, #tpu.memory_space<vmem>>, %arg3: memref<128x128xbf16, #tpu.memory_space<vmem>>, %arg4: memref<1x128xf32, #tpu.memory_space<vmem>>, %arg5: memref<1x128xf32, #tpu.memory_space<vmem>>, %arg6: memref<3x384x64xbf16, #tpu.memory_space<vmem>>, %arg7: memref<1x64xf32, #tpu.memory_space<vmem>>, %arg8: memref<1x64xf32, #tpu.memory_space<vmem>>, %arg9: memref<3x64xbf16, #tpu.memory_space<vmem>>, %arg10: memref<3x1xf32, #tpu.memory_space<vmem>>, %arg11: memref<1x2x2x3x64xf32, #tpu.memory_space<vmem>>, %arg12: memref<4x10x10x128xf32, #tpu.memory_space<vmem>>) attributes {dimension_semantics = [#tpu.dimension_semantics<parallel>], iteration_bounds = array<i64: 2>, scalar_prefetch = 0 : i64, scratch_operands = 1 : i64, tpu.core_type = #tpu.core_type<tc>, window_params = [{transform_indices = @transform_0, window_bounds = array<i64: 1, 10, 10, 128>}, {pipeline_mode = #tpu.pipeline_mode<synchronous>, transform_indices = @transform_1, window_bounds = array<i64: 16, 128>}, {pipeline_mode = #tpu.pipeline_mode<synchronous>, transform_indices = @transform_2, window_bounds = array<i64: 128, 128>}, {pipeline_mode = #tpu.pipeline_mode<synchronous>, transform_indices = @transform_3, window_bounds = array<i64: 1, 128>}, {pipeline_mode = #tpu.pipeline_mode<synchronous>, transform_indices = @transform_4, window_bounds = array<i64: 1, 128>}, {pipeline_mode = #tpu.pipeline_mode<synchronous>, transform_indices = @transform_5, window_bounds = array<i64: 3, 384, 64>}, {pipeline_mode = #tpu.pipeline_mode<synchronous>, transform_indices = @transform_6, window_bounds = array<i64: 1, 64>}, {pipeline_mode = #tpu.pipeline_mode<synchronous>, transform_indices = @transform_7, window_bounds = array<i64: 1, 64>}, {pipeline_mode = #tpu.pipeline_mode<synchronous>, transform_indices = @transform_8, window_bounds = array<i64: 3, 64>}, {pipeline_mode = #tpu.pipeline_mode<synchronous>, transform_indices = @transform_9, window_bounds = array<i64: 3, 1>}, {transform_indices = @transform_10, window_bounds = array<i64: 1, 2, 2, 3, 64>}]} {
    %cst = arith.constant 0.000000e+00 : f32
    %0 = vector.broadcast %cst : f32 to vector<4x1x10x128xf32>
    %c0 = arith.constant 0 : index
    %c0_0 = arith.constant 0 : index
    %c0_1 = arith.constant 0 : index
    %c0_2 = arith.constant 0 : index
    %1 = vector.load %arg12[%c0, %c0_0, %c0_1, %c0_2] : memref<4x10x10x128xf32, #tpu.memory_space<vmem>>, vector<4x1x10x128xf32>
    tpu.vector_store %arg12[%c0, %c0_0, %c0_1, %c0_2], %0 {strides = array<i32>} : memref<4x10x10x128xf32, #tpu.memory_space<vmem>>, vector<4x1x10x128xf32>,
    %c0_3 = arith.constant 0 : index
    %c9 = arith.constant 9 : index
    %c0_4 = arith.constant 0 : index
    %c0_5 = arith.constant 0 : index
    %2 = vector.load %arg12[%c0_3, %c9, %c0_4, %c0_5] : memref<4x10x10x128xf32, #tpu.memory_space<vmem>>, vector<4x1x10x128xf32>
    tpu.vector_store %arg12[%c0_3, %c9, %c0_4, %c0_5], %0 {strides = array<i32>} : memref<4x10x10x128xf32, #tpu.memory_space<vmem>>, vector<4x1x10x128xf32>,
    %cst_6 = arith.constant 0.000000e+00 : f32
    %3 = vector.broadcast %cst_6 : f32 to vector<4x10x1x128xf32>
    %c0_7 = arith.constant 0 : index
    %c0_8 = arith.constant 0 : index
    %c0_9 = arith.constant 0 : index
    %c0_10 = arith.constant 0 : index
    %4 = vector.load %arg12[%c0_7, %c0_8, %c0_9, %c0_10] : memref<4x10x10x128xf32, #tpu.memory_space<vmem>>, vector<4x10x1x128xf32>
    tpu.vector_store %arg12[%c0_7, %c0_8, %c0_9, %c0_10], %3 {strides = array<i32>} : memref<4x10x10x128xf32, #tpu.memory_space<vmem>>, vector<4x10x1x128xf32>,
    %c0_11 = arith.constant 0 : index
    %c0_12 = arith.constant 0 : index
    %c9_13 = arith.constant 9 : index
    %c0_14 = arith.constant 0 : index
    %5 = vector.load %arg12[%c0_11, %c0_12, %c9_13, %c0_14] : memref<4x10x10x128xf32, #tpu.memory_space<vmem>>, vector<4x10x1x128xf32>
    tpu.vector_store %arg12[%c0_11, %c0_12, %c9_13, %c0_14], %3 {strides = array<i32>} : memref<4x10x10x128xf32, #tpu.memory_space<vmem>>, vector<4x10x1x128xf32>,
    %c0_15 = arith.constant 0 : index
    %c0_16 = arith.constant 0 : index
    %6 = vector.load %arg2[%c0_15, %c0_16] : memref<16x128xf32, #tpu.memory_space<vmem>>, vector<16x128xf32>
    %c0_17 = arith.constant 0 : index
    %c0_18 = arith.constant 0 : index
    %7 = vector.load %arg3[%c0_17, %c0_18] : memref<128x128xbf16, #tpu.memory_space<vmem>>, vector<128x128xbf16>
    %c0_19 = arith.constant 0 : index
    %c0_20 = arith.constant 0 : index
    %8 = vector.load %arg4[%c0_19, %c0_20] : memref<1x128xf32, #tpu.memory_space<vmem>>, vector<1x128xf32>
    %c0_21 = arith.constant 0 : index
    %c0_22 = arith.constant 0 : index
    %9 = vector.load %arg5[%c0_21, %c0_22] : memref<1x128xf32, #tpu.memory_space<vmem>>, vector<1x128xf32>
    %cst_23 = arith.constant 0.000000e+00 : f32
    %10 = vector.broadcast %cst_23 : f32 to vector<8x8x128xf32>
    %c0_24 = arith.constant 0 : index
    %c0_25 = arith.constant 0 : index
    %c0_26 = arith.constant 0 : index
    %c0_27 = arith.constant 0 : index
    %11 = vector.load %arg1[%c0_24, %c0_25, %c0_26, %c0_27] : memref<1x10x10x128xf32, #tpu.memory_space<vmem>>, vector<1x8x8x128xf32>
    %12 = vector.shape_cast %11 : vector<1x8x8x128xf32> to vector<8x8x128xf32>
    %13 = vector.extract_strided_slice %6 {offsets = [0, 0], sizes = [1, 128], strides = [1, 1]} : vector<16x128xf32> to vector<1x128xf32>
    %14 = vector.shape_cast %13 : vector<1x128xf32> to vector<128xf32>
    %15 = vector.shape_cast %14 : vector<128xf32> to vector<1x1x128xf32>
    %16 = vector.broadcast %15 : vector<1x1x128xf32> to vector<8x8x128xf32>
    %17 = arith.mulf %12, %16 : vector<8x8x128xf32>
    %18 = arith.addf %10, %17 : vector<8x8x128xf32>
    %c0_28 = arith.constant 0 : index
    %c0_29 = arith.constant 0 : index
    %c1 = arith.constant 1 : index
    %c0_30 = arith.constant 0 : index
    %19 = vector.load %arg1[%c0_28, %c0_29, %c1, %c0_30] : memref<1x10x10x128xf32, #tpu.memory_space<vmem>>, vector<1x8x8x128xf32>
    %20 = vector.shape_cast %19 : vector<1x8x8x128xf32> to vector<8x8x128xf32>
    %21 = vector.extract_strided_slice %6 {offsets = [1, 0], sizes = [1, 128], strides = [1, 1]} : vector<16x128xf32> to vector<1x128xf32>
    %22 = vector.shape_cast %21 : vector<1x128xf32> to vector<128xf32>
    %23 = vector.shape_cast %22 : vector<128xf32> to vector<1x1x128xf32>
    %24 = vector.broadcast %23 : vector<1x1x128xf32> to vector<8x8x128xf32>
    %25 = arith.mulf %20, %24 : vector<8x8x128xf32>
    %26 = arith.addf %18, %25 : vector<8x8x128xf32>
    %c0_31 = arith.constant 0 : index
    %c1_32 = arith.constant 1 : index
    %c0_33 = arith.constant 0 : index
    %c0_34 = arith.constant 0 : index
    %27 = vector.load %arg1[%c0_31, %c1_32, %c0_33, %c0_34] : memref<1x10x10x128xf32, #tpu.memory_space<vmem>>, vector<1x8x8x128xf32>
    %28 = vector.shape_cast %27 : vector<1x8x8x128xf32> to vector<8x8x128xf32>
    %29 = vector.extract_strided_slice %6 {offsets = [2, 0], sizes = [1, 128], strides = [1, 1]} : vector<16x128xf32> to vector<1x128xf32>
    %30 = vector.shape_cast %29 : vector<1x128xf32> to vector<128xf32>
    %31 = vector.shape_cast %30 : vector<128xf32> to vector<1x1x128xf32>
    %32 = vector.broadcast %31 : vector<1x1x128xf32> to vector<8x8x128xf32>
    %33 = arith.mulf %28, %32 : vector<8x8x128xf32>
    %34 = arith.addf %26, %33 : vector<8x8x128xf32>
    %c0_35 = arith.constant 0 : index
    %c1_36 = arith.constant 1 : index
    %c1_37 = arith.constant 1 : index
    %c0_38 = arith.constant 0 : index
    %35 = vector.load %arg1[%c0_35, %c1_36, %c1_37, %c0_38] : memref<1x10x10x128xf32, #tpu.memory_space<vmem>>, vector<1x8x8x128xf32>
    %36 = vector.shape_cast %35 : vector<1x8x8x128xf32> to vector<8x8x128xf32>
    %37 = vector.extract_strided_slice %6 {offsets = [3, 0], sizes = [1, 128], strides = [1, 1]} : vector<16x128xf32> to vector<1x128xf32>
    %38 = vector.shape_cast %37 : vector<1x128xf32> to vector<128xf32>
    %39 = vector.shape_cast %38 : vector<128xf32> to vector<1x1x128xf32>
    %40 = vector.broadcast %39 : vector<1x1x128xf32> to vector<8x8x128xf32>
    %41 = arith.mulf %36, %40 : vector<8x8x128xf32>
    %42 = arith.addf %34, %41 : vector<8x8x128xf32>
    %43 = vector.shape_cast %42 : vector<8x8x128xf32> to vector<64x128xf32>
    %44 = arith.truncf %43 : vector<64x128xf32> to vector<64x128xbf16>
    %cst_39 = arith.constant dense<0.000000e+00> : vector<64x128xf32>
    %45 = tpu.matmul %44, %7, %cst_39 {dimension_numbers = #tpu.dot_dimension_numbers<[1], [0], [0], [1], [0, 0, 1, 1], [], []>} : vector<64x128xbf16>, vector<128x128xbf16>, vector<64x128xf32> -> vector<64x128xf32>
    %46 = vector.broadcast %8 : vector<1x128xf32> to vector<64x128xf32>
    %47 = arith.mulf %45, %46 : vector<64x128xf32>
    %48 = vector.broadcast %9 : vector<1x128xf32> to vector<64x128xf32>
    %49 = arith.addf %47, %48 : vector<64x128xf32>
    %cst_40 = arith.constant 0.000000e+00 : f32
    %50 = vector.broadcast %cst_40 : f32 to vector<64x128xf32>
    %51 = arith.maximumf %49, %50 : vector<64x128xf32>
    %52 = vector.shape_cast %51 : vector<64x128xf32> to vector<8x8x128xf32>
    %c0_41 = arith.constant 0 : index
    %c1_42 = arith.constant 1 : index
    %c1_43 = arith.constant 1 : index
    %c0_44 = arith.constant 0 : index
    %53 = vector.load %arg12[%c0_41, %c1_42, %c1_43, %c0_44] : memref<4x10x10x128xf32, #tpu.memory_space<vmem>>, vector<1x8x8x128xf32>
    %54 = vector.shape_cast %53 : vector<1x8x8x128xf32> to vector<8x8x128xf32>
    %55 = vector.shape_cast %52 : vector<8x8x128xf32> to vector<1x8x8x128xf32>
    tpu.vector_store %arg12[%c0_41, %c1_42, %c1_43, %c0_44], %55 {strides = array<i32>} : memref<4x10x10x128xf32, #tpu.memory_space<vmem>>, vector<1x8x8x128xf32>,
    %cst_45 = arith.constant 0.000000e+00 : f32
    %56 = vector.broadcast %cst_45 : f32 to vector<8x8x128xf32>
    %c0_46 = arith.constant 0 : index
    %c0_47 = arith.constant 0 : index
    %c1_48 = arith.constant 1 : index
    %c0_49 = arith.constant 0 : index
    %57 = vector.load %arg1[%c0_46, %c0_47, %c1_48, %c0_49] : memref<1x10x10x128xf32, #tpu.memory_space<vmem>>, vector<1x8x8x128xf32>
    %58 = vector.shape_cast %57 : vector<1x8x8x128xf32> to vector<8x8x128xf32>
    %59 = vector.extract_strided_slice %6 {offsets = [4, 0], sizes = [1, 128], strides = [1, 1]} : vector<16x128xf32> to vector<1x128xf32>
    %60 = vector.shape_cast %59 : vector<1x128xf32> to vector<128xf32>
    %61 = vector.shape_cast %60 : vector<128xf32> to vector<1x1x128xf32>
    %62 = vector.broadcast %61 : vector<1x1x128xf32> to vector<8x8x128xf32>
    %63 = arith.mulf %58, %62 : vector<8x8x128xf32>
    %64 = arith.addf %56, %63 : vector<8x8x128xf32>
    %c0_50 = arith.constant 0 : index
    %c0_51 = arith.constant 0 : index
    %c2 = arith.constant 2 : index
    %c0_52 = arith.constant 0 : index
    %65 = vector.load %arg1[%c0_50, %c0_51, %c2, %c0_52] : memref<1x10x10x128xf32, #tpu.memory_space<vmem>>, vector<1x8x8x128xf32>
    %66 = vector.shape_cast %65 : vector<1x8x8x128xf32> to vector<8x8x128xf32>
    %67 = vector.extract_strided_slice %6 {offsets = [5, 0], sizes = [1, 128], strides = [1, 1]} : vector<16x128xf32> to vector<1x128xf32>
    %68 = vector.shape_cast %67 : vector<1x128xf32> to vector<128xf32>
    %69 = vector.shape_cast %68 : vector<128xf32> to vector<1x1x128xf32>
    %70 = vector.broadcast %69 : vector<1x1x128xf32> to vector<8x8x128xf32>
    %71 = arith.mulf %66, %70 : vector<8x8x128xf32>
    %72 = arith.addf %64, %71 : vector<8x8x128xf32>
    %c0_53 = arith.constant 0 : index
    %c1_54 = arith.constant 1 : index
    %c1_55 = arith.constant 1 : index
    %c0_56 = arith.constant 0 : index
    %73 = vector.load %arg1[%c0_53, %c1_54, %c1_55, %c0_56] : memref<1x10x10x128xf32, #tpu.memory_space<vmem>>, vector<1x8x8x128xf32>
    %74 = vector.shape_cast %73 : vector<1x8x8x128xf32> to vector<8x8x128xf32>
    %75 = vector.extract_strided_slice %6 {offsets = [6, 0], sizes = [1, 128], strides = [1, 1]} : vector<16x128xf32> to vector<1x128xf32>
    %76 = vector.shape_cast %75 : vector<1x128xf32> to vector<128xf32>
    %77 = vector.shape_cast %76 : vector<128xf32> to vector<1x1x128xf32>
    %78 = vector.broadcast %77 : vector<1x1x128xf32> to vector<8x8x128xf32>
    %79 = arith.mulf %74, %78 : vector<8x8x128xf32>
    %80 = arith.addf %72, %79 : vector<8x8x128xf32>
    %c0_57 = arith.constant 0 : index
    %c1_58 = arith.constant 1 : index
    %c2_59 = arith.constant 2 : index
    %c0_60 = arith.constant 0 : index
    %81 = vector.load %arg1[%c0_57, %c1_58, %c2_59, %c0_60] : memref<1x10x10x128xf32, #tpu.memory_space<vmem>>, vector<1x8x8x128xf32>
    %82 = vector.shape_cast %81 : vector<1x8x8x128xf32> to vector<8x8x128xf32>
    %83 = vector.extract_strided_slice %6 {offsets = [7, 0], sizes = [1, 128], strides = [1, 1]} : vector<16x128xf32> to vector<1x128xf32>
    %84 = vector.shape_cast %83 : vector<1x128xf32> to vector<128xf32>
    %85 = vector.shape_cast %84 : vector<128xf32> to vector<1x1x128xf32>
    %86 = vector.broadcast %85 : vector<1x1x128xf32> to vector<8x8x128xf32>
    %87 = arith.mulf %82, %86 : vector<8x8x128xf32>
    %88 = arith.addf %80, %87 : vector<8x8x128xf32>
    %89 = vector.shape_cast %88 : vector<8x8x128xf32> to vector<64x128xf32>
    %90 = arith.truncf %89 : vector<64x128xf32> to vector<64x128xbf16>
    %cst_61 = arith.constant dense<0.000000e+00> : vector<64x128xf32>
    %91 = tpu.matmul %90, %7, %cst_61 {dimension_numbers = #tpu.dot_dimension_numbers<[1], [0], [0], [1], [0, 0, 1, 1], [], []>} : vector<64x128xbf16>, vector<128x128xbf16>, vector<64x128xf32> -> vector<64x128xf32>
    %92 = vector.broadcast %8 : vector<1x128xf32> to vector<64x128xf32>
    %93 = arith.mulf %91, %92 : vector<64x128xf32>
    %94 = vector.broadcast %9 : vector<1x128xf32> to vector<64x128xf32>
    %95 = arith.addf %93, %94 : vector<64x128xf32>
    %cst_62 = arith.constant 0.000000e+00 : f32
    %96 = vector.broadcast %cst_62 : f32 to vector<64x128xf32>
    %97 = arith.maximumf %95, %96 : vector<64x128xf32>
    %98 = vector.shape_cast %97 : vector<64x128xf32> to vector<8x8x128xf32>
    %c1_63 = arith.constant 1 : index
    %c1_64 = arith.constant 1 : index
    %c1_65 = arith.constant 1 : index
    %c0_66 = arith.constant 0 : index
    %99 = vector.load %arg12[%c1_63, %c1_64, %c1_65, %c0_66] : memref<4x10x10x128xf32, #tpu.memory_space<vmem>>, vector<1x8x8x128xf32>
    %100 = vector.shape_cast %99 : vector<1x8x8x128xf32> to vector<8x8x128xf32>
    %101 = vector.shape_cast %98 : vector<8x8x128xf32> to vector<1x8x8x128xf32>
    tpu.vector_store %arg12[%c1_63, %c1_64, %c1_65, %c0_66], %101 {strides = array<i32>} : memref<4x10x10x128xf32, #tpu.memory_space<vmem>>, vector<1x8x8x128xf32>,
    %cst_67 = arith.constant 0.000000e+00 : f32
    %102 = vector.broadcast %cst_67 : f32 to vector<8x8x128xf32>
    %c0_68 = arith.constant 0 : index
    %c1_69 = arith.constant 1 : index
    %c0_70 = arith.constant 0 : index
    %c0_71 = arith.constant 0 : index
    %103 = vector.load %arg1[%c0_68, %c1_69, %c0_70, %c0_71] : memref<1x10x10x128xf32, #tpu.memory_space<vmem>>, vector<1x8x8x128xf32>
    %104 = vector.shape_cast %103 : vector<1x8x8x128xf32> to vector<8x8x128xf32>
    %105 = vector.extract_strided_slice %6 {offsets = [8, 0], sizes = [1, 128], strides = [1, 1]} : vector<16x128xf32> to vector<1x128xf32>
    %106 = vector.shape_cast %105 : vector<1x128xf32> to vector<128xf32>
    %107 = vector.shape_cast %106 : vector<128xf32> to vector<1x1x128xf32>
    %108 = vector.broadcast %107 : vector<1x1x128xf32> to vector<8x8x128xf32>
    %109 = arith.mulf %104, %108 : vector<8x8x128xf32>
    %110 = arith.addf %102, %109 : vector<8x8x128xf32>
    %c0_72 = arith.constant 0 : index
    %c1_73 = arith.constant 1 : index
    %c1_74 = arith.constant 1 : index
    %c0_75 = arith.constant 0 : index
    %111 = vector.load %arg1[%c0_72, %c1_73, %c1_74, %c0_75] : memref<1x10x10x128xf32, #tpu.memory_space<vmem>>, vector<1x8x8x128xf32>
    %112 = vector.shape_cast %111 : vector<1x8x8x128xf32> to vector<8x8x128xf32>
    %113 = vector.extract_strided_slice %6 {offsets = [9, 0], sizes = [1, 128], strides = [1, 1]} : vector<16x128xf32> to vector<1x128xf32>
    %114 = vector.shape_cast %113 : vector<1x128xf32> to vector<128xf32>
    %115 = vector.shape_cast %114 : vector<128xf32> to vector<1x1x128xf32>
    %116 = vector.broadcast %115 : vector<1x1x128xf32> to vector<8x8x128xf32>
    %117 = arith.mulf %112, %116 : vector<8x8x128xf32>
    %118 = arith.addf %110, %117 : vector<8x8x128xf32>
    %c0_76 = arith.constant 0 : index
    %c2_77 = arith.constant 2 : index
    %c0_78 = arith.constant 0 : index
    %c0_79 = arith.constant 0 : index
    %119 = vector.load %arg1[%c0_76, %c2_77, %c0_78, %c0_79] : memref<1x10x10x128xf32, #tpu.memory_space<vmem>>, vector<1x8x8x128xf32>
    %120 = vector.shape_cast %119 : vector<1x8x8x128xf32> to vector<8x8x128xf32>
    %121 = vector.extract_strided_slice %6 {offsets = [10, 0], sizes = [1, 128], strides = [1, 1]} : vector<16x128xf32> to vector<1x128xf32>
    %122 = vector.shape_cast %121 : vector<1x128xf32> to vector<128xf32>
    %123 = vector.shape_cast %122 : vector<128xf32> to vector<1x1x128xf32>
    %124 = vector.broadcast %123 : vector<1x1x128xf32> to vector<8x8x128xf32>
    %125 = arith.mulf %120, %124 : vector<8x8x128xf32>
    %126 = arith.addf %118, %125 : vector<8x8x128xf32>
    %c0_80 = arith.constant 0 : index
    %c2_81 = arith.constant 2 : index
    %c1_82 = arith.constant 1 : index
    %c0_83 = arith.constant 0 : index
    %127 = vector.load %arg1[%c0_80, %c2_81, %c1_82, %c0_83] : memref<1x10x10x128xf32, #tpu.memory_space<vmem>>, vector<1x8x8x128xf32>
    %128 = vector.shape_cast %127 : vector<1x8x8x128xf32> to vector<8x8x128xf32>
    %129 = vector.extract_strided_slice %6 {offsets = [11, 0], sizes = [1, 128], strides = [1, 1]} : vector<16x128xf32> to vector<1x128xf32>
    %130 = vector.shape_cast %129 : vector<1x128xf32> to vector<128xf32>
    %131 = vector.shape_cast %130 : vector<128xf32> to vector<1x1x128xf32>
    %132 = vector.broadcast %131 : vector<1x1x128xf32> to vector<8x8x128xf32>
    %133 = arith.mulf %128, %132 : vector<8x8x128xf32>
    %134 = arith.addf %126, %133 : vector<8x8x128xf32>
    %135 = vector.shape_cast %134 : vector<8x8x128xf32> to vector<64x128xf32>
    %136 = arith.truncf %135 : vector<64x128xf32> to vector<64x128xbf16>
    %cst_84 = arith.constant dense<0.000000e+00> : vector<64x128xf32>
    %137 = tpu.matmul %136, %7, %cst_84 {dimension_numbers = #tpu.dot_dimension_numbers<[1], [0], [0], [1], [0, 0, 1, 1], [], []>} : vector<64x128xbf16>, vector<128x128xbf16>, vector<64x128xf32> -> vector<64x128xf32>
    %138 = vector.broadcast %8 : vector<1x128xf32> to vector<64x128xf32>
    %139 = arith.mulf %137, %138 : vector<64x128xf32>
    %140 = vector.broadcast %9 : vector<1x128xf32> to vector<64x128xf32>
    %141 = arith.addf %139, %140 : vector<64x128xf32>
    %cst_85 = arith.constant 0.000000e+00 : f32
    %142 = vector.broadcast %cst_85 : f32 to vector<64x128xf32>
    %143 = arith.maximumf %141, %142 : vector<64x128xf32>
    %144 = vector.shape_cast %143 : vector<64x128xf32> to vector<8x8x128xf32>
    %c2_86 = arith.constant 2 : index
    %c1_87 = arith.constant 1 : index
    %c1_88 = arith.constant 1 : index
    %c0_89 = arith.constant 0 : index
    %145 = vector.load %arg12[%c2_86, %c1_87, %c1_88, %c0_89] : memref<4x10x10x128xf32, #tpu.memory_space<vmem>>, vector<1x8x8x128xf32>
    %146 = vector.shape_cast %145 : vector<1x8x8x128xf32> to vector<8x8x128xf32>
    %147 = vector.shape_cast %144 : vector<8x8x128xf32> to vector<1x8x8x128xf32>
    tpu.vector_store %arg12[%c2_86, %c1_87, %c1_88, %c0_89], %147 {strides = array<i32>} : memref<4x10x10x128xf32, #tpu.memory_space<vmem>>, vector<1x8x8x128xf32>,
    %cst_90 = arith.constant 0.000000e+00 : f32
    %148 = vector.broadcast %cst_90 : f32 to vector<8x8x128xf32>
    %c0_91 = arith.constant 0 : index
    %c1_92 = arith.constant 1 : index
    %c1_93 = arith.constant 1 : index
    %c0_94 = arith.constant 0 : index
    %149 = vector.load %arg1[%c0_91, %c1_92, %c1_93, %c0_94] : memref<1x10x10x128xf32, #tpu.memory_space<vmem>>, vector<1x8x8x128xf32>
    %150 = vector.shape_cast %149 : vector<1x8x8x128xf32> to vector<8x8x128xf32>
    %151 = vector.extract_strided_slice %6 {offsets = [12, 0], sizes = [1, 128], strides = [1, 1]} : vector<16x128xf32> to vector<1x128xf32>
    %152 = vector.shape_cast %151 : vector<1x128xf32> to vector<128xf32>
    %153 = vector.shape_cast %152 : vector<128xf32> to vector<1x1x128xf32>
    %154 = vector.broadcast %153 : vector<1x1x128xf32> to vector<8x8x128xf32>
    %155 = arith.mulf %150, %154 : vector<8x8x128xf32>
    %156 = arith.addf %148, %155 : vector<8x8x128xf32>
    %c0_95 = arith.constant 0 : index
    %c1_96 = arith.constant 1 : index
    %c2_97 = arith.constant 2 : index
    %c0_98 = arith.constant 0 : index
    %157 = vector.load %arg1[%c0_95, %c1_96, %c2_97, %c0_98] : memref<1x10x10x128xf32, #tpu.memory_space<vmem>>, vector<1x8x8x128xf32>
    %158 = vector.shape_cast %157 : vector<1x8x8x128xf32> to vector<8x8x128xf32>
    %159 = vector.extract_strided_slice %6 {offsets = [13, 0], sizes = [1, 128], strides = [1, 1]} : vector<16x128xf32> to vector<1x128xf32>
    %160 = vector.shape_cast %159 : vector<1x128xf32> to vector<128xf32>
    %161 = vector.shape_cast %160 : vector<128xf32> to vector<1x1x128xf32>
    %162 = vector.broadcast %161 : vector<1x1x128xf32> to vector<8x8x128xf32>
    %163 = arith.mulf %158, %162 : vector<8x8x128xf32>
    %164 = arith.addf %156, %163 : vector<8x8x128xf32>
    %c0_99 = arith.constant 0 : index
    %c2_100 = arith.constant 2 : index
    %c1_101 = arith.constant 1 : index
    %c0_102 = arith.constant 0 : index
    %165 = vector.load %arg1[%c0_99, %c2_100, %c1_101, %c0_102] : memref<1x10x10x128xf32, #tpu.memory_space<vmem>>, vector<1x8x8x128xf32>
    %166 = vector.shape_cast %165 : vector<1x8x8x128xf32> to vector<8x8x128xf32>
    %167 = vector.extract_strided_slice %6 {offsets = [14, 0], sizes = [1, 128], strides = [1, 1]} : vector<16x128xf32> to vector<1x128xf32>
    %168 = vector.shape_cast %167 : vector<1x128xf32> to vector<128xf32>
    %169 = vector.shape_cast %168 : vector<128xf32> to vector<1x1x128xf32>
    %170 = vector.broadcast %169 : vector<1x1x128xf32> to vector<8x8x128xf32>
    %171 = arith.mulf %166, %170 : vector<8x8x128xf32>
    %172 = arith.addf %164, %171 : vector<8x8x128xf32>
    %c0_103 = arith.constant 0 : index
    %c2_104 = arith.constant 2 : index
    %c2_105 = arith.constant 2 : index
    %c0_106 = arith.constant 0 : index
    %173 = vector.load %arg1[%c0_103, %c2_104, %c2_105, %c0_106] : memref<1x10x10x128xf32, #tpu.memory_space<vmem>>, vector<1x8x8x128xf32>
    %174 = vector.shape_cast %173 : vector<1x8x8x128xf32> to vector<8x8x128xf32>
    %175 = vector.extract_strided_slice %6 {offsets = [15, 0], sizes = [1, 128], strides = [1, 1]} : vector<16x128xf32> to vector<1x128xf32>
    %176 = vector.shape_cast %175 : vector<1x128xf32> to vector<128xf32>
    %177 = vector.shape_cast %176 : vector<128xf32> to vector<1x1x128xf32>
    %178 = vector.broadcast %177 : vector<1x1x128xf32> to vector<8x8x128xf32>
    %179 = arith.mulf %174, %178 : vector<8x8x128xf32>
    %180 = arith.addf %172, %179 : vector<8x8x128xf32>
    %181 = vector.shape_cast %180 : vector<8x8x128xf32> to vector<64x128xf32>
    %182 = arith.truncf %181 : vector<64x128xf32> to vector<64x128xbf16>
    %cst_107 = arith.constant dense<0.000000e+00> : vector<64x128xf32>
    %183 = tpu.matmul %182, %7, %cst_107 {dimension_numbers = #tpu.dot_dimension_numbers<[1], [0], [0], [1], [0, 0, 1, 1], [], []>} : vector<64x128xbf16>, vector<128x128xbf16>, vector<64x128xf32> -> vector<64x128xf32>
    %184 = vector.broadcast %8 : vector<1x128xf32> to vector<64x128xf32>
    %185 = arith.mulf %183, %184 : vector<64x128xf32>
    %186 = vector.broadcast %9 : vector<1x128xf32> to vector<64x128xf32>
    %187 = arith.addf %185, %186 : vector<64x128xf32>
    %cst_108 = arith.constant 0.000000e+00 : f32
    %188 = vector.broadcast %cst_108 : f32 to vector<64x128xf32>
    %189 = arith.maximumf %187, %188 : vector<64x128xf32>
    %190 = vector.shape_cast %189 : vector<64x128xf32> to vector<8x8x128xf32>
    %c3 = arith.constant 3 : index
    %c1_109 = arith.constant 1 : index
    %c1_110 = arith.constant 1 : index
    %c0_111 = arith.constant 0 : index
    %191 = vector.load %arg12[%c3, %c1_109, %c1_110, %c0_111] : memref<4x10x10x128xf32, #tpu.memory_space<vmem>>, vector<1x8x8x128xf32>
    %192 = vector.shape_cast %191 : vector<1x8x8x128xf32> to vector<8x8x128xf32>
    %193 = vector.shape_cast %190 : vector<8x8x128xf32> to vector<1x8x8x128xf32>
    tpu.vector_store %arg12[%c3, %c1_109, %c1_110, %c0_111], %193 {strides = array<i32>} : memref<4x10x10x128xf32, #tpu.memory_space<vmem>>, vector<1x8x8x128xf32>,
    %c0_112 = arith.constant 0 : index
    %c0_113 = arith.constant 0 : index
    %194 = vector.load %arg7[%c0_112, %c0_113] : memref<1x64xf32, #tpu.memory_space<vmem>>, vector<1x64xf32>
    %c0_114 = arith.constant 0 : index
    %c0_115 = arith.constant 0 : index
    %195 = vector.load %arg8[%c0_114, %c0_115] : memref<1x64xf32, #tpu.memory_space<vmem>>, vector<1x64xf32>
    %c0_116 = arith.constant 0 : index
    %c0_117 = arith.constant 0 : index
    %196 = vector.load %arg9[%c0_116, %c0_117] : memref<3x64xbf16, #tpu.memory_space<vmem>>, vector<3x64xbf16>
    %c0_118 = arith.constant 0 : index
    %c0_119 = arith.constant 0 : index
    %197 = vector.load %arg10[%c0_118, %c0_119] : memref<3x1xf32, #tpu.memory_space<vmem>>, vector<3x1xf32>
    %cst_120 = arith.constant 0.000000e+00 : f32
    %198 = vector.broadcast %cst_120 : f32 to vector<64x64xf32>
    %c3_121 = arith.constant 3 : index
    %c0_122 = arith.constant 0 : index
    %c0_123 = arith.constant 0 : index
    %c0_124 = arith.constant 0 : index
    %199 = vector.load %arg12[%c3_121, %c0_122, %c0_123, %c0_124] : memref<4x10x10x128xf32, #tpu.memory_space<vmem>>, vector<1x8x8x128xf32>
    %200 = vector.shape_cast %199 : vector<1x8x8x128xf32> to vector<8x8x128xf32>
    %201 = vector.shape_cast %200 : vector<8x8x128xf32> to vector<64x128xf32>
    %c2_125 = arith.constant 2 : index
    %c0_126 = arith.constant 0 : index
    %c1_127 = arith.constant 1 : index
    %c0_128 = arith.constant 0 : index
    %202 = vector.load %arg12[%c2_125, %c0_126, %c1_127, %c0_128] : memref<4x10x10x128xf32, #tpu.memory_space<vmem>>, vector<1x8x8x128xf32>
    %203 = vector.shape_cast %202 : vector<1x8x8x128xf32> to vector<8x8x128xf32>
    %204 = vector.shape_cast %203 : vector<8x8x128xf32> to vector<64x128xf32>
    %c3_129 = arith.constant 3 : index
    %c0_130 = arith.constant 0 : index
    %c1_131 = arith.constant 1 : index
    %c0_132 = arith.constant 0 : index
    %205 = vector.load %arg12[%c3_129, %c0_130, %c1_131, %c0_132] : memref<4x10x10x128xf32, #tpu.memory_space<vmem>>, vector<1x8x8x128xf32>
    %206 = vector.shape_cast %205 : vector<1x8x8x128xf32> to vector<8x8x128xf32>
    %207 = vector.shape_cast %206 : vector<8x8x128xf32> to vector<64x128xf32>
    %208 = tpu.concatenate %201, %204, %207 in 1 : vector<64x128xf32>, vector<64x128xf32>, vector<64x128xf32> -> vector<64x384xf32>
    %209 = arith.truncf %208 : vector<64x384xf32> to vector<64x384xbf16>
    %c0_133 = arith.constant 0 : index
    %c0_134 = arith.constant 0 : index
    %c0_135 = arith.constant 0 : index
    %210 = vector.load %arg6[%c0_133, %c0_134, %c0_135] : memref<3x384x64xbf16, #tpu.memory_space<vmem>>, vector<1x384x64xbf16>
    %211 = vector.shape_cast %210 : vector<1x384x64xbf16> to vector<384x64xbf16>
    %cst_136 = arith.constant dense<0.000000e+00> : vector<64x64xf32>
    %212 = tpu.matmul %209, %211, %cst_136 {dimension_numbers = #tpu.dot_dimension_numbers<[1], [0], [0], [1], [0, 0, 1, 1], [], []>} : vector<64x384xbf16>, vector<384x64xbf16>, vector<64x64xf32> -> vector<64x64xf32>
    %213 = arith.addf %198, %212 : vector<64x64xf32>
    %c1_137 = arith.constant 1 : index
    %c1_138 = arith.constant 1 : index
    %c0_139 = arith.constant 0 : index
    %c0_140 = arith.constant 0 : index
    %214 = vector.load %arg12[%c1_137, %c1_138, %c0_139, %c0_140] : memref<4x10x10x128xf32, #tpu.memory_space<vmem>>, vector<1x8x8x128xf32>
    %215 = vector.shape_cast %214 : vector<1x8x8x128xf32> to vector<8x8x128xf32>
    %216 = vector.shape_cast %215 : vector<8x8x128xf32> to vector<64x128xf32>
    %c0_141 = arith.constant 0 : index
    %c1_142 = arith.constant 1 : index
    %c1_143 = arith.constant 1 : index
    %c0_144 = arith.constant 0 : index
    %217 = vector.load %arg12[%c0_141, %c1_142, %c1_143, %c0_144] : memref<4x10x10x128xf32, #tpu.memory_space<vmem>>, vector<1x8x8x128xf32>
    %218 = vector.shape_cast %217 : vector<1x8x8x128xf32> to vector<8x8x128xf32>
    %219 = vector.shape_cast %218 : vector<8x8x128xf32> to vector<64x128xf32>
    %c1_145 = arith.constant 1 : index
    %c1_146 = arith.constant 1 : index
    %c1_147 = arith.constant 1 : index
    %c0_148 = arith.constant 0 : index
    %220 = vector.load %arg12[%c1_145, %c1_146, %c1_147, %c0_148] : memref<4x10x10x128xf32, #tpu.memory_space<vmem>>, vector<1x8x8x128xf32>
    %221 = vector.shape_cast %220 : vector<1x8x8x128xf32> to vector<8x8x128xf32>
    %222 = vector.shape_cast %221 : vector<8x8x128xf32> to vector<64x128xf32>
    %223 = tpu.concatenate %216, %219, %222 in 1 : vector<64x128xf32>, vector<64x128xf32>, vector<64x128xf32> -> vector<64x384xf32>
    %224 = arith.truncf %223 : vector<64x384xf32> to vector<64x384xbf16>
    %c1_149 = arith.constant 1 : index
    %c0_150 = arith.constant 0 : index
    %c0_151 = arith.constant 0 : index
    %225 = vector.load %arg6[%c1_149, %c0_150, %c0_151] : memref<3x384x64xbf16, #tpu.memory_space<vmem>>, vector<1x384x64xbf16>
    %226 = vector.shape_cast %225 : vector<1x384x64xbf16> to vector<384x64xbf16>
    %cst_152 = arith.constant dense<0.000000e+00> : vector<64x64xf32>
    %227 = tpu.matmul %224, %226, %cst_152 {dimension_numbers = #tpu.dot_dimension_numbers<[1], [0], [0], [1], [0, 0, 1, 1], [], []>} : vector<64x384xbf16>, vector<384x64xbf16>, vector<64x64xf32> -> vector<64x64xf32>
    %228 = arith.addf %213, %227 : vector<64x64xf32>
    %c3_153 = arith.constant 3 : index
    %c1_154 = arith.constant 1 : index
    %c0_155 = arith.constant 0 : index
    %c0_156 = arith.constant 0 : index
    %229 = vector.load %arg12[%c3_153, %c1_154, %c0_155, %c0_156] : memref<4x10x10x128xf32, #tpu.memory_space<vmem>>, vector<1x8x8x128xf32>
    %230 = vector.shape_cast %229 : vector<1x8x8x128xf32> to vector<8x8x128xf32>
    %231 = vector.shape_cast %230 : vector<8x8x128xf32> to vector<64x128xf32>
    %c2_157 = arith.constant 2 : index
    %c1_158 = arith.constant 1 : index
    %c1_159 = arith.constant 1 : index
    %c0_160 = arith.constant 0 : index
    %232 = vector.load %arg12[%c2_157, %c1_158, %c1_159, %c0_160] : memref<4x10x10x128xf32, #tpu.memory_space<vmem>>, vector<1x8x8x128xf32>
    %233 = vector.shape_cast %232 : vector<1x8x8x128xf32> to vector<8x8x128xf32>
    %234 = vector.shape_cast %233 : vector<8x8x128xf32> to vector<64x128xf32>
    %c3_161 = arith.constant 3 : index
    %c1_162 = arith.constant 1 : index
    %c1_163 = arith.constant 1 : index
    %c0_164 = arith.constant 0 : index
    %235 = vector.load %arg12[%c3_161, %c1_162, %c1_163, %c0_164] : memref<4x10x10x128xf32, #tpu.memory_space<vmem>>, vector<1x8x8x128xf32>
    %236 = vector.shape_cast %235 : vector<1x8x8x128xf32> to vector<8x8x128xf32>
    %237 = vector.shape_cast %236 : vector<8x8x128xf32> to vector<64x128xf32>
    %238 = tpu.concatenate %231, %234, %237 in 1 : vector<64x128xf32>, vector<64x128xf32>, vector<64x128xf32> -> vector<64x384xf32>
    %239 = arith.truncf %238 : vector<64x384xf32> to vector<64x384xbf16>
    %c2_165 = arith.constant 2 : index
    %c0_166 = arith.constant 0 : index
    %c0_167 = arith.constant 0 : index
    %240 = vector.load %arg6[%c2_165, %c0_166, %c0_167] : memref<3x384x64xbf16, #tpu.memory_space<vmem>>, vector<1x384x64xbf16>
    %241 = vector.shape_cast %240 : vector<1x384x64xbf16> to vector<384x64xbf16>
    %cst_168 = arith.constant dense<0.000000e+00> : vector<64x64xf32>
    %242 = tpu.matmul %239, %241, %cst_168 {dimension_numbers = #tpu.dot_dimension_numbers<[1], [0], [0], [1], [0, 0, 1, 1], [], []>} : vector<64x384xbf16>, vector<384x64xbf16>, vector<64x64xf32> -> vector<64x64xf32>
    %243 = arith.addf %228, %242 : vector<64x64xf32>
    %244 = vector.broadcast %194 : vector<1x64xf32> to vector<64x64xf32>
    %245 = arith.mulf %243, %244 : vector<64x64xf32>
    %246 = vector.broadcast %195 : vector<1x64xf32> to vector<64x64xf32>
    %247 = arith.addf %245, %246 : vector<64x64xf32>
    %cst_169 = arith.constant 0.000000e+00 : f32
    %248 = vector.broadcast %cst_169 : f32 to vector<64x64xf32>
    %249 = arith.maximumf %247, %248 : vector<64x64xf32>
    %250 = arith.truncf %249 : vector<64x64xf32> to vector<64x64xbf16>
    %cst_170 = arith.constant dense<0.000000e+00> : vector<3x64xf32>
    %251 = tpu.matmul %196, %250, %cst_170 {dimension_numbers = #tpu.dot_dimension_numbers<[1], [1], [0], [0], [0, 0, 1, 0], [], []>} : vector<3x64xbf16>, vector<64x64xbf16>, vector<3x64xf32> -> vector<3x64xf32>
    %252 = vector.broadcast %197 : vector<3x1xf32> to vector<3x64xf32>
    %253 = arith.addf %251, %252 : vector<3x64xf32>
    %c0_171 = arith.constant 0 : index
    %c0_172 = arith.constant 0 : index
    %c0_173 = arith.constant 0 : index
    %c0_174 = arith.constant 0 : index
    %c0_175 = arith.constant 0 : index
    %254 = vector.load %arg11[%c0_171, %c0_172, %c0_173, %c0_174, %c0_175] : memref<1x2x2x3x64xf32, #tpu.memory_space<vmem>>, vector<1x1x1x3x64xf32>
    %255 = vector.shape_cast %254 : vector<1x1x1x3x64xf32> to vector<3x64xf32>
    %256 = vector.shape_cast %253 : vector<3x64xf32> to vector<1x1x1x3x64xf32>
    tpu.vector_store %arg11[%c0_171, %c0_172, %c0_173, %c0_174, %c0_175], %256 {strides = array<i32>} : memref<1x2x2x3x64xf32, #tpu.memory_space<vmem>>, vector<1x1x1x3x64xf32>,
    %cst_176 = arith.constant 0.000000e+00 : f32
    %257 = vector.broadcast %cst_176 : f32 to vector<64x64xf32>
    %c2_177 = arith.constant 2 : index
    %c0_178 = arith.constant 0 : index
    %c1_179 = arith.constant 1 : index
    %c0_180 = arith.constant 0 : index
    %258 = vector.load %arg12[%c2_177, %c0_178, %c1_179, %c0_180] : memref<4x10x10x128xf32, #tpu.memory_space<vmem>>, vector<1x8x8x128xf32>
    %259 = vector.shape_cast %258 : vector<1x8x8x128xf32> to vector<8x8x128xf32>
    %260 = vector.shape_cast %259 : vector<8x8x128xf32> to vector<64x128xf32>
    %c3_181 = arith.constant 3 : index
    %c0_182 = arith.constant 0 : index
    %c1_183 = arith.constant 1 : index
    %c0_184 = arith.constant 0 : index
    %261 = vector.load %arg12[%c3_181, %c0_182, %c1_183, %c0_184] : memref<4x10x10x128xf32, #tpu.memory_space<vmem>>, vector<1x8x8x128xf32>
    %262 = vector.shape_cast %261 : vector<1x8x8x128xf32> to vector<8x8x128xf32>
    %263 = vector.shape_cast %262 : vector<8x8x128xf32> to vector<64x128xf32>
    %c2_185 = arith.constant 2 : index
    %c0_186 = arith.constant 0 : index
    %c2_187 = arith.constant 2 : index
    %c0_188 = arith.constant 0 : index
    %264 = vector.load %arg12[%c2_185, %c0_186, %c2_187, %c0_188] : memref<4x10x10x128xf32, #tpu.memory_space<vmem>>, vector<1x8x8x128xf32>
    %265 = vector.shape_cast %264 : vector<1x8x8x128xf32> to vector<8x8x128xf32>
    %266 = vector.shape_cast %265 : vector<8x8x128xf32> to vector<64x128xf32>
    %267 = tpu.concatenate %260, %263, %266 in 1 : vector<64x128xf32>, vector<64x128xf32>, vector<64x128xf32> -> vector<64x384xf32>
    %268 = arith.truncf %267 : vector<64x384xf32> to vector<64x384xbf16>
    %c0_189 = arith.constant 0 : index
    %c0_190 = arith.constant 0 : index
    %c0_191 = arith.constant 0 : index
    %269 = vector.load %arg6[%c0_189, %c0_190, %c0_191] : memref<3x384x64xbf16, #tpu.memory_space<vmem>>, vector<1x384x64xbf16>
    %270 = vector.shape_cast %269 : vector<1x384x64xbf16> to vector<384x64xbf16>
    %cst_192 = arith.constant dense<0.000000e+00> : vector<64x64xf32>
    %271 = tpu.matmul %268, %270, %cst_192 {dimension_numbers = #tpu.dot_dimension_numbers<[1], [0], [0], [1], [0, 0, 1, 1], [], []>} : vector<64x384xbf16>, vector<384x64xbf16>, vector<64x64xf32> -> vector<64x64xf32>
    %272 = arith.addf %257, %271 : vector<64x64xf32>
    %c0_193 = arith.constant 0 : index
    %c1_194 = arith.constant 1 : index
    %c1_195 = arith.constant 1 : index
    %c0_196 = arith.constant 0 : index
    %273 = vector.load %arg12[%c0_193, %c1_194, %c1_195, %c0_196] : memref<4x10x10x128xf32, #tpu.memory_space<vmem>>, vector<1x8x8x128xf32>
    %274 = vector.shape_cast %273 : vector<1x8x8x128xf32> to vector<8x8x128xf32>
    %275 = vector.shape_cast %274 : vector<8x8x128xf32> to vector<64x128xf32>
    %c1_197 = arith.constant 1 : index
    %c1_198 = arith.constant 1 : index
    %c1_199 = arith.constant 1 : index
    %c0_200 = arith.constant 0 : index
    %276 = vector.load %arg12[%c1_197, %c1_198, %c1_199, %c0_200] : memref<4x10x10x128xf32, #tpu.memory_space<vmem>>, vector<1x8x8x128xf32>
    %277 = vector.shape_cast %276 : vector<1x8x8x128xf32> to vector<8x8x128xf32>
    %278 = vector.shape_cast %277 : vector<8x8x128xf32> to vector<64x128xf32>
    %c0_201 = arith.constant 0 : index
    %c1_202 = arith.constant 1 : index
    %c2_203 = arith.constant 2 : index
    %c0_204 = arith.constant 0 : index
    %279 = vector.load %arg12[%c0_201, %c1_202, %c2_203, %c0_204] : memref<4x10x10x128xf32, #tpu.memory_space<vmem>>, vector<1x8x8x128xf32>
    %280 = vector.shape_cast %279 : vector<1x8x8x128xf32> to vector<8x8x128xf32>
    %281 = vector.shape_cast %280 : vector<8x8x128xf32> to vector<64x128xf32>
    %282 = tpu.concatenate %275, %278, %281 in 1 : vector<64x128xf32>, vector<64x128xf32>, vector<64x128xf32> -> vector<64x384xf32>
    %283 = arith.truncf %282 : vector<64x384xf32> to vector<64x384xbf16>
    %c1_205 = arith.constant 1 : index
    %c0_206 = arith.constant 0 : index
    %c0_207 = arith.constant 0 : index
    %284 = vector.load %arg6[%c1_205, %c0_206, %c0_207] : memref<3x384x64xbf16, #tpu.memory_space<vmem>>, vector<1x384x64xbf16>
    %285 = vector.shape_cast %284 : vector<1x384x64xbf16> to vector<384x64xbf16>
    %cst_208 = arith.constant dense<0.000000e+00> : vector<64x64xf32>
    %286 = tpu.matmul %283, %285, %cst_208 {dimension_numbers = #tpu.dot_dimension_numbers<[1], [0], [0], [1], [0, 0, 1, 1], [], []>} : vector<64x384xbf16>, vector<384x64xbf16>, vector<64x64xf32> -> vector<64x64xf32>
    %287 = arith.addf %272, %286 : vector<64x64xf32>
    %c2_209 = arith.constant 2 : index
    %c1_210 = arith.constant 1 : index
    %c1_211 = arith.constant 1 : index
    %c0_212 = arith.constant 0 : index
    %288 = vector.load %arg12[%c2_209, %c1_210, %c1_211, %c0_212] : memref<4x10x10x128xf32, #tpu.memory_space<vmem>>, vector<1x8x8x128xf32>
    %289 = vector.shape_cast %288 : vector<1x8x8x128xf32> to vector<8x8x128xf32>
    %290 = vector.shape_cast %289 : vector<8x8x128xf32> to vector<64x128xf32>
    %c3_213 = arith.constant 3 : index
    %c1_214 = arith.constant 1 : index
    %c1_215 = arith.constant 1 : index
    %c0_216 = arith.constant 0 : index
    %291 = vector.load %arg12[%c3_213, %c1_214, %c1_215, %c0_216] : memref<4x10x10x128xf32, #tpu.memory_space<vmem>>, vector<1x8x8x128xf32>
    %292 = vector.shape_cast %291 : vector<1x8x8x128xf32> to vector<8x8x128xf32>
    %293 = vector.shape_cast %292 : vector<8x8x128xf32> to vector<64x128xf32>
    %c2_217 = arith.constant 2 : index
    %c1_218 = arith.constant 1 : index
    %c2_219 = arith.constant 2 : index
    %c0_220 = arith.constant 0 : index
    %294 = vector.load %arg12[%c2_217, %c1_218, %c2_219, %c0_220] : memref<4x10x10x128xf32, #tpu.memory_space<vmem>>, vector<1x8x8x128xf32>
    %295 = vector.shape_cast %294 : vector<1x8x8x128xf32> to vector<8x8x128xf32>
    %296 = vector.shape_cast %295 : vector<8x8x128xf32> to vector<64x128xf32>
    %297 = tpu.concatenate %290, %293, %296 in 1 : vector<64x128xf32>, vector<64x128xf32>, vector<64x128xf32> -> vector<64x384xf32>
    %298 = arith.truncf %297 : vector<64x384xf32> to vector<64x384xbf16>
    %c2_221 = arith.constant 2 : index
    %c0_222 = arith.constant 0 : index
    %c0_223 = arith.constant 0 : index
    %299 = vector.load %arg6[%c2_221, %c0_222, %c0_223] : memref<3x384x64xbf16, #tpu.memory_space<vmem>>, vector<1x384x64xbf16>
    %300 = vector.shape_cast %299 : vector<1x384x64xbf16> to vector<384x64xbf16>
    %cst_224 = arith.constant dense<0.000000e+00> : vector<64x64xf32>
    %301 = tpu.matmul %298, %300, %cst_224 {dimension_numbers = #tpu.dot_dimension_numbers<[1], [0], [0], [1], [0, 0, 1, 1], [], []>} : vector<64x384xbf16>, vector<384x64xbf16>, vector<64x64xf32> -> vector<64x64xf32>
    %302 = arith.addf %287, %301 : vector<64x64xf32>
    %303 = vector.broadcast %194 : vector<1x64xf32> to vector<64x64xf32>
    %304 = arith.mulf %302, %303 : vector<64x64xf32>
    %305 = vector.broadcast %195 : vector<1x64xf32> to vector<64x64xf32>
    %306 = arith.addf %304, %305 : vector<64x64xf32>
    %cst_225 = arith.constant 0.000000e+00 : f32
    %307 = vector.broadcast %cst_225 : f32 to vector<64x64xf32>
    %308 = arith.maximumf %306, %307 : vector<64x64xf32>
    %309 = arith.truncf %308 : vector<64x64xf32> to vector<64x64xbf16>
    %cst_226 = arith.constant dense<0.000000e+00> : vector<3x64xf32>
    %310 = tpu.matmul %196, %309, %cst_226 {dimension_numbers = #tpu.dot_dimension_numbers<[1], [1], [0], [0], [0, 0, 1, 0], [], []>} : vector<3x64xbf16>, vector<64x64xbf16>, vector<3x64xf32> -> vector<3x64xf32>
    %311 = vector.broadcast %197 : vector<3x1xf32> to vector<3x64xf32>
    %312 = arith.addf %310, %311 : vector<3x64xf32>
    %c0_227 = arith.constant 0 : index
    %c0_228 = arith.constant 0 : index
    %c1_229 = arith.constant 1 : index
    %c0_230 = arith.constant 0 : index
    %c0_231 = arith.constant 0 : index
    %313 = vector.load %arg11[%c0_227, %c0_228, %c1_229, %c0_230, %c0_231] : memref<1x2x2x3x64xf32, #tpu.memory_space<vmem>>, vector<1x1x1x3x64xf32>
    %314 = vector.shape_cast %313 : vector<1x1x1x3x64xf32> to vector<3x64xf32>
    %315 = vector.shape_cast %312 : vector<3x64xf32> to vector<1x1x1x3x64xf32>
    tpu.vector_store %arg11[%c0_227, %c0_228, %c1_229, %c0_230, %c0_231], %315 {strides = array<i32>} : memref<1x2x2x3x64xf32, #tpu.memory_space<vmem>>, vector<1x1x1x3x64xf32>,
    %cst_232 = arith.constant 0.000000e+00 : f32
    %316 = vector.broadcast %cst_232 : f32 to vector<64x64xf32>
    %c1_233 = arith.constant 1 : index
    %c1_234 = arith.constant 1 : index
    %c0_235 = arith.constant 0 : index
    %c0_236 = arith.constant 0 : index
    %317 = vector.load %arg12[%c1_233, %c1_234, %c0_235, %c0_236] : memref<4x10x10x128xf32, #tpu.memory_space<vmem>>, vector<1x8x8x128xf32>
    %318 = vector.shape_cast %317 : vector<1x8x8x128xf32> to vector<8x8x128xf32>
    %319 = vector.shape_cast %318 : vector<8x8x128xf32> to vector<64x128xf32>
    %c0_237 = arith.constant 0 : index
    %c1_238 = arith.constant 1 : index
    %c1_239 = arith.constant 1 : index
    %c0_240 = arith.constant 0 : index
    %320 = vector.load %arg12[%c0_237, %c1_238, %c1_239, %c0_240] : memref<4x10x10x128xf32, #tpu.memory_space<vmem>>, vector<1x8x8x128xf32>
    %321 = vector.shape_cast %320 : vector<1x8x8x128xf32> to vector<8x8x128xf32>
    %322 = vector.shape_cast %321 : vector<8x8x128xf32> to vector<64x128xf32>
    %c1_241 = arith.constant 1 : index
    %c1_242 = arith.constant 1 : index
    %c1_243 = arith.constant 1 : index
    %c0_244 = arith.constant 0 : index
    %323 = vector.load %arg12[%c1_241, %c1_242, %c1_243, %c0_244] : memref<4x10x10x128xf32, #tpu.memory_space<vmem>>, vector<1x8x8x128xf32>
    %324 = vector.shape_cast %323 : vector<1x8x8x128xf32> to vector<8x8x128xf32>
    %325 = vector.shape_cast %324 : vector<8x8x128xf32> to vector<64x128xf32>
    %326 = tpu.concatenate %319, %322, %325 in 1 : vector<64x128xf32>, vector<64x128xf32>, vector<64x128xf32> -> vector<64x384xf32>
    %327 = arith.truncf %326 : vector<64x384xf32> to vector<64x384xbf16>
    %c0_245 = arith.constant 0 : index
    %c0_246 = arith.constant 0 : index
    %c0_247 = arith.constant 0 : index
    %328 = vector.load %arg6[%c0_245, %c0_246, %c0_247] : memref<3x384x64xbf16, #tpu.memory_space<vmem>>, vector<1x384x64xbf16>
    %329 = vector.shape_cast %328 : vector<1x384x64xbf16> to vector<384x64xbf16>
    %cst_248 = arith.constant dense<0.000000e+00> : vector<64x64xf32>
    %330 = tpu.matmul %327, %329, %cst_248 {dimension_numbers = #tpu.dot_dimension_numbers<[1], [0], [0], [1], [0, 0, 1, 1], [], []>} : vector<64x384xbf16>, vector<384x64xbf16>, vector<64x64xf32> -> vector<64x64xf32>
    %331 = arith.addf %316, %330 : vector<64x64xf32>
    %c3_249 = arith.constant 3 : index
    %c1_250 = arith.constant 1 : index
    %c0_251 = arith.constant 0 : index
    %c0_252 = arith.constant 0 : index
    %332 = vector.load %arg12[%c3_249, %c1_250, %c0_251, %c0_252] : memref<4x10x10x128xf32, #tpu.memory_space<vmem>>, vector<1x8x8x128xf32>
    %333 = vector.shape_cast %332 : vector<1x8x8x128xf32> to vector<8x8x128xf32>
    %334 = vector.shape_cast %333 : vector<8x8x128xf32> to vector<64x128xf32>
    %c2_253 = arith.constant 2 : index
    %c1_254 = arith.constant 1 : index
    %c1_255 = arith.constant 1 : index
    %c0_256 = arith.constant 0 : index
    %335 = vector.load %arg12[%c2_253, %c1_254, %c1_255, %c0_256] : memref<4x10x10x128xf32, #tpu.memory_space<vmem>>, vector<1x8x8x128xf32>
    %336 = vector.shape_cast %335 : vector<1x8x8x128xf32> to vector<8x8x128xf32>
    %337 = vector.shape_cast %336 : vector<8x8x128xf32> to vector<64x128xf32>
    %c3_257 = arith.constant 3 : index
    %c1_258 = arith.constant 1 : index
    %c1_259 = arith.constant 1 : index
    %c0_260 = arith.constant 0 : index
    %338 = vector.load %arg12[%c3_257, %c1_258, %c1_259, %c0_260] : memref<4x10x10x128xf32, #tpu.memory_space<vmem>>, vector<1x8x8x128xf32>
    %339 = vector.shape_cast %338 : vector<1x8x8x128xf32> to vector<8x8x128xf32>
    %340 = vector.shape_cast %339 : vector<8x8x128xf32> to vector<64x128xf32>
    %341 = tpu.concatenate %334, %337, %340 in 1 : vector<64x128xf32>, vector<64x128xf32>, vector<64x128xf32> -> vector<64x384xf32>
    %342 = arith.truncf %341 : vector<64x384xf32> to vector<64x384xbf16>
    %c1_261 = arith.constant 1 : index
    %c0_262 = arith.constant 0 : index
    %c0_263 = arith.constant 0 : index
    %343 = vector.load %arg6[%c1_261, %c0_262, %c0_263] : memref<3x384x64xbf16, #tpu.memory_space<vmem>>, vector<1x384x64xbf16>
    %344 = vector.shape_cast %343 : vector<1x384x64xbf16> to vector<384x64xbf16>
    %cst_264 = arith.constant dense<0.000000e+00> : vector<64x64xf32>
    %345 = tpu.matmul %342, %344, %cst_264 {dimension_numbers = #tpu.dot_dimension_numbers<[1], [0], [0], [1], [0, 0, 1, 1], [], []>} : vector<64x384xbf16>, vector<384x64xbf16>, vector<64x64xf32> -> vector<64x64xf32>
    %346 = arith.addf %331, %345 : vector<64x64xf32>
    %c1_265 = arith.constant 1 : index
    %c2_266 = arith.constant 2 : index
    %c0_267 = arith.constant 0 : index
    %c0_268 = arith.constant 0 : index
    %347 = vector.load %arg12[%c1_265, %c2_266, %c0_267, %c0_268] : memref<4x10x10x128xf32, #tpu.memory_space<vmem>>, vector<1x8x8x128xf32>
    %348 = vector.shape_cast %347 : vector<1x8x8x128xf32> to vector<8x8x128xf32>
    %349 = vector.shape_cast %348 : vector<8x8x128xf32> to vector<64x128xf32>
    %c0_269 = arith.constant 0 : index
    %c2_270 = arith.constant 2 : index
    %c1_271 = arith.constant 1 : index
    %c0_272 = arith.constant 0 : index
    %350 = vector.load %arg12[%c0_269, %c2_270, %c1_271, %c0_272] : memref<4x10x10x128xf32, #tpu.memory_space<vmem>>, vector<1x8x8x128xf32>
    %351 = vector.shape_cast %350 : vector<1x8x8x128xf32> to vector<8x8x128xf32>
    %352 = vector.shape_cast %351 : vector<8x8x128xf32> to vector<64x128xf32>
    %c1_273 = arith.constant 1 : index
    %c2_274 = arith.constant 2 : index
    %c1_275 = arith.constant 1 : index
    %c0_276 = arith.constant 0 : index
    %353 = vector.load %arg12[%c1_273, %c2_274, %c1_275, %c0_276] : memref<4x10x10x128xf32, #tpu.memory_space<vmem>>, vector<1x8x8x128xf32>
    %354 = vector.shape_cast %353 : vector<1x8x8x128xf32> to vector<8x8x128xf32>
    %355 = vector.shape_cast %354 : vector<8x8x128xf32> to vector<64x128xf32>
    %356 = tpu.concatenate %349, %352, %355 in 1 : vector<64x128xf32>, vector<64x128xf32>, vector<64x128xf32> -> vector<64x384xf32>
    %357 = arith.truncf %356 : vector<64x384xf32> to vector<64x384xbf16>
    %c2_277 = arith.constant 2 : index
    %c0_278 = arith.constant 0 : index
    %c0_279 = arith.constant 0 : index
    %358 = vector.load %arg6[%c2_277, %c0_278, %c0_279] : memref<3x384x64xbf16, #tpu.memory_space<vmem>>, vector<1x384x64xbf16>
    %359 = vector.shape_cast %358 : vector<1x384x64xbf16> to vector<384x64xbf16>
    %cst_280 = arith.constant dense<0.000000e+00> : vector<64x64xf32>
    %360 = tpu.matmul %357, %359, %cst_280 {dimension_numbers = #tpu.dot_dimension_numbers<[1], [0], [0], [1], [0, 0, 1, 1], [], []>} : vector<64x384xbf16>, vector<384x64xbf16>, vector<64x64xf32> -> vector<64x64xf32>
    %361 = arith.addf %346, %360 : vector<64x64xf32>
    %362 = vector.broadcast %194 : vector<1x64xf32> to vector<64x64xf32>
    %363 = arith.mulf %361, %362 : vector<64x64xf32>
    %364 = vector.broadcast %195 : vector<1x64xf32> to vector<64x64xf32>
    %365 = arith.addf %363, %364 : vector<64x64xf32>
    %cst_281 = arith.constant 0.000000e+00 : f32
    %366 = vector.broadcast %cst_281 : f32 to vector<64x64xf32>
    %367 = arith.maximumf %365, %366 : vector<64x64xf32>
    %368 = arith.truncf %367 : vector<64x64xf32> to vector<64x64xbf16>
    %cst_282 = arith.constant dense<0.000000e+00> : vector<3x64xf32>
    %369 = tpu.matmul %196, %368, %cst_282 {dimension_numbers = #tpu.dot_dimension_numbers<[1], [1], [0], [0], [0, 0, 1, 0], [], []>} : vector<3x64xbf16>, vector<64x64xbf16>, vector<3x64xf32> -> vector<3x64xf32>
    %370 = vector.broadcast %197 : vector<3x1xf32> to vector<3x64xf32>
    %371 = arith.addf %369, %370 : vector<3x64xf32>
    %c0_283 = arith.constant 0 : index
    %c1_284 = arith.constant 1 : index
    %c0_285 = arith.constant 0 : index
    %c0_286 = arith.constant 0 : index
    %c0_287 = arith.constant 0 : index
    %372 = vector.load %arg11[%c0_283, %c1_284, %c0_285, %c0_286, %c0_287] : memref<1x2x2x3x64xf32, #tpu.memory_space<vmem>>, vector<1x1x1x3x64xf32>
    %373 = vector.shape_cast %372 : vector<1x1x1x3x64xf32> to vector<3x64xf32>
    %374 = vector.shape_cast %371 : vector<3x64xf32> to vector<1x1x1x3x64xf32>
    tpu.vector_store %arg11[%c0_283, %c1_284, %c0_285, %c0_286, %c0_287], %374 {strides = array<i32>} : memref<1x2x2x3x64xf32, #tpu.memory_space<vmem>>, vector<1x1x1x3x64xf32>,
    %cst_288 = arith.constant 0.000000e+00 : f32
    %375 = vector.broadcast %cst_288 : f32 to vector<64x64xf32>
    %c0_289 = arith.constant 0 : index
    %c1_290 = arith.constant 1 : index
    %c1_291 = arith.constant 1 : index
    %c0_292 = arith.constant 0 : index
    %376 = vector.load %arg12[%c0_289, %c1_290, %c1_291, %c0_292] : memref<4x10x10x128xf32, #tpu.memory_space<vmem>>, vector<1x8x8x128xf32>
    %377 = vector.shape_cast %376 : vector<1x8x8x128xf32> to vector<8x8x128xf32>
    %378 = vector.shape_cast %377 : vector<8x8x128xf32> to vector<64x128xf32>
    %c1_293 = arith.constant 1 : index
    %c1_294 = arith.constant 1 : index
    %c1_295 = arith.constant 1 : index
    %c0_296 = arith.constant 0 : index
    %379 = vector.load %arg12[%c1_293, %c1_294, %c1_295, %c0_296] : memref<4x10x10x128xf32, #tpu.memory_space<vmem>>, vector<1x8x8x128xf32>
    %380 = vector.shape_cast %379 : vector<1x8x8x128xf32> to vector<8x8x128xf32>
    %381 = vector.shape_cast %380 : vector<8x8x128xf32> to vector<64x128xf32>
    %c0_297 = arith.constant 0 : index
    %c1_298 = arith.constant 1 : index
    %c2_299 = arith.constant 2 : index
    %c0_300 = arith.constant 0 : index
    %382 = vector.load %arg12[%c0_297, %c1_298, %c2_299, %c0_300] : memref<4x10x10x128xf32, #tpu.memory_space<vmem>>, vector<1x8x8x128xf32>
    %383 = vector.shape_cast %382 : vector<1x8x8x128xf32> to vector<8x8x128xf32>
    %384 = vector.shape_cast %383 : vector<8x8x128xf32> to vector<64x128xf32>
    %385 = tpu.concatenate %378, %381, %384 in 1 : vector<64x128xf32>, vector<64x128xf32>, vector<64x128xf32> -> vector<64x384xf32>
    %386 = arith.truncf %385 : vector<64x384xf32> to vector<64x384xbf16>
    %c0_301 = arith.constant 0 : index
    %c0_302 = arith.constant 0 : index
    %c0_303 = arith.constant 0 : index
    %387 = vector.load %arg6[%c0_301, %c0_302, %c0_303] : memref<3x384x64xbf16, #tpu.memory_space<vmem>>, vector<1x384x64xbf16>
    %388 = vector.shape_cast %387 : vector<1x384x64xbf16> to vector<384x64xbf16>
    %cst_304 = arith.constant dense<0.000000e+00> : vector<64x64xf32>
    %389 = tpu.matmul %386, %388, %cst_304 {dimension_numbers = #tpu.dot_dimension_numbers<[1], [0], [0], [1], [0, 0, 1, 1], [], []>} : vector<64x384xbf16>, vector<384x64xbf16>, vector<64x64xf32> -> vector<64x64xf32>
    %390 = arith.addf %375, %389 : vector<64x64xf32>
    %c2_305 = arith.constant 2 : index
    %c1_306 = arith.constant 1 : index
    %c1_307 = arith.constant 1 : index
    %c0_308 = arith.constant 0 : index
    %391 = vector.load %arg12[%c2_305, %c1_306, %c1_307, %c0_308] : memref<4x10x10x128xf32, #tpu.memory_space<vmem>>, vector<1x8x8x128xf32>
    %392 = vector.shape_cast %391 : vector<1x8x8x128xf32> to vector<8x8x128xf32>
    %393 = vector.shape_cast %392 : vector<8x8x128xf32> to vector<64x128xf32>
    %c3_309 = arith.constant 3 : index
    %c1_310 = arith.constant 1 : index
    %c1_311 = arith.constant 1 : index
    %c0_312 = arith.constant 0 : index
    %394 = vector.load %arg12[%c3_309, %c1_310, %c1_311, %c0_312] : memref<4x10x10x128xf32, #tpu.memory_space<vmem>>, vector<1x8x8x128xf32>
    %395 = vector.shape_cast %394 : vector<1x8x8x128xf32> to vector<8x8x128xf32>
    %396 = vector.shape_cast %395 : vector<8x8x128xf32> to vector<64x128xf32>
    %c2_313 = arith.constant 2 : index
    %c1_314 = arith.constant 1 : index
    %c2_315 = arith.constant 2 : index
    %c0_316 = arith.constant 0 : index
    %397 = vector.load %arg12[%c2_313, %c1_314, %c2_315, %c0_316] : memref<4x10x10x128xf32, #tpu.memory_space<vmem>>, vector<1x8x8x128xf32>
    %398 = vector.shape_cast %397 : vector<1x8x8x128xf32> to vector<8x8x128xf32>
    %399 = vector.shape_cast %398 : vector<8x8x128xf32> to vector<64x128xf32>
    %400 = tpu.concatenate %393, %396, %399 in 1 : vector<64x128xf32>, vector<64x128xf32>, vector<64x128xf32> -> vector<64x384xf32>
    %401 = arith.truncf %400 : vector<64x384xf32> to vector<64x384xbf16>
    %c1_317 = arith.constant 1 : index
    %c0_318 = arith.constant 0 : index
    %c0_319 = arith.constant 0 : index
    %402 = vector.load %arg6[%c1_317, %c0_318, %c0_319] : memref<3x384x64xbf16, #tpu.memory_space<vmem>>, vector<1x384x64xbf16>
    %403 = vector.shape_cast %402 : vector<1x384x64xbf16> to vector<384x64xbf16>
    %cst_320 = arith.constant dense<0.000000e+00> : vector<64x64xf32>
    %404 = tpu.matmul %401, %403, %cst_320 {dimension_numbers = #tpu.dot_dimension_numbers<[1], [0], [0], [1], [0, 0, 1, 1], [], []>} : vector<64x384xbf16>, vector<384x64xbf16>, vector<64x64xf32> -> vector<64x64xf32>
    %405 = arith.addf %390, %404 : vector<64x64xf32>
    %c0_321 = arith.constant 0 : index
    %c2_322 = arith.constant 2 : index
    %c1_323 = arith.constant 1 : index
    %c0_324 = arith.constant 0 : index
    %406 = vector.load %arg12[%c0_321, %c2_322, %c1_323, %c0_324] : memref<4x10x10x128xf32, #tpu.memory_space<vmem>>, vector<1x8x8x128xf32>
    %407 = vector.shape_cast %406 : vector<1x8x8x128xf32> to vector<8x8x128xf32>
    %408 = vector.shape_cast %407 : vector<8x8x128xf32> to vector<64x128xf32>
    %c1_325 = arith.constant 1 : index
    %c2_326 = arith.constant 2 : index
    %c1_327 = arith.constant 1 : index
    %c0_328 = arith.constant 0 : index
    %409 = vector.load %arg12[%c1_325, %c2_326, %c1_327, %c0_328] : memref<4x10x10x128xf32, #tpu.memory_space<vmem>>, vector<1x8x8x128xf32>
    %410 = vector.shape_cast %409 : vector<1x8x8x128xf32> to vector<8x8x128xf32>
    %411 = vector.shape_cast %410 : vector<8x8x128xf32> to vector<64x128xf32>
    %c0_329 = arith.constant 0 : index
    %c2_330 = arith.constant 2 : index
    %c2_331 = arith.constant 2 : index
    %c0_332 = arith.constant 0 : index
    %412 = vector.load %arg12[%c0_329, %c2_330, %c2_331, %c0_332] : memref<4x10x10x128xf32, #tpu.memory_space<vmem>>, vector<1x8x8x128xf32>
    %413 = vector.shape_cast %412 : vector<1x8x8x128xf32> to vector<8x8x128xf32>
    %414 = vector.shape_cast %413 : vector<8x8x128xf32> to vector<64x128xf32>
    %415 = tpu.concatenate %408, %411, %414 in 1 : vector<64x128xf32>, vector<64x128xf32>, vector<64x128xf32> -> vector<64x384xf32>
    %416 = arith.truncf %415 : vector<64x384xf32> to vector<64x384xbf16>
    %c2_333 = arith.constant 2 : index
    %c0_334 = arith.constant 0 : index
    %c0_335 = arith.constant 0 : index
    %417 = vector.load %arg6[%c2_333, %c0_334, %c0_335] : memref<3x384x64xbf16, #tpu.memory_space<vmem>>, vector<1x384x64xbf16>
    %418 = vector.shape_cast %417 : vector<1x384x64xbf16> to vector<384x64xbf16>
    %cst_336 = arith.constant dense<0.000000e+00> : vector<64x64xf32>
    %419 = tpu.matmul %416, %418, %cst_336 {dimension_numbers = #tpu.dot_dimension_numbers<[1], [0], [0], [1], [0, 0, 1, 1], [], []>} : vector<64x384xbf16>, vector<384x64xbf16>, vector<64x64xf32> -> vector<64x64xf32>
    %420 = arith.addf %405, %419 : vector<64x64xf32>
    %421 = vector.broadcast %194 : vector<1x64xf32> to vector<64x64xf32>
    %422 = arith.mulf %420, %421 : vector<64x64xf32>
    %423 = vector.broadcast %195 : vector<1x64xf32> to vector<64x64xf32>
    %424 = arith.addf %422, %423 : vector<64x64xf32>
    %cst_337 = arith.constant 0.000000e+00 : f32
    %425 = vector.broadcast %cst_337 : f32 to vector<64x64xf32>
    %426 = arith.maximumf %424, %425 : vector<64x64xf32>
    %427 = arith.truncf %426 : vector<64x64xf32> to vector<64x64xbf16>
    %cst_338 = arith.constant dense<0.000000e+00> : vector<3x64xf32>
    %428 = tpu.matmul %196, %427, %cst_338 {dimension_numbers = #tpu.dot_dimension_numbers<[1], [1], [0], [0], [0, 0, 1, 0], [], []>} : vector<3x64xbf16>, vector<64x64xbf16>, vector<3x64xf32> -> vector<3x64xf32>
    %429 = vector.broadcast %197 : vector<3x1xf32> to vector<3x64xf32>
    %430 = arith.addf %428, %429 : vector<3x64xf32>
    %c0_339 = arith.constant 0 : index
    %c1_340 = arith.constant 1 : index
    %c1_341 = arith.constant 1 : index
    %c0_342 = arith.constant 0 : index
    %c0_343 = arith.constant 0 : index
    %431 = vector.load %arg11[%c0_339, %c1_340, %c1_341, %c0_342, %c0_343] : memref<1x2x2x3x64xf32, #tpu.memory_space<vmem>>, vector<1x1x1x3x64xf32>
    %432 = vector.shape_cast %431 : vector<1x1x1x3x64xf32> to vector<3x64xf32>
    %433 = vector.shape_cast %430 : vector<3x64xf32> to vector<1x1x1x3x64xf32>
    tpu.vector_store %arg11[%c0_339, %c1_340, %c1_341, %c0_342, %c0_343], %433 {strides = array<i32>} : memref<1x2x2x3x64xf32, #tpu.memory_space<vmem>>, vector<1x1x1x3x64xf32>,
    return
  }
  func.func @transform_0(%arg0: i32) -> (i32, i32, i32, i32) {
    %c0_i32 = arith.constant 0 : i32
    %c0_i32_0 = arith.constant 0 : i32
    %c0_i32_1 = arith.constant 0 : i32
    %c0_i32_2 = arith.constant 0 : i32
    return %arg0, %c0_i32, %c0_i32_0, %c0_i32_1 : i32, i32, i32, i32
  }
  func.func @transform_1(%arg0: i32) -> (i32, i32) {
    %c0_i32 = arith.constant 0 : i32
    %c0_i32_0 = arith.constant 0 : i32
    %c0_i32_1 = arith.constant 0 : i32
    return %c0_i32, %c0_i32_0 : i32, i32
  }
  func.func @transform_2(%arg0: i32) -> (i32, i32) {
    %c0_i32 = arith.constant 0 : i32
    %c0_i32_0 = arith.constant 0 : i32
    %c0_i32_1 = arith.constant 0 : i32
    return %c0_i32, %c0_i32_0 : i32, i32
  }
  func.func @transform_3(%arg0: i32) -> (i32, i32) {
    %c0_i32 = arith.constant 0 : i32
    %c0_i32_0 = arith.constant 0 : i32
    %c0_i32_1 = arith.constant 0 : i32
    return %c0_i32, %c0_i32_0 : i32, i32
  }
  func.func @transform_4(%arg0: i32) -> (i32, i32) {
    %c0_i32 = arith.constant 0 : i32
    %c0_i32_0 = arith.constant 0 : i32
    %c0_i32_1 = arith.constant 0 : i32
    return %c0_i32, %c0_i32_0 : i32, i32
  }
  func.func @transform_5(%arg0: i32) -> (i32, i32, i32) {
    %c0_i32 = arith.constant 0 : i32
    %c0_i32_0 = arith.constant 0 : i32
    %c0_i32_1 = arith.constant 0 : i32
    %c0_i32_2 = arith.constant 0 : i32
    return %c0_i32, %c0_i32_0, %c0_i32_1 : i32, i32, i32
  }
  func.func @transform_6(%arg0: i32) -> (i32, i32) {
    %c0_i32 = arith.constant 0 : i32
    %c0_i32_0 = arith.constant 0 : i32
    %c0_i32_1 = arith.constant 0 : i32
    return %c0_i32, %c0_i32_0 : i32, i32
  }
  func.func @transform_7(%arg0: i32) -> (i32, i32) {
    %c0_i32 = arith.constant 0 : i32
    %c0_i32_0 = arith.constant 0 : i32
    %c0_i32_1 = arith.constant 0 : i32
    return %c0_i32, %c0_i32_0 : i32, i32
  }
  func.func @transform_8(%arg0: i32) -> (i32, i32) {
    %c0_i32 = arith.constant 0 : i32
    %c0_i32_0 = arith.constant 0 : i32
    %c0_i32_1 = arith.constant 0 : i32
    return %c0_i32, %c0_i32_0 : i32, i32
  }
  func.func @transform_9(%arg0: i32) -> (i32, i32) {
    %c0_i32 = arith.constant 0 : i32
    %c0_i32_0 = arith.constant 0 : i32
    %c0_i32_1 = arith.constant 0 : i32
    return %c0_i32, %c0_i32_0 : i32, i32
  }
  func.func @transform_10(%arg0: i32) -> (i32, i32, i32, i32, i32) {
    %c0_i32 = arith.constant 0 : i32
    %c0_i32_0 = arith.constant 0 : i32
    %c0_i32_1 = arith.constant 0 : i32
    %c0_i32_2 = arith.constant 0 : i32
    %c0_i32_3 = arith.constant 0 : i32
    return %arg0, %c0_i32, %c0_i32_0, %c0_i32_1, %c0_i32_2 : i32, i32, i32, i32, i32
  }
}

</mosaic_0001>

<llo_original>
// kernel: tpu_custom_call.1
$region0: #{tpu_custom_call.1}
  #allocation0 [shape = 'u32[]', space=smem, size = 0x4, offset = 0x4, fixed_abs, tag = 'smem constant byte address 0x4 - core index']
  #allocation1 [shape = 'u32[72,128]{1,0:T(1,128)}', space=vmem, size = 0x9000, scoped, tag = 'internal scratch']
  #allocation2 [shape = 'f32[4,10,10,128]{3,2,1,0:T(8,128)}', space=vmem, size = 0x50000, scoped, tag = 'scratch operand']
  %s0 = inlined_call_operand.vmem [shape: f32[2,10,10,128], index: 0, kind: input, shape index: {}]
  %s1 = inlined_call_operand.vmem [shape: f32[16,128], index: 1, kind: input, shape index: {}]
  %s2 = inlined_call_operand.vmem [shape: bf16[128,128], index: 2, kind: input, shape index: {}]
  %s3 = inlined_call_operand.vmem [shape: f32[1,128], index: 3, kind: input, shape index: {}]
  %s4 = inlined_call_operand.vmem [shape: f32[1,128], index: 4, kind: input, shape index: {}]
  %s5 = inlined_call_operand.vmem [shape: bf16[3,384,64], index: 5, kind: input, shape index: {}]
  %s6 = inlined_call_operand.vmem [shape: f32[1,64], index: 6, kind: input, shape index: {}]
  %s7 = inlined_call_operand.vmem [shape: f32[1,64], index: 7, kind: input, shape index: {}]
  %s8 = inlined_call_operand.vmem [shape: bf16[3,64], index: 8, kind: input, shape index: {}]
  %s9 = inlined_call_operand.vmem [shape: f32[3,1], index: 9, kind: input, shape index: {}]
  %s10 = inlined_call_operand.vmem [shape: f32[2,2,2,3,64], index: 10, kind: output, shape index: {}]
  %s11 = sld [smem:[#allocation0]]
  $region73: #{tpu_custom_call.1} parent=0
    _
  %s13 = ssub.s32 1, %s11
  %s14 = scalar_select 0, %s13, %s11
  loop: start=0, step=1, limit=4
  $region2: #{tpu_custom_call.1} parent=0 // loop_pre_header
    _
  $region3: #{tpu_custom_call.1} parent=0 // loop_header
    %s16 = sphi 0, %s20
    %p17 = scmp.ge.s32.totalorder %s16, 4
    %s26 = sphi 0, %s28
    %s29 = sphi 0, %s26
    %s30 = sphi 0, %s29
    %s46 = sphi 0, %s30
    %s50 = sphi 0, %s50
    %s52 = sphi 0, %s50
    %s53 = sphi 0, %s52
    %s67 = sphi 0, %s53
    %s71 = sphi 0, %s71
    %s73 = sphi 0, %s71
    %s74 = sphi 0, %s73
    %s88 = sphi 0, %s74
    %s92 = sphi 0, %s92
    %s94 = sphi 0, %s92
    %s95 = sphi 0, %s94
    %s109 = sphi 0, %s95
    %s113 = sphi 0, %s113
    %s115 = sphi 0, %s113
    %s116 = sphi 0, %s115
    %s130 = sphi 0, %s116
    %s134 = sphi 0, %s134
    %s136 = sphi 0, %s134
    %s137 = sphi 0, %s136
    %s151 = sphi 0, %s137
    %s155 = sphi 0, %s155
    %s157 = sphi 0, %s155
    %s158 = sphi 0, %s157
    %s172 = sphi 0, %s158
    %s176 = sphi 0, %s176
    %s178 = sphi 0, %s176
    %s179 = sphi 0, %s178
    %s193 = sphi 0, %s179
    %s197 = sphi 0, %s197
    %s199 = sphi 0, %s197
    %s200 = sphi 0, %s199
    %s214 = sphi 0, %s200
    %s218 = sphi 0, %s218
    %s220 = sphi 0, %s218
    %s221 = sphi 0, %s220
    %s235 = sphi 0, %s221
    %s241 = sphi 0, %s243
    %s244 = sphi 0, %s241
    %s245 = sphi 0, %s244
    %s261 = sphi 0, %s245
  $region4: #{tpu_custom_call.1} parent=0 // loop_header_branch
    %19 = sbr.rel (%p17) target = $region8
  $region5: #{tpu_custom_call.1} parent=0 // loop_body
    %s21 = ssub.s32 %s16, 1
    %s22 = ssub.s32 %s16, 2
    %s23 = sadd.s32 %s16, 1
    %s24 = ssub.s32 %s16, %s23
    %p25 = scmp.eq.s32.totalorder %s24, 0
    %s27 = sadd.s32 %s26, 1
    %s28 = scalar_select %p25, %s26, %s27
    %p31 = pneg %p25
    %p32 = scmp.eq.s32.totalorder %s16, 1
    %p33 = por %p31, %p32
    %p34 = scmp.ne.s32.totalorder %s26, %s29
    %p35 = scmp.eq.s32.totalorder %s16, 0
    %p36 = por %p34, %p35
    %p37 = scmp.ne.s32.totalorder %s26, %s29
    %p38 = scmp.eq.s32.totalorder %s21, 1
    %p39 = por %p37, %p38
    %p40 = scmp.ne.s32.totalorder %s29, %s30
    %p41 = scmp.eq.s32.totalorder %s21, 0
    %p42 = por %p40, %p41
    %p43 = scmp.ne.s32.totalorder %s29, %s30
    %p44 = scmp.eq.s32.totalorder %s22, 1
    %p45 = por %p43, %p44
    %p47 = scmp.ne.s32.totalorder %s30, %s46
    %p48 = scmp.eq.s32.totalorder %s22, 0
    %p49 = por %p47, %p48
    %s51 = sadd.s32 %s50, 1
    %p54 = scmp.eq.s32.totalorder %s16, 1
    %p55 = scmp.ne.s32.totalorder %s50, %s52
    %p56 = scmp.eq.s32.totalorder %s16, 0
    %p57 = por %p55, %p56
    %p58 = scmp.ne.s32.totalorder %s50, %s52
    %p59 = scmp.eq.s32.totalorder %s21, 1
    %p60 = por %p58, %p59
    %p61 = scmp.ne.s32.totalorder %s52, %s53
    %p62 = scmp.eq.s32.totalorder %s21, 0
    %p63 = por %p61, %p62
    %p64 = scmp.ne.s32.totalorder %s52, %s53
    %p65 = scmp.eq.s32.totalorder %s22, 1
    %p66 = por %p64, %p65
    %p68 = scmp.ne.s32.totalorder %s53, %s67
    %p69 = scmp.eq.s32.totalorder %s22, 0
    %p70 = por %p68, %p69
    %s72 = sadd.s32 %s71, 1
    %p75 = scmp.eq.s32.totalorder %s16, 1
    %p76 = scmp.ne.s32.totalorder %s71, %s73
    %p77 = scmp.eq.s32.totalorder %s16, 0
    %p78 = por %p76, %p77
    %p79 = scmp.ne.s32.totalorder %s71, %s73
    %p80 = scmp.eq.s32.totalorder %s21, 1
    %p81 = por %p79, %p80
    %p82 = scmp.ne.s32.totalorder %s73, %s74
    %p83 = scmp.eq.s32.totalorder %s21, 0
    %p84 = por %p82, %p83
    %p85 = scmp.ne.s32.totalorder %s73, %s74
    %p86 = scmp.eq.s32.totalorder %s22, 1
    %p87 = por %p85, %p86
    %p89 = scmp.ne.s32.totalorder %s74, %s88
    %p90 = scmp.eq.s32.totalorder %s22, 0
    %p91 = por %p89, %p90
    %s93 = sadd.s32 %s92, 1
    %p96 = scmp.eq.s32.totalorder %s16, 1
    %p97 = scmp.ne.s32.totalorder %s92, %s94
    %p98 = scmp.eq.s32.totalorder %s16, 0
    %p99 = por %p97, %p98
    %p100 = scmp.ne.s32.totalorder %s92, %s94
    %p101 = scmp.eq.s32.totalorder %s21, 1
    %p102 = por %p100, %p101
    %p103 = scmp.ne.s32.totalorder %s94, %s95
    %p104 = scmp.eq.s32.totalorder %s21, 0
    %p105 = por %p103, %p104
    %p106 = scmp.ne.s32.totalorder %s94, %s95
    %p107 = scmp.eq.s32.totalorder %s22, 1
    %p108 = por %p106, %p107
    %p110 = scmp.ne.s32.totalorder %s95, %s109
    %p111 = scmp.eq.s32.totalorder %s22, 0
    %p112 = por %p110, %p111
    %s114 = sadd.s32 %s113, 1
    %p117 = scmp.eq.s32.totalorder %s16, 1
    %p118 = scmp.ne.s32.totalorder %s113, %s115
    %p119 = scmp.eq.s32.totalorder %s16, 0
    %p120 = por %p118, %p119
    %p121 = scmp.ne.s32.totalorder %s113, %s115
    %p122 = scmp.eq.s32.totalorder %s21, 1
    %p123 = por %p121, %p122
    %p124 = scmp.ne.s32.totalorder %s115, %s116
    %p125 = scmp.eq.s32.totalorder %s21, 0
    %p126 = por %p124, %p125
    %p127 = scmp.ne.s32.totalorder %s115, %s116
    %p128 = scmp.eq.s32.totalorder %s22, 1
    %p129 = por %p127, %p128
    %p131 = scmp.ne.s32.totalorder %s116, %s130
    %p132 = scmp.eq.s32.totalorder %s22, 0
    %p133 = por %p131, %p132
    %s135 = sadd.s32 %s134, 1
    %p138 = scmp.eq.s32.totalorder %s16, 1
    %p139 = scmp.ne.s32.totalorder %s134, %s136
    %p140 = scmp.eq.s32.totalorder %s16, 0
    %p141 = por %p139, %p140
    %p142 = scmp.ne.s32.totalorder %s134, %s136
    %p143 = scmp.eq.s32.totalorder %s21, 1
    %p144 = por %p142, %p143
    %p145 = scmp.ne.s32.totalorder %s136, %s137
    %p146 = scmp.eq.s32.totalorder %s21, 0
    %p147 = por %p145, %p146
    %p148 = scmp.ne.s32.totalorder %s136, %s137
    %p149 = scmp.eq.s32.totalorder %s22, 1
    %p150 = por %p148, %p149
    %p152 = scmp.ne.s32.totalorder %s137, %s151
    %p153 = scmp.eq.s32.totalorder %s22, 0
    %p154 = por %p152, %p153
    %s156 = sadd.s32 %s155, 1
    %p159 = scmp.eq.s32.totalorder %s16, 1
    %p160 = scmp.ne.s32.totalorder %s155, %s157
    %p161 = scmp.eq.s32.totalorder %s16, 0
    %p162 = por %p160, %p161
    %p163 = scmp.ne.s32.totalorder %s155, %s157
    %p164 = scmp.eq.s32.totalorder %s21, 1
    %p165 = por %p163, %p164
    %p166 = scmp.ne.s32.totalorder %s157, %s158
    %p167 = scmp.eq.s32.totalorder %s21, 0
    %p168 = por %p166, %p167
    %p169 = scmp.ne.s32.totalorder %s157, %s158
    %p170 = scmp.eq.s32.totalorder %s22, 1
    %p171 = por %p169, %p170
    %p173 = scmp.ne.s32.totalorder %s158, %s172
    %p174 = scmp.eq.s32.totalorder %s22, 0
    %p175 = por %p173, %p174
    %s177 = sadd.s32 %s176, 1
    %p180 = scmp.eq.s32.totalorder %s16, 1
    %p181 = scmp.ne.s32.totalorder %s176, %s178
    %p182 = scmp.eq.s32.totalorder %s16, 0
    %p183 = por %p181, %p182
    %p184 = scmp.ne.s32.totalorder %s176, %s178
    %p185 = scmp.eq.s32.totalorder %s21, 1
    %p186 = por %p184, %p185
    %p187 = scmp.ne.s32.totalorder %s178, %s179
    %p188 = scmp.eq.s32.totalorder %s21, 0
    %p189 = por %p187, %p188
    %p190 = scmp.ne.s32.totalorder %s178, %s179
    %p191 = scmp.eq.s32.totalorder %s22, 1
    %p192 = por %p190, %p191
    %p194 = scmp.ne.s32.totalorder %s179, %s193
    %p195 = scmp.eq.s32.totalorder %s22, 0
    %p196 = por %p194, %p195
    %s198 = sadd.s32 %s197, 1
    %p201 = scmp.eq.s32.totalorder %s16, 1
    %p202 = scmp.ne.s32.totalorder %s197, %s199
    %p203 = scmp.eq.s32.totalorder %s16, 0
    %p204 = por %p202, %p203
    %p205 = scmp.ne.s32.totalorder %s197, %s199
    %p206 = scmp.eq.s32.totalorder %s21, 1
    %p207 = por %p205, %p206
    %p208 = scmp.ne.s32.totalorder %s199, %s200
    %p209 = scmp.eq.s32.totalorder %s21, 0
    %p210 = por %p208, %p209
    %p211 = scmp.ne.s32.totalorder %s199, %s200
    %p212 = scmp.eq.s32.totalorder %s22, 1
    %p213 = por %p211, %p212
    %p215 = scmp.ne.s32.totalorder %s200, %s214
    %p216 = scmp.eq.s32.totalorder %s22, 0
    %p217 = por %p215, %p216
    %s219 = sadd.s32 %s218, 1
    %p222 = scmp.eq.s32.totalorder %s16, 1
    %p223 = scmp.ne.s32.totalorder %s218, %s220
    %p224 = scmp.eq.s32.totalorder %s16, 0
    %p225 = por %p223, %p224
    %p226 = scmp.ne.s32.totalorder %s218, %s220
    %p227 = scmp.eq.s32.totalorder %s21, 1
    %p228 = por %p226, %p227
    %p229 = scmp.ne.s32.totalorder %s220, %s221
    %p230 = scmp.eq.s32.totalorder %s21, 0
    %p231 = por %p229, %p230
    %p232 = scmp.ne.s32.totalorder %s220, %s221
    %p233 = scmp.eq.s32.totalorder %s22, 1
    %p234 = por %p232, %p233
    %p236 = scmp.ne.s32.totalorder %s221, %s235
    %p237 = scmp.eq.s32.totalorder %s22, 0
    %p238 = por %p236, %p237
    %s239 = ssub.s32 %s16, %s23
    %p240 = scmp.eq.s32.totalorder %s239, 0
    %s242 = sadd.s32 %s241, 1
    %s243 = scalar_select %p240, %s241, %s242
    %p246 = pneg %p240
    %p247 = scmp.eq.s32.totalorder %s16, 1
    %p248 = por %p246, %p247
    %p249 = scmp.ne.s32.totalorder %s241, %s244
    %p250 = scmp.eq.s32.totalorder %s16, 0
    %p251 = por %p249, %p250
    %p252 = scmp.ne.s32.totalorder %s241, %s244
    %p253 = scmp.eq.s32.totalorder %s21, 1
    %p254 = por %p252, %p253
    %p255 = scmp.ne.s32.totalorder %s244, %s245
    %p256 = scmp.eq.s32.totalorder %s21, 0
    %p257 = por %p255, %p256
    %p258 = scmp.ne.s32.totalorder %s244, %s245
    %p259 = scmp.eq.s32.totalorder %s22, 1
    %p260 = por %p258, %p259
    %p262 = scmp.ne.s32.totalorder %s245, %s261
    %p263 = scmp.eq.s32.totalorder %s22, 0
    %p264 = por %p262, %p263
    %p265 = scmp.le.s32.totalorder 1, %s16
    %p266 = scmp.lt.s32.totalorder %s16, 3
    %p267 = pnand %p265, %p266
    %p268 = pneg %p267
    // Predicated region
    $region9: #{tpu_custom_call.1} parent=5 // pred_check
      _
    $region10: #{tpu_custom_call.1} parent=5 // pred_check_branch
      %270 = sbr.rel (%p267) target = $region12
    $region11: #{tpu_custom_call.1} parent=5 // pred_region
      %s271 = ssub.s32 %s16, 1
      // Predicated region
      $region13: #{tpu_custom_call.1} parent=11 // pred_check
        %p272 = pneg %p63
      $region14: #{tpu_custom_call.1} parent=11 // pred_check_branch
        %274 = sbr.rel (%p272) target = $region16
      $region15: #{tpu_custom_call.1} parent=11 // pred_region
        _
      $region16: #{tpu_custom_call.1} parent=11 // pred_fallthru
        _
      // Predicated region
      $region17: #{tpu_custom_call.1} parent=11 // pred_check
        %p275 = pneg %p84
      $region18: #{tpu_custom_call.1} parent=11 // pred_check_branch
        %277 = sbr.rel (%p275) target = $region20
      $region19: #{tpu_custom_call.1} parent=11 // pred_region
        _
      $region20: #{tpu_custom_call.1} parent=11 // pred_fallthru
        _
      // Predicated region
      $region21: #{tpu_custom_call.1} parent=11 // pred_check
        %p278 = pneg %p105
      $region22: #{tpu_custom_call.1} parent=11 // pred_check_branch
        %280 = sbr.rel (%p278) target = $region24
      $region23: #{tpu_custom_call.1} parent=11 // pred_region
        _
      $region24: #{tpu_custom_call.1} parent=11 // pred_fallthru
        _
      // Predicated region
      $region25: #{tpu_custom_call.1} parent=11 // pred_check
        %p281 = pneg %p126
      $region26: #{tpu_custom_call.1} parent=11 // pred_check_branch
        %283 = sbr.rel (%p281) target = $region28
      $region27: #{tpu_custom_call.1} parent=11 // pred_region
        _
      $region28: #{tpu_custom_call.1} parent=11 // pred_fallthru
        _
      // Predicated region
      $region29: #{tpu_custom_call.1} parent=11 // pred_check
        %p284 = pneg %p147
      $region30: #{tpu_custom_call.1} parent=11 // pred_check_branch
        %286 = sbr.rel (%p284) target = $region32
      $region31: #{tpu_custom_call.1} parent=11 // pred_region
        _
      $region32: #{tpu_custom_call.1} parent=11 // pred_fallthru
        _
      // Predicated region
      $region33: #{tpu_custom_call.1} parent=11 // pred_check
        %p287 = pneg %p168
      $region34: #{tpu_custom_call.1} parent=11 // pred_check_branch
        %289 = sbr.rel (%p287) target = $region36
      $region35: #{tpu_custom_call.1} parent=11 // pred_region
        _
      $region36: #{tpu_custom_call.1} parent=11 // pred_fallthru
        _
      // Predicated region
      $region37: #{tpu_custom_call.1} parent=11 // pred_check
        %p290 = pneg %p189
      $region38: #{tpu_custom_call.1} parent=11 // pred_check_branch
        %292 = sbr.rel (%p290) target = $region40
      $region39: #{tpu_custom_call.1} parent=11 // pred_region
        _
      $region40: #{tpu_custom_call.1} parent=11 // pred_fallthru
        _
      // Predicated region
      $region41: #{tpu_custom_call.1} parent=11 // pred_check
        %p293 = pneg %p210
      $region42: #{tpu_custom_call.1} parent=11 // pred_check_branch
        %295 = sbr.rel (%p293) target = $region44
      $region43: #{tpu_custom_call.1} parent=11 // pred_region
        _
      $region44: #{tpu_custom_call.1} parent=11 // pred_fallthru
        _
      // Predicated region
      $region45: #{tpu_custom_call.1} parent=11 // pred_check
        %p296 = pneg %p231
      $region46: #{tpu_custom_call.1} parent=11 // pred_check_branch
        %298 = sbr.rel (%p296) target = $region48
      $region47: #{tpu_custom_call.1} parent=11 // pred_region
        _
      $region48: #{tpu_custom_call.1} parent=11 // pred_fallthru
        _
    $region12: #{tpu_custom_call.1} parent=5 // pred_fallthru
      _
    %p299 = scmp.lt.s32.totalorder %s16, 2
    // Predicated region
    $region49: #{tpu_custom_call.1} parent=5 // pred_check
      %p300 = pneg %p299
    $region50: #{tpu_custom_call.1} parent=5 // pred_check_branch
      %302 = sbr.rel (%p300) target = $region52
    $region51: #{tpu_custom_call.1} parent=5 // pred_region
      // Predicated region
      $region53: #{tpu_custom_call.1} parent=51 // pred_check
        %p303 = pneg %p36
      $region54: #{tpu_custom_call.1} parent=51 // pred_check_branch
        %305 = sbr.rel (%p303) target = $region56
      $region55: #{tpu_custom_call.1} parent=51 // pred_region
        %p306 = scmp.lt.s32.totalorder %s16, 1
        %s307 = scalar_select %p306, %s16, 1
        %s308 = smul.addr %s307, 20
        %s309 = smul.addr %s308, 8
        %s310 = scalar_lea.vmem %s0, %s309
      $region56: #{tpu_custom_call.1} parent=51 // pred_fallthru
        _
    $region52: #{tpu_custom_call.1} parent=5 // pred_fallthru
      _
    %p311 = scmp.le.s32.totalorder 1, %s16
    %p312 = scmp.lt.s32.totalorder %s16, 3
    %p313 = pnand %p311, %p312
    %p314 = pneg %p313
    // Predicated region
    $region57: #{tpu_custom_call.1} parent=5 // pred_check
      _
    $region58: #{tpu_custom_call.1} parent=5 // pred_check_branch
      %316 = sbr.rel (%p313) target = $region60
    $region59: #{tpu_custom_call.1} parent=5 // pred_region
      %s317 = ssub.s32 %s16, 1
      %p318 = scmp.lt.s32.totalorder %s21, 1
      %s319 = scalar_select %p318, %s21, 1
      %s320 = smul.addr %s319, 20
      %s321 = smul.addr %s320, 8
      %s322 = scalar_lea.vmem %s0, %s321
      %p323 = pneg %p42
      %p324 = pneg %p39
      %p325 = pneg %p63
      %p326 = pneg %p60
      %p327 = pneg %p84
      %p328 = pneg %p81
      %p329 = pneg %p105
      %p330 = pneg %p102
      %p331 = pneg %p126
      %p332 = pneg %p123
      %p333 = pneg %p147
      %p334 = pneg %p144
      %p335 = pneg %p168
      %p336 = pneg %p165
      %p337 = pneg %p189
      %p338 = pneg %p186
      %p339 = pneg %p210
      %p340 = pneg %p207
      %p341 = pneg %p231
      %p342 = pneg %p228
      %p343 = pneg %p257
      %p344 = pneg %p254
      %p345 = scmp.lt.s32.totalorder %s21, 1
      %s346 = scalar_select %p345, %s21, 1
      %s347 = smul.addr %s346, 4
      %s348 = smul.addr %s347, 4
      %s349 = scalar_lea.vmem %s10, %s348
      %p350 = scmp.lt.s32.totalorder %s21, 1
      %s351 = scalar_select %p350, %s21, 1
      %s352 = smul.addr %s351, 20
      %s353 = smul.addr %s352, 8
      %s354 = scalar_lea.vmem %s0, %s353
      %p355 = scmp.lt.s32.totalorder %s21, 1
      %s356 = scalar_select %p355, %s21, 1
      %s357 = smul.addr %s356, 4
      %s358 = smul.addr %s357, 4
      %s359 = scalar_lea.vmem %s10, %s358
      %361 = vst [vmem:[#allocation2] sm:$0xff] 0.0
      %362 = vst [vmem:[#allocation2 + $0x8] sm:$0x3] 0.0
      %363 = vst [vmem:[#allocation2 + $0xa0] sm:$0xff] 0.0
      %364 = vst [vmem:[#allocation2 + $0xa8] sm:$0x3] 0.0
      %365 = vst [vmem:[#allocation2 + $0x140] sm:$0xff] 0.0
      %366 = vst [vmem:[#allocation2 + $0x148] sm:$0x3] 0.0
      %367 = vst [vmem:[#allocation2 + $0x1e0] sm:$0xff] 0.0
      %368 = vst [vmem:[#allocation2 + $0x1e8] sm:$0x3] 0.0
      %s369 = scalar_lea.vmem [#allocation2], 144
      %370 = vst [vmem:[%s369] sm:$0xff] 0.0
      %371 = vst [vmem:[%s369 + $0x8] sm:$0x3] 0.0
      %372 = vst [vmem:[%s369 + $0xa0] sm:$0xff] 0.0
      %373 = vst [vmem:[%s369 + $0xa8] sm:$0x3] 0.0
      %374 = vst [vmem:[%s369 + $0x140] sm:$0xff] 0.0
      %375 = vst [vmem:[%s369 + $0x148] sm:$0x3] 0.0
      %376 = vst [vmem:[%s369 + $0x1e0] sm:$0xff] 0.0
      %377 = vst [vmem:[%s369 + $0x1e8] sm:$0x3] 0.0
      %378 = vst [vmem:[#allocation2] sm:$0x1] 0.0
      %379 = vst [vmem:[#allocation2 + $0x10] sm:$0x1] 0.0
      %380 = vst [vmem:[#allocation2 + $0x20] sm:$0x1] 0.0
      %381 = vst [vmem:[#allocation2 + $0x30] sm:$0x1] 0.0
      %382 = vst [vmem:[#allocation2 + $0x40] sm:$0x1] 0.0
      %383 = vst [vmem:[#allocation2 + $0x50] sm:$0x1] 0.0
      %384 = vst [vmem:[#allocation2 + $0x60] sm:$0x1] 0.0
      %385 = vst [vmem:[#allocation2 + $0x70] sm:$0x1] 0.0
      %386 = vst [vmem:[#allocation2 + $0x80] sm:$0x1] 0.0
      %387 = vst [vmem:[#allocation2 + $0x90] sm:$0x1] 0.0
      %388 = vst [vmem:[#allocation2 + $0xa0] sm:$0x1] 0.0
      %389 = vst [vmem:[#allocation2 + $0xb0] sm:$0x1] 0.0
      %390 = vst [vmem:[#allocation2 + $0xc0] sm:$0x1] 0.0
      %391 = vst [vmem:[#allocation2 + $0xd0] sm:$0x1] 0.0
      %392 = vst [vmem:[#allocation2 + $0xe0] sm:$0x1] 0.0
      %393 = vst [vmem:[#allocation2 + $0xf0] sm:$0x1] 0.0
      %394 = vst [vmem:[#allocation2 + $0x100] sm:$0x1] 0.0
      %395 = vst [vmem:[#allocation2 + $0x110] sm:$0x1] 0.0
      %396 = vst [vmem:[#allocation2 + $0x120] sm:$0x1] 0.0
      %397 = vst [vmem:[#allocation2 + $0x130] sm:$0x1] 0.0
      %398 = vst [vmem:[#allocation2 + $0x140] sm:$0x1] 0.0
      %399 = vst [vmem:[#allocation2 + $0x150] sm:$0x1] 0.0
      %400 = vst [vmem:[#allocation2 + $0x160] sm:$0x1] 0.0
      %401 = vst [vmem:[#allocation2 + $0x170] sm:$0x1] 0.0
      %402 = vst [vmem:[#allocation2 + $0x180] sm:$0x1] 0.0
      %403 = vst [vmem:[#allocation2 + $0x190] sm:$0x1] 0.0
      %404 = vst [vmem:[#allocation2 + $0x1a0] sm:$0x1] 0.0
      %405 = vst [vmem:[#allocation2 + $0x1b0] sm:$0x1] 0.0
      %406 = vst [vmem:[#allocation2 + $0x1c0] sm:$0x1] 0.0
      %407 = vst [vmem:[#allocation2 + $0x1d0] sm:$0x1] 0.0
      %408 = vst [vmem:[#allocation2 + $0x1e0] sm:$0x1] 0.0
      %409 = vst [vmem:[#allocation2 + $0x1f0] sm:$0x1] 0.0
      %410 = vst [vmem:[#allocation2 + $0x200] sm:$0x1] 0.0
      %411 = vst [vmem:[#allocation2 + $0x210] sm:$0x1] 0.0
      %412 = vst [vmem:[#allocation2 + $0x220] sm:$0x1] 0.0
      %413 = vst [vmem:[#allocation2 + $0x230] sm:$0x1] 0.0
      %414 = vst [vmem:[#allocation2 + $0x240] sm:$0x1] 0.0
      %415 = vst [vmem:[#allocation2 + $0x250] sm:$0x1] 0.0
      %416 = vst [vmem:[#allocation2 + $0x260] sm:$0x1] 0.0
      %417 = vst [vmem:[#allocation2 + $0x270] sm:$0x1] 0.0
      %418 = vst [vmem:[#allocation2 + $0x9] sm:$0x1] 0.0
      %419 = vst [vmem:[#allocation2 + $0x19] sm:$0x1] 0.0
      %420 = vst [vmem:[#allocation2 + $0x29] sm:$0x1] 0.0
      %421 = vst [vmem:[#allocation2 + $0x39] sm:$0x1] 0.0
      %422 = vst [vmem:[#allocation2 + $0x49] sm:$0x1] 0.0
      %423 = vst [vmem:[#allocation2 + $0x59] sm:$0x1] 0.0
      %424 = vst [vmem:[#allocation2 + $0x69] sm:$0x1] 0.0
      %425 = vst [vmem:[#allocation2 + $0x79] sm:$0x1] 0.0
      %426 = vst [vmem:[#allocation2 + $0x89] sm:$0x1] 0.0
      %427 = vst [vmem:[#allocation2 + $0x99] sm:$0x1] 0.0
      %428 = vst [vmem:[#allocation2 + $0xa9] sm:$0x1] 0.0
      %429 = vst [vmem:[#allocation2 + $0xb9] sm:$0x1] 0.0
      %430 = vst [vmem:[#allocation2 + $0xc9] sm:$0x1] 0.0
      %431 = vst [vmem:[#allocation2 + $0xd9] sm:$0x1] 0.0
      %432 = vst [vmem:[#allocation2 + $0xe9] sm:$0x1] 0.0
      %433 = vst [vmem:[#allocation2 + $0xf9] sm:$0x1] 0.0
      %434 = vst [vmem:[#allocation2 + $0x109] sm:$0x1] 0.0
      %435 = vst [vmem:[#allocation2 + $0x119] sm:$0x1] 0.0
      %436 = vst [vmem:[#allocation2 + $0x129] sm:$0x1] 0.0
      %437 = vst [vmem:[#allocation2 + $0x139] sm:$0x1] 0.0
      %438 = vst [vmem:[#allocation2 + $0x149] sm:$0x1] 0.0
      %439 = vst [vmem:[#allocation2 + $0x159] sm:$0x1] 0.0
      %440 = vst [vmem:[#allocation2 + $0x169] sm:$0x1] 0.0
      %441 = vst [vmem:[#allocation2 + $0x179] sm:$0x1] 0.0
      %442 = vst [vmem:[#allocation2 + $0x189] sm:$0x1] 0.0
      %443 = vst [vmem:[#allocation2 + $0x199] sm:$0x1] 0.0
      %444 = vst [vmem:[#allocation2 + $0x1a9] sm:$0x1] 0.0
      %445 = vst [vmem:[#allocation2 + $0x1b9] sm:$0x1] 0.0
      %446 = vst [vmem:[#allocation2 + $0x1c9] sm:$0x1] 0.0
      %447 = vst [vmem:[#allocation2 + $0x1d9] sm:$0x1] 0.0
      %448 = vst [vmem:[#allocation2 + $0x1e9] sm:$0x1] 0.0
      %449 = vst [vmem:[#allocation2 + $0x1f9] sm:$0x1] 0.0
      %450 = vst [vmem:[#allocation2 + $0x209] sm:$0x1] 0.0
      %451 = vst [vmem:[#allocation2 + $0x219] sm:$0x1] 0.0
      %452 = vst [vmem:[#allocation2 + $0x229] sm:$0x1] 0.0
      %453 = vst [vmem:[#allocation2 + $0x239] sm:$0x1] 0.0
      %454 = vst [vmem:[#allocation2 + $0x249] sm:$0x1] 0.0
      %455 = vst [vmem:[#allocation2 + $0x259] sm:$0x1] 0.0
      %456 = vst [vmem:[#allocation2 + $0x269] sm:$0x1] 0.0
      %457 = vst [vmem:[#allocation2 + $0x279] sm:$0x1] 0.0
      %v458 = vld [vmem:[%s1] sm:$0xff]
      %v459 = vld [vmem:[%s1 + $0x8] sm:$0xff]
      %v460 = vld [vmem:[%s2] sm:$0xf]
      %v461 = vld [vmem:[%s2 + $0x4] sm:$0xf]
      %v462 = vld [vmem:[%s2 + $0x8] sm:$0xf]
      %v463 = vld [vmem:[%s2 + $0xc] sm:$0xf]
      %v464 = vld [vmem:[%s2 + $0x10] sm:$0xf]
      %v465 = vld [vmem:[%s2 + $0x14] sm:$0xf]
      %v466 = vld [vmem:[%s2 + $0x18] sm:$0xf]
      %v467 = vld [vmem:[%s2 + $0x1c] sm:$0xf]
      %v468 = vld [vmem:[%s2 + $0x20] sm:$0xf]
      %v469 = vld [vmem:[%s2 + $0x24] sm:$0xf]
      %v470 = vld [vmem:[%s2 + $0x28] sm:$0xf]
      %v471 = vld [vmem:[%s2 + $0x2c] sm:$0xf]
      %v472 = vld [vmem:[%s2 + $0x30] sm:$0xf]
      %v473 = vld [vmem:[%s2 + $0x34] sm:$0xf]
      %v474 = vld [vmem:[%s2 + $0x38] sm:$0xf]
      %v475 = vld [vmem:[%s2 + $0x3c] sm:$0xf]
      %v476 = vld [vmem:[%s3] sm:$0x1]
      %v477 = vld [vmem:[%s4] sm:$0x1]
      %v478 = vld [vmem:[%s354] sm:$0xff]
      %v479 = vld [vmem:[%s354 + $0x10] sm:$0xff]
      %v480 = vld [vmem:[%s354 + $0x20] sm:$0xff]
      %v481 = vld [vmem:[%s354 + $0x30] sm:$0xff]
      %v482 = vld [vmem:[%s354 + $0x40] sm:$0xff]
      %v483 = vld [vmem:[%s354 + $0x50] sm:$0xff]
      %v484 = vld [vmem:[%s354 + $0x60] sm:$0xff]
      %v485 = vld [vmem:[%s354 + $0x70] sm:$0xff]
      %v486 = vperm.slane %v458, 0
      %v487 = vmul.f32 %v478, %v486
      %v488 = vmul.f32 %v479, %v486
      %v489 = vmul.f32 %v480, %v486
      %v490 = vmul.f32 %v481, %v486
      %v491 = vmul.f32 %v482, %v486
      %v492 = vmul.f32 %v483, %v486
      %v493 = vmul.f32 %v484, %v486
      %v494 = vmul.f32 %v485, %v486
      %v495 = vadd.f32 %v487, 0.0
      %v496 = vadd.f32 %v488, 0.0
      %v497 = vadd.f32 %v489, 0.0
      %v498 = vadd.f32 %v490, 0.0
      %v499 = vadd.f32 %v491, 0.0
      %v500 = vadd.f32 %v492, 0.0
      %v501 = vadd.f32 %v493, 0.0
      %v502 = vadd.f32 %v494, 0.0
      %v503 = vld [vmem:[%s354 + $0x1] sm:$0xff]
      %v504 = vld [vmem:[%s354 + $0x11] sm:$0xff]
      %v505 = vld [vmem:[%s354 + $0x21] sm:$0xff]
      %v506 = vld [vmem:[%s354 + $0x31] sm:$0xff]
      %v507 = vld [vmem:[%s354 + $0x41] sm:$0xff]
      %v508 = vld [vmem:[%s354 + $0x51] sm:$0xff]
      %v509 = vld [vmem:[%s354 + $0x61] sm:$0xff]
      %v510 = vld [vmem:[%s354 + $0x71] sm:$0xff]
      %v511 = vperm.slane %v458, 1
      %v512 = vmul.f32 %v503, %v511
      %v513 = vmul.f32 %v504, %v511
      %v514 = vmul.f32 %v505, %v511
      %v515 = vmul.f32 %v506, %v511
      %v516 = vmul.f32 %v507, %v511
      %v517 = vmul.f32 %v508, %v511
      %v518 = vmul.f32 %v509, %v511
      %v519 = vmul.f32 %v510, %v511
      %v520 = vadd.f32 %v495, %v512
      %v521 = vadd.f32 %v496, %v513
      %v522 = vadd.f32 %v497, %v514
      %v523 = vadd.f32 %v498, %v515
      %v524 = vadd.f32 %v499, %v516
      %v525 = vadd.f32 %v500, %v517
      %v526 = vadd.f32 %v501, %v518
      %v527 = vadd.f32 %v502, %v519
      %s528 = scalar_lea.vmem %s354, 16
      %v529 = vld [vmem:[%s528] sm:$0xff]
      %v530 = vld [vmem:[%s528 + $0x10] sm:$0xff]
      %v531 = vld [vmem:[%s528 + $0x20] sm:$0xff]
      %v532 = vld [vmem:[%s528 + $0x30] sm:$0xff]
      %v533 = vld [vmem:[%s528 + $0x40] sm:$0xff]
      %v534 = vld [vmem:[%s528 + $0x50] sm:$0xff]
      %v535 = vld [vmem:[%s528 + $0x60] sm:$0xff]
      %v536 = vld [vmem:[%s528 + $0x70] sm:$0xff]
      %v537 = vperm.slane %v458, 2
      %v538 = vmul.f32 %v529, %v537
      %v539 = vmul.f32 %v530, %v537
      %v540 = vmul.f32 %v531, %v537
      %v541 = vmul.f32 %v532, %v537
      %v542 = vmul.f32 %v533, %v537
      %v543 = vmul.f32 %v534, %v537
      %v544 = vmul.f32 %v535, %v537
      %v545 = vmul.f32 %v536, %v537
      %v546 = vadd.f32 %v520, %v538
      %v547 = vadd.f32 %v521, %v539
      %v548 = vadd.f32 %v522, %v540
      %v549 = vadd.f32 %v523, %v541
      %v550 = vadd.f32 %v524, %v542
      %v551 = vadd.f32 %v525, %v543
      %v552 = vadd.f32 %v526, %v544
      %v553 = vadd.f32 %v527, %v545
      %v554 = vld [vmem:[%s528 + $0x1] sm:$0xff]
      %v555 = vld [vmem:[%s528 + $0x11] sm:$0xff]
      %v556 = vld [vmem:[%s528 + $0x21] sm:$0xff]
      %v557 = vld [vmem:[%s528 + $0x31] sm:$0xff]
      %v558 = vld [vmem:[%s528 + $0x41] sm:$0xff]
      %v559 = vld [vmem:[%s528 + $0x51] sm:$0xff]
      %v560 = vld [vmem:[%s528 + $0x61] sm:$0xff]
      %v561 = vld [vmem:[%s528 + $0x71] sm:$0xff]
      %v562 = vperm.slane %v458, 3
      %v563 = vmul.f32 %v554, %v562
      %v564 = vmul.f32 %v555, %v562
      %v565 = vmul.f32 %v556, %v562
      %v566 = vmul.f32 %v557, %v562
      %v567 = vmul.f32 %v558, %v562
      %v568 = vmul.f32 %v559, %v562
      %v569 = vmul.f32 %v560, %v562
      %v570 = vmul.f32 %v561, %v562
      %v571 = vadd.f32 %v546, %v563
      %v572 = vadd.f32 %v547, %v564
      %v573 = vadd.f32 %v548, %v565
      %v574 = vadd.f32 %v549, %v566
      %v575 = vadd.f32 %v550, %v567
      %v576 = vadd.f32 %v551, %v568
      %v577 = vadd.f32 %v552, %v569
      %v578 = vadd.f32 %v553, %v570
      %v579 = vpack.c.bf16 %v572, %v571
      %v580 = vpack.c.bf16 %v574, %v573
      %v581 = vpack.c.bf16 %v576, %v575
      %v582 = vpack.c.bf16 %v578, %v577
      %v599 = vunpack.c.l.b16 %v460
      %v600 = vunpack.c.l.b16 %v461
      %v601 = vunpack.c.l.b16 %v462
      %v602 = vunpack.c.l.b16 %v463
      %v603 = vunpack.c.l.b16 %v464
      %v604 = vunpack.c.l.b16 %v465
      %v605 = vunpack.c.l.b16 %v466
      %v606 = vunpack.c.l.b16 %v467
      %v607 = vunpack.c.l.b16 %v468
      %v608 = vunpack.c.l.b16 %v469
      %v609 = vunpack.c.l.b16 %v470
      %v610 = vunpack.c.l.b16 %v471
      %v611 = vunpack.c.l.b16 %v472
      %v612 = vunpack.c.l.b16 %v473
      %v613 = vunpack.c.l.b16 %v474
      %v614 = vunpack.c.l.b16 %v475
      %v615 = vpack.c.b16 %v600, %v599
      %v616 = vpack.c.b16 %v602, %v601
      %v617 = vpack.c.b16 %v604, %v603
      %v618 = vpack.c.b16 %v606, %v605
      %v619 = vpack.c.b16 %v608, %v607
      %v620 = vpack.c.b16 %v610, %v609
      %v621 = vpack.c.b16 %v612, %v611
      %v622 = vpack.c.b16 %v614, %v613
      %631 = vmatpush.bf16.msra.mxu0 %v622
      %632 = vmatpush.bf16.msra.mxu0 %v621
      %633 = vmatpush.bf16.msra.mxu0 %v620
      %634 = vmatpush.bf16.msra.mxu0 %v619
      %635 = vmatpush.bf16.msra.mxu0 %v618
      %636 = vmatpush.bf16.msra.mxu0 %v617
      %637 = vmatpush.bf16.msra.mxu0 %v616
      %638 = vmatpush.bf16.msra.mxu0 %v615
      %639 = vmatmul.bf16.gmra.mxu0 %v579
      %v640 = vpop.f32.mrf.mxu0
      %v641 = vadd.f32 0.0, %v640
      %v642 = vpop.f32.mrf.mxu0
      %v643 = vadd.f32 0.0, %v642
      %644 = vmatmul.bf16.gmra.mxu0 %v580
      %v645 = vpop.f32.mrf.mxu0
      %v646 = vadd.f32 0.0, %v645
      %v647 = vpop.f32.mrf.mxu0
      %v648 = vadd.f32 0.0, %v647
      %649 = vmatmul.bf16.gmra.mxu0 %v581
      %v650 = vpop.f32.mrf.mxu0
      %v651 = vadd.f32 0.0, %v650
      %v652 = vpop.f32.mrf.mxu0
      %v653 = vadd.f32 0.0, %v652
      %654 = vmatmul.bf16.gmra.mxu0 %v582
      %v655 = vpop.f32.mrf.mxu0
      %v656 = vadd.f32 0.0, %v655
      %v657 = vpop.f32.mrf.mxu0
      %v658 = vadd.f32 0.0, %v657
      %659 = vdwg.mxu0
      %v661 = vperm.slane %v476, 0
      %v663 = vmul.f32 %v641, %v661
      %v664 = vmul.f32 %v643, %v661
      %v665 = vmul.f32 %v646, %v661
      %v666 = vmul.f32 %v648, %v661
      %v667 = vmul.f32 %v651, %v661
      %v668 = vmul.f32 %v653, %v661
      %v669 = vmul.f32 %v656, %v661
      %v670 = vmul.f32 %v658, %v661
      %v672 = vperm.slane %v477, 0
      %v674 = vadd.f32 %v663, %v672
      %v675 = vadd.f32 %v664, %v672
      %v676 = vadd.f32 %v665, %v672
      %v677 = vadd.f32 %v666, %v672
      %v678 = vadd.f32 %v667, %v672
      %v679 = vadd.f32 %v668, %v672
      %v680 = vadd.f32 %v669, %v672
      %v681 = vadd.f32 %v670, %v672
      %v682 = vmax.f32 %v674, 0.0
      %v683 = vmax.f32 %v675, 0.0
      %v684 = vmax.f32 %v676, 0.0
      %v685 = vmax.f32 %v677, 0.0
      %v686 = vmax.f32 %v678, 0.0
      %v687 = vmax.f32 %v679, 0.0
      %v688 = vmax.f32 %v680, 0.0
      %v689 = vmax.f32 %v681, 0.0
      %s690 = scalar_lea.vmem [#allocation2], 16
      %691 = vst [vmem:[%s690 + $0x1] sm:$0xff] %v682
      %692 = vst [vmem:[%s690 + $0x11] sm:$0xff] %v683
      %693 = vst [vmem:[%s690 + $0x21] sm:$0xff] %v684
      %694 = vst [vmem:[%s690 + $0x31] sm:$0xff] %v685
      %695 = vst [vmem:[%s690 + $0x41] sm:$0xff] %v686
      %696 = vst [vmem:[%s690 + $0x51] sm:$0xff] %v687
      %697 = vst [vmem:[%s690 + $0x61] sm:$0xff] %v688
      %698 = vst [vmem:[%s690 + $0x71] sm:$0xff] %v689
      %v699 = vld [vmem:[%s354 + $0x1] sm:$0xff]
      %v700 = vld [vmem:[%s354 + $0x11] sm:$0xff]
      %v701 = vld [vmem:[%s354 + $0x21] sm:$0xff]
      %v702 = vld [vmem:[%s354 + $0x31] sm:$0xff]
      %v703 = vld [vmem:[%s354 + $0x41] sm:$0xff]
      %v704 = vld [vmem:[%s354 + $0x51] sm:$0xff]
      %v705 = vld [vmem:[%s354 + $0x61] sm:$0xff]
      %v706 = vld [vmem:[%s354 + $0x71] sm:$0xff]
      %v707 = vperm.slane %v458, 4
      %v708 = vmul.f32 %v699, %v707
      %v709 = vmul.f32 %v700, %v707
      %v710 = vmul.f32 %v701, %v707
      %v711 = vmul.f32 %v702, %v707
      %v712 = vmul.f32 %v703, %v707
      %v713 = vmul.f32 %v704, %v707
      %v714 = vmul.f32 %v705, %v707
      %v715 = vmul.f32 %v706, %v707
      %v716 = vadd.f32 %v708, 0.0
      %v717 = vadd.f32 %v709, 0.0
      %v718 = vadd.f32 %v710, 0.0
      %v719 = vadd.f32 %v711, 0.0
      %v720 = vadd.f32 %v712, 0.0
      %v721 = vadd.f32 %v713, 0.0
      %v722 = vadd.f32 %v714, 0.0
      %v723 = vadd.f32 %v715, 0.0
      %v724 = vld [vmem:[%s354 + $0x2] sm:$0xff]
      %v725 = vld [vmem:[%s354 + $0x12] sm:$0xff]
      %v726 = vld [vmem:[%s354 + $0x22] sm:$0xff]
      %v727 = vld [vmem:[%s354 + $0x32] sm:$0xff]
      %v728 = vld [vmem:[%s354 + $0x42] sm:$0xff]
      %v729 = vld [vmem:[%s354 + $0x52] sm:$0xff]
      %v730 = vld [vmem:[%s354 + $0x62] sm:$0xff]
      %v731 = vld [vmem:[%s354 + $0x72] sm:$0xff]
      %v732 = vperm.slane %v458, 5
      %v733 = vmul.f32 %v724, %v732
      %v734 = vmul.f32 %v725, %v732
      %v735 = vmul.f32 %v726, %v732
      %v736 = vmul.f32 %v727, %v732
      %v737 = vmul.f32 %v728, %v732
      %v738 = vmul.f32 %v729, %v732
      %v739 = vmul.f32 %v730, %v732
      %v740 = vmul.f32 %v731, %v732
      %v741 = vadd.f32 %v716, %v733
      %v742 = vadd.f32 %v717, %v734
      %v743 = vadd.f32 %v718, %v735
      %v744 = vadd.f32 %v719, %v736
      %v745 = vadd.f32 %v720, %v737
      %v746 = vadd.f32 %v721, %v738
      %v747 = vadd.f32 %v722, %v739
      %v748 = vadd.f32 %v723, %v740
      %v749 = vld [vmem:[%s528 + $0x1] sm:$0xff]
      %v750 = vld [vmem:[%s528 + $0x11] sm:$0xff]
      %v751 = vld [vmem:[%s528 + $0x21] sm:$0xff]
      %v752 = vld [vmem:[%s528 + $0x31] sm:$0xff]
      %v753 = vld [vmem:[%s528 + $0x41] sm:$0xff]
      %v754 = vld [vmem:[%s528 + $0x51] sm:$0xff]
      %v755 = vld [vmem:[%s528 + $0x61] sm:$0xff]
      %v756 = vld [vmem:[%s528 + $0x71] sm:$0xff]
      %v757 = vperm.slane %v458, 6
      %v758 = vmul.f32 %v749, %v757
      %v759 = vmul.f32 %v750, %v757
      %v760 = vmul.f32 %v751, %v757
      %v761 = vmul.f32 %v752, %v757
      %v762 = vmul.f32 %v753, %v757
      %v763 = vmul.f32 %v754, %v757
      %v764 = vmul.f32 %v755, %v757
      %v765 = vmul.f32 %v756, %v757
      %v766 = vadd.f32 %v741, %v758
      %v767 = vadd.f32 %v742, %v759
      %v768 = vadd.f32 %v743, %v760
      %v769 = vadd.f32 %v744, %v761
      %v770 = vadd.f32 %v745, %v762
      %v771 = vadd.f32 %v746, %v763
      %v772 = vadd.f32 %v747, %v764
      %v773 = vadd.f32 %v748, %v765
      %v774 = vld [vmem:[%s528 + $0x2] sm:$0xff]
      %v775 = vld [vmem:[%s528 + $0x12] sm:$0xff]
      %v776 = vld [vmem:[%s528 + $0x22] sm:$0xff]
      %v777 = vld [vmem:[%s528 + $0x32] sm:$0xff]
      %v778 = vld [vmem:[%s528 + $0x42] sm:$0xff]
      %v779 = vld [vmem:[%s528 + $0x52] sm:$0xff]
      %v780 = vld [vmem:[%s528 + $0x62] sm:$0xff]
      %v781 = vld [vmem:[%s528 + $0x72] sm:$0xff]
      %v782 = vperm.slane %v458, 7
      %v783 = vmul.f32 %v774, %v782
      %v784 = vmul.f32 %v775, %v782
      %v785 = vmul.f32 %v776, %v782
      %v786 = vmul.f32 %v777, %v782
      %v787 = vmul.f32 %v778, %v782
      %v788 = vmul.f32 %v779, %v782
      %v789 = vmul.f32 %v780, %v782
      %v790 = vmul.f32 %v781, %v782
      %v791 = vadd.f32 %v766, %v783
      %v792 = vadd.f32 %v767, %v784
      %v793 = vadd.f32 %v768, %v785
      %v794 = vadd.f32 %v769, %v786
      %v795 = vadd.f32 %v770, %v787
      %v796 = vadd.f32 %v771, %v788
      %v797 = vadd.f32 %v772, %v789
      %v798 = vadd.f32 %v773, %v790
      %v799 = vpack.c.bf16 %v792, %v791
      %v800 = vpack.c.bf16 %v794, %v793
      %v801 = vpack.c.bf16 %v796, %v795
      %v802 = vpack.c.bf16 %v798, %v797
      %803 = vmatpush.bf16.msra.mxu0 %v622
      %804 = vmatpush.bf16.msra.mxu0 %v621
      %805 = vmatpush.bf16.msra.mxu0 %v620
      %806 = vmatpush.bf16.msra.mxu0 %v619
      %807 = vmatpush.bf16.msra.mxu0 %v618
      %808 = vmatpush.bf16.msra.mxu0 %v617
      %809 = vmatpush.bf16.msra.mxu0 %v616
      %810 = vmatpush.bf16.msra.mxu0 %v615
      %811 = vmatmul.bf16.gmra.mxu0 %v799
      %v812 = vpop.f32.mrf.mxu0
      %v813 = vadd.f32 0.0, %v812
      %v814 = vpop.f32.mrf.mxu0
      %v815 = vadd.f32 0.0, %v814
      %816 = vmatmul.bf16.gmra.mxu0 %v800
      %v817 = vpop.f32.mrf.mxu0
      %v818 = vadd.f32 0.0, %v817
      %v819 = vpop.f32.mrf.mxu0
      %v820 = vadd.f32 0.0, %v819
      %821 = vmatmul.bf16.gmra.mxu0 %v801
      %v822 = vpop.f32.mrf.mxu0
      %v823 = vadd.f32 0.0, %v822
      %v824 = vpop.f32.mrf.mxu0
      %v825 = vadd.f32 0.0, %v824
      %826 = vmatmul.bf16.gmra.mxu0 %v802
      %v827 = vpop.f32.mrf.mxu0
      %v828 = vadd.f32 0.0, %v827
      %v829 = vpop.f32.mrf.mxu0
      %v830 = vadd.f32 0.0, %v829
      %831 = vdwg.mxu0
      %v832 = vmul.f32 %v813, %v661
      %v833 = vmul.f32 %v815, %v661
      %v834 = vmul.f32 %v818, %v661
      %v835 = vmul.f32 %v820, %v661
      %v836 = vmul.f32 %v823, %v661
      %v837 = vmul.f32 %v825, %v661
      %v838 = vmul.f32 %v828, %v661
      %v839 = vmul.f32 %v830, %v661
      %v840 = vadd.f32 %v832, %v672
      %v841 = vadd.f32 %v833, %v672
      %v842 = vadd.f32 %v834, %v672
      %v843 = vadd.f32 %v835, %v672
      %v844 = vadd.f32 %v836, %v672
      %v845 = vadd.f32 %v837, %v672
      %v846 = vadd.f32 %v838, %v672
      %v847 = vadd.f32 %v839, %v672
      %v848 = vmax.f32 %v840, 0.0
      %v849 = vmax.f32 %v841, 0.0
      %v850 = vmax.f32 %v842, 0.0
      %v851 = vmax.f32 %v843, 0.0
      %v852 = vmax.f32 %v844, 0.0
      %v853 = vmax.f32 %v845, 0.0
      %v854 = vmax.f32 %v846, 0.0
      %v855 = vmax.f32 %v847, 0.0
      %s856 = scalar_lea.vmem [#allocation2], 176
      %857 = vst [vmem:[%s856 + $0x1] sm:$0xff] %v848
      %858 = vst [vmem:[%s856 + $0x11] sm:$0xff] %v849
      %859 = vst [vmem:[%s856 + $0x21] sm:$0xff] %v850
      %860 = vst [vmem:[%s856 + $0x31] sm:$0xff] %v851
      %861 = vst [vmem:[%s856 + $0x41] sm:$0xff] %v852
      %862 = vst [vmem:[%s856 + $0x51] sm:$0xff] %v853
      %863 = vst [vmem:[%s856 + $0x61] sm:$0xff] %v854
      %864 = vst [vmem:[%s856 + $0x71] sm:$0xff] %v855
      %v865 = vld [vmem:[%s528] sm:$0xff]
      %v866 = vld [vmem:[%s528 + $0x10] sm:$0xff]
      %v867 = vld [vmem:[%s528 + $0x20] sm:$0xff]
      %v868 = vld [vmem:[%s528 + $0x30] sm:$0xff]
      %v869 = vld [vmem:[%s528 + $0x40] sm:$0xff]
      %v870 = vld [vmem:[%s528 + $0x50] sm:$0xff]
      %v871 = vld [vmem:[%s528 + $0x60] sm:$0xff]
      %v872 = vld [vmem:[%s528 + $0x70] sm:$0xff]
      %v873 = vperm.slane %v459, 0
      %v874 = vmul.f32 %v865, %v873
      %v875 = vmul.f32 %v866, %v873
      %v876 = vmul.f32 %v867, %v873
      %v877 = vmul.f32 %v868, %v873
      %v878 = vmul.f32 %v869, %v873
      %v879 = vmul.f32 %v870, %v873
      %v880 = vmul.f32 %v871, %v873
      %v881 = vmul.f32 %v872, %v873
      %v882 = vadd.f32 %v874, 0.0
      %v883 = vadd.f32 %v875, 0.0
      %v884 = vadd.f32 %v876, 0.0
      %v885 = vadd.f32 %v877, 0.0
      %v886 = vadd.f32 %v878, 0.0
      %v887 = vadd.f32 %v879, 0.0
      %v888 = vadd.f32 %v880, 0.0
      %v889 = vadd.f32 %v881, 0.0
      %v890 = vld [vmem:[%s528 + $0x1] sm:$0xff]
      %v891 = vld [vmem:[%s528 + $0x11] sm:$0xff]
      %v892 = vld [vmem:[%s528 + $0x21] sm:$0xff]
      %v893 = vld [vmem:[%s528 + $0x31] sm:$0xff]
      %v894 = vld [vmem:[%s528 + $0x41] sm:$0xff]
      %v895 = vld [vmem:[%s528 + $0x51] sm:$0xff]
      %v896 = vld [vmem:[%s528 + $0x61] sm:$0xff]
      %v897 = vld [vmem:[%s528 + $0x71] sm:$0xff]
      %v898 = vperm.slane %v459, 1
      %v899 = vmul.f32 %v890, %v898
      %v900 = vmul.f32 %v891, %v898
      %v901 = vmul.f32 %v892, %v898
      %v902 = vmul.f32 %v893, %v898
      %v903 = vmul.f32 %v894, %v898
      %v904 = vmul.f32 %v895, %v898
      %v905 = vmul.f32 %v896, %v898
      %v906 = vmul.f32 %v897, %v898
      %v907 = vadd.f32 %v882, %v899
      %v908 = vadd.f32 %v883, %v900
      %v909 = vadd.f32 %v884, %v901
      %v910 = vadd.f32 %v885, %v902
      %v911 = vadd.f32 %v886, %v903
      %v912 = vadd.f32 %v887, %v904
      %v913 = vadd.f32 %v888, %v905
      %v914 = vadd.f32 %v889, %v906
      %s915 = scalar_lea.vmem %s354, 32
      %v916 = vld [vmem:[%s915] sm:$0xff]
      %v917 = vld [vmem:[%s915 + $0x10] sm:$0xff]
      %v918 = vld [vmem:[%s915 + $0x20] sm:$0xff]
      %v919 = vld [vmem:[%s915 + $0x30] sm:$0xff]
      %v920 = vld [vmem:[%s915 + $0x40] sm:$0xff]
      %v921 = vld [vmem:[%s915 + $0x50] sm:$0xff]
      %v922 = vld [vmem:[%s915 + $0x60] sm:$0xff]
      %v923 = vld [vmem:[%s915 + $0x70] sm:$0xff]
      %v924 = vperm.slane %v459, 2
      %v925 = vmul.f32 %v916, %v924
      %v926 = vmul.f32 %v917, %v924
      %v927 = vmul.f32 %v918, %v924
      %v928 = vmul.f32 %v919, %v924
      %v929 = vmul.f32 %v920, %v924
      %v930 = vmul.f32 %v921, %v924
      %v931 = vmul.f32 %v922, %v924
      %v932 = vmul.f32 %v923, %v924
      %v933 = vadd.f32 %v907, %v925
      %v934 = vadd.f32 %v908, %v926
      %v935 = vadd.f32 %v909, %v927
      %v936 = vadd.f32 %v910, %v928
      %v937 = vadd.f32 %v911, %v929
      %v938 = vadd.f32 %v912, %v930
      %v939 = vadd.f32 %v913, %v931
      %v940 = vadd.f32 %v914, %v932
      %v941 = vld [vmem:[%s915 + $0x1] sm:$0xff]
      %v942 = vld [vmem:[%s915 + $0x11] sm:$0xff]
      %v943 = vld [vmem:[%s915 + $0x21] sm:$0xff]
      %v944 = vld [vmem:[%s915 + $0x31] sm:$0xff]
      %v945 = vld [vmem:[%s915 + $0x41] sm:$0xff]
      %v946 = vld [vmem:[%s915 + $0x51] sm:$0xff]
      %v947 = vld [vmem:[%s915 + $0x61] sm:$0xff]
      %v948 = vld [vmem:[%s915 + $0x71] sm:$0xff]
      %v949 = vperm.slane %v459, 3
      %v950 = vmul.f32 %v941, %v949
      %v951 = vmul.f32 %v942, %v949
      %v952 = vmul.f32 %v943, %v949
      %v953 = vmul.f32 %v944, %v949
      %v954 = vmul.f32 %v945, %v949
      %v955 = vmul.f32 %v946, %v949
      %v956 = vmul.f32 %v947, %v949
      %v957 = vmul.f32 %v948, %v949
      %v958 = vadd.f32 %v933, %v950
      %v959 = vadd.f32 %v934, %v951
      %v960 = vadd.f32 %v935, %v952
      %v961 = vadd.f32 %v936, %v953
      %v962 = vadd.f32 %v937, %v954
      %v963 = vadd.f32 %v938, %v955
      %v964 = vadd.f32 %v939, %v956
      %v965 = vadd.f32 %v940, %v957
      %v966 = vpack.c.bf16 %v959, %v958
      %v967 = vpack.c.bf16 %v961, %v960
      %v968 = vpack.c.bf16 %v963, %v962
      %v969 = vpack.c.bf16 %v965, %v964
      %970 = vmatpush.bf16.msra.mxu0 %v622
      %971 = vmatpush.bf16.msra.mxu0 %v621
      %972 = vmatpush.bf16.msra.mxu0 %v620
      %973 = vmatpush.bf16.msra.mxu0 %v619
      %974 = vmatpush.bf16.msra.mxu0 %v618
      %975 = vmatpush.bf16.msra.mxu0 %v617
      %976 = vmatpush.bf16.msra.mxu0 %v616
      %977 = vmatpush.bf16.msra.mxu0 %v615
      %978 = vmatmul.bf16.gmra.mxu0 %v966
      %v979 = vpop.f32.mrf.mxu0
      %v980 = vadd.f32 0.0, %v979
      %v981 = vpop.f32.mrf.mxu0
      %v982 = vadd.f32 0.0, %v981
      %983 = vmatmul.bf16.gmra.mxu0 %v967
      %v984 = vpop.f32.mrf.mxu0
      %v985 = vadd.f32 0.0, %v984
      %v986 = vpop.f32.mrf.mxu0
      %v987 = vadd.f32 0.0, %v986
      %988 = vmatmul.bf16.gmra.mxu0 %v968
      %v989 = vpop.f32.mrf.mxu0
      %v990 = vadd.f32 0.0, %v989
      %v991 = vpop.f32.mrf.mxu0
      %v992 = vadd.f32 0.0, %v991
      %993 = vmatmul.bf16.gmra.mxu0 %v969
      %v994 = vpop.f32.mrf.mxu0
      %v995 = vadd.f32 0.0, %v994
      %v996 = vpop.f32.mrf.mxu0
      %v997 = vadd.f32 0.0, %v996
      %998 = vdwg.mxu0
      %v999 = vmul.f32 %v980, %v661
      %v1000 = vmul.f32 %v982, %v661
      %v1001 = vmul.f32 %v985, %v661
      %v1002 = vmul.f32 %v987, %v661
      %v1003 = vmul.f32 %v990, %v661
      %v1004 = vmul.f32 %v992, %v661
      %v1005 = vmul.f32 %v995, %v661
      %v1006 = vmul.f32 %v997, %v661
      %v1007 = vadd.f32 %v999, %v672
      %v1008 = vadd.f32 %v1000, %v672
      %v1009 = vadd.f32 %v1001, %v672
      %v1010 = vadd.f32 %v1002, %v672
      %v1011 = vadd.f32 %v1003, %v672
      %v1012 = vadd.f32 %v1004, %v672
      %v1013 = vadd.f32 %v1005, %v672
      %v1014 = vadd.f32 %v1006, %v672
      %v1015 = vmax.f32 %v1007, 0.0
      %v1016 = vmax.f32 %v1008, 0.0
      %v1017 = vmax.f32 %v1009, 0.0
      %v1018 = vmax.f32 %v1010, 0.0
      %v1019 = vmax.f32 %v1011, 0.0
      %v1020 = vmax.f32 %v1012, 0.0
      %v1021 = vmax.f32 %v1013, 0.0
      %v1022 = vmax.f32 %v1014, 0.0
      %s1023 = scalar_lea.vmem [#allocation2], 336
      %1024 = vst [vmem:[%s1023 + $0x1] sm:$0xff] %v1015
      %1025 = vst [vmem:[%s1023 + $0x11] sm:$0xff] %v1016
      %1026 = vst [vmem:[%s1023 + $0x21] sm:$0xff] %v1017
      %1027 = vst [vmem:[%s1023 + $0x31] sm:$0xff] %v1018
      %1028 = vst [vmem:[%s1023 + $0x41] sm:$0xff] %v1019
      %1029 = vst [vmem:[%s1023 + $0x51] sm:$0xff] %v1020
      %1030 = vst [vmem:[%s1023 + $0x61] sm:$0xff] %v1021
      %1031 = vst [vmem:[%s1023 + $0x71] sm:$0xff] %v1022
      %v1032 = vld [vmem:[%s528 + $0x1] sm:$0xff]
      %v1033 = vld [vmem:[%s528 + $0x11] sm:$0xff]
      %v1034 = vld [vmem:[%s528 + $0x21] sm:$0xff]
      %v1035 = vld [vmem:[%s528 + $0x31] sm:$0xff]
      %v1036 = vld [vmem:[%s528 + $0x41] sm:$0xff]
      %v1037 = vld [vmem:[%s528 + $0x51] sm:$0xff]
      %v1038 = vld [vmem:[%s528 + $0x61] sm:$0xff]
      %v1039 = vld [vmem:[%s528 + $0x71] sm:$0xff]
      %v1040 = vperm.slane %v459, 4
      %v1041 = vmul.f32 %v1032, %v1040
      %v1042 = vmul.f32 %v1033, %v1040
      %v1043 = vmul.f32 %v1034, %v1040
      %v1044 = vmul.f32 %v1035, %v1040
      %v1045 = vmul.f32 %v1036, %v1040
      %v1046 = vmul.f32 %v1037, %v1040
      %v1047 = vmul.f32 %v1038, %v1040
      %v1048 = vmul.f32 %v1039, %v1040
      %v1049 = vadd.f32 %v1041, 0.0
      %v1050 = vadd.f32 %v1042, 0.0
      %v1051 = vadd.f32 %v1043, 0.0
      %v1052 = vadd.f32 %v1044, 0.0
      %v1053 = vadd.f32 %v1045, 0.0
      %v1054 = vadd.f32 %v1046, 0.0
      %v1055 = vadd.f32 %v1047, 0.0
      %v1056 = vadd.f32 %v1048, 0.0
      %v1057 = vld [vmem:[%s528 + $0x2] sm:$0xff]
      %v1058 = vld [vmem:[%s528 + $0x12] sm:$0xff]
      %v1059 = vld [vmem:[%s528 + $0x22] sm:$0xff]
      %v1060 = vld [vmem:[%s528 + $0x32] sm:$0xff]
      %v1061 = vld [vmem:[%s528 + $0x42] sm:$0xff]
      %v1062 = vld [vmem:[%s528 + $0x52] sm:$0xff]
      %v1063 = vld [vmem:[%s528 + $0x62] sm:$0xff]
      %v1064 = vld [vmem:[%s528 + $0x72] sm:$0xff]
      %v1065 = vperm.slane %v459, 5
      %v1066 = vmul.f32 %v1057, %v1065
      %v1067 = vmul.f32 %v1058, %v1065
      %v1068 = vmul.f32 %v1059, %v1065
      %v1069 = vmul.f32 %v1060, %v1065
      %v1070 = vmul.f32 %v1061, %v1065
      %v1071 = vmul.f32 %v1062, %v1065
      %v1072 = vmul.f32 %v1063, %v1065
      %v1073 = vmul.f32 %v1064, %v1065
      %v1074 = vadd.f32 %v1049, %v1066
      %v1075 = vadd.f32 %v1050, %v1067
      %v1076 = vadd.f32 %v1051, %v1068
      %v1077 = vadd.f32 %v1052, %v1069
      %v1078 = vadd.f32 %v1053, %v1070
      %v1079 = vadd.f32 %v1054, %v1071
      %v1080 = vadd.f32 %v1055, %v1072
      %v1081 = vadd.f32 %v1056, %v1073
      %v1082 = vld [vmem:[%s915 + $0x1] sm:$0xff]
      %v1083 = vld [vmem:[%s915 + $0x11] sm:$0xff]
      %v1084 = vld [vmem:[%s915 + $0x21] sm:$0xff]
      %v1085 = vld [vmem:[%s915 + $0x31] sm:$0xff]
      %v1086 = vld [vmem:[%s915 + $0x41] sm:$0xff]
      %v1087 = vld [vmem:[%s915 + $0x51] sm:$0xff]
      %v1088 = vld [vmem:[%s915 + $0x61] sm:$0xff]
      %v1089 = vld [vmem:[%s915 + $0x71] sm:$0xff]
      %v1090 = vperm.slane %v459, 6
      %v1091 = vmul.f32 %v1082, %v1090
      %v1092 = vmul.f32 %v1083, %v1090
      %v1093 = vmul.f32 %v1084, %v1090
      %v1094 = vmul.f32 %v1085, %v1090
      %v1095 = vmul.f32 %v1086, %v1090
      %v1096 = vmul.f32 %v1087, %v1090
      %v1097 = vmul.f32 %v1088, %v1090
      %v1098 = vmul.f32 %v1089, %v1090
      %v1099 = vadd.f32 %v1074, %v1091
      %v1100 = vadd.f32 %v1075, %v1092
      %v1101 = vadd.f32 %v1076, %v1093
      %v1102 = vadd.f32 %v1077, %v1094
      %v1103 = vadd.f32 %v1078, %v1095
      %v1104 = vadd.f32 %v1079, %v1096
      %v1105 = vadd.f32 %v1080, %v1097
      %v1106 = vadd.f32 %v1081, %v1098
      %v1107 = vld [vmem:[%s915 + $0x2] sm:$0xff]
      %v1108 = vld [vmem:[%s915 + $0x12] sm:$0xff]
      %v1109 = vld [vmem:[%s915 + $0x22] sm:$0xff]
      %v1110 = vld [vmem:[%s915 + $0x32] sm:$0xff]
      %v1111 = vld [vmem:[%s915 + $0x42] sm:$0xff]
      %v1112 = vld [vmem:[%s915 + $0x52] sm:$0xff]
      %v1113 = vld [vmem:[%s915 + $0x62] sm:$0xff]
      %v1114 = vld [vmem:[%s915 + $0x72] sm:$0xff]
      %v1115 = vperm.slane %v459, 7
      %v1116 = vmul.f32 %v1107, %v1115
      %v1117 = vmul.f32 %v1108, %v1115
      %v1118 = vmul.f32 %v1109, %v1115
      %v1119 = vmul.f32 %v1110, %v1115
      %v1120 = vmul.f32 %v1111, %v1115
      %v1121 = vmul.f32 %v1112, %v1115
      %v1122 = vmul.f32 %v1113, %v1115
      %v1123 = vmul.f32 %v1114, %v1115
      %v1124 = vadd.f32 %v1099, %v1116
      %v1125 = vadd.f32 %v1100, %v1117
      %v1126 = vadd.f32 %v1101, %v1118
      %v1127 = vadd.f32 %v1102, %v1119
      %v1128 = vadd.f32 %v1103, %v1120
      %v1129 = vadd.f32 %v1104, %v1121
      %v1130 = vadd.f32 %v1105, %v1122
      %v1131 = vadd.f32 %v1106, %v1123
      %v1132 = vpack.c.bf16 %v1125, %v1124
      %v1133 = vpack.c.bf16 %v1127, %v1126
      %v1134 = vpack.c.bf16 %v1129, %v1128
      %v1135 = vpack.c.bf16 %v1131, %v1130
      %1136 = vmatpush.bf16.msra.mxu0 %v622
      %1137 = vmatpush.bf16.msra.mxu0 %v621
      %1138 = vmatpush.bf16.msra.mxu0 %v620
      %1139 = vmatpush.bf16.msra.mxu0 %v619
      %1140 = vmatpush.bf16.msra.mxu0 %v618
      %1141 = vmatpush.bf16.msra.mxu0 %v617
      %1142 = vmatpush.bf16.msra.mxu0 %v616
      %1143 = vmatpush.bf16.msra.mxu0 %v615
      %1144 = vmatmul.bf16.gmra.mxu0 %v1132
      %v1145 = vpop.f32.mrf.mxu0
      %v1146 = vadd.f32 0.0, %v1145
      %v1147 = vpop.f32.mrf.mxu0
      %v1148 = vadd.f32 0.0, %v1147
      %1149 = vmatmul.bf16.gmra.mxu0 %v1133
      %v1150 = vpop.f32.mrf.mxu0
      %v1151 = vadd.f32 0.0, %v1150
      %v1152 = vpop.f32.mrf.mxu0
      %v1153 = vadd.f32 0.0, %v1152
      %1154 = vmatmul.bf16.gmra.mxu0 %v1134
      %v1155 = vpop.f32.mrf.mxu0
      %v1156 = vadd.f32 0.0, %v1155
      %v1157 = vpop.f32.mrf.mxu0
      %v1158 = vadd.f32 0.0, %v1157
      %1159 = vmatmul.bf16.gmra.mxu0 %v1135
      %v1160 = vpop.f32.mrf.mxu0
      %v1161 = vadd.f32 0.0, %v1160
      %v1162 = vpop.f32.mrf.mxu0
      %v1163 = vadd.f32 0.0, %v1162
      %1164 = vdwg.mxu0
      %v1165 = vmul.f32 %v1146, %v661
      %v1166 = vmul.f32 %v1148, %v661
      %v1167 = vmul.f32 %v1151, %v661
      %v1168 = vmul.f32 %v1153, %v661
      %v1169 = vmul.f32 %v1156, %v661
      %v1170 = vmul.f32 %v1158, %v661
      %v1171 = vmul.f32 %v1161, %v661
      %v1172 = vmul.f32 %v1163, %v661
      %v1173 = vadd.f32 %v1165, %v672
      %v1174 = vadd.f32 %v1166, %v672
      %v1175 = vadd.f32 %v1167, %v672
      %v1176 = vadd.f32 %v1168, %v672
      %v1177 = vadd.f32 %v1169, %v672
      %v1178 = vadd.f32 %v1170, %v672
      %v1179 = vadd.f32 %v1171, %v672
      %v1180 = vadd.f32 %v1172, %v672
      %v1181 = vmax.f32 %v1173, 0.0
      %v1182 = vmax.f32 %v1174, 0.0
      %v1183 = vmax.f32 %v1175, 0.0
      %v1184 = vmax.f32 %v1176, 0.0
      %v1185 = vmax.f32 %v1177, 0.0
      %v1186 = vmax.f32 %v1178, 0.0
      %v1187 = vmax.f32 %v1179, 0.0
      %v1188 = vmax.f32 %v1180, 0.0
      %s1189 = scalar_lea.vmem [#allocation2], 496
      %1190 = vst [vmem:[%s1189 + $0x1] sm:$0xff] %v1181
      %1191 = vst [vmem:[%s1189 + $0x11] sm:$0xff] %v1182
      %1192 = vst [vmem:[%s1189 + $0x21] sm:$0xff] %v1183
      %1193 = vst [vmem:[%s1189 + $0x31] sm:$0xff] %v1184
      %1194 = vst [vmem:[%s1189 + $0x41] sm:$0xff] %v1185
      %1195 = vst [vmem:[%s1189 + $0x51] sm:$0xff] %v1186
      %1196 = vst [vmem:[%s1189 + $0x61] sm:$0xff] %v1187
      %1197 = vst [vmem:[%s1189 + $0x71] sm:$0xff] %v1188
      %v1198 = vld [vmem:[%s6] sm:$0x1]
      %v1199 = vld [vmem:[%s7] sm:$0x1]
      %v1200 = vld [vmem:[%s8] sm:$0x3]
      %v1201 = vld [vmem:[%s9] sm:$0x7]
      %s1202 = scalar_lea.vmem [#allocation2], 480
      %v1203 = vld [vmem:[%s1202] sm:$0xff]
      %v1204 = vld [vmem:[%s1202 + $0x10] sm:$0xff]
      %v1205 = vld [vmem:[%s1202 + $0x20] sm:$0xff]
      %v1206 = vld [vmem:[%s1202 + $0x30] sm:$0xff]
      %v1207 = vld [vmem:[%s1202 + $0x40] sm:$0xff]
      %v1208 = vld [vmem:[%s1202 + $0x50] sm:$0xff]
      %v1209 = vld [vmem:[%s1202 + $0x60] sm:$0xff]
      %v1210 = vld [vmem:[%s1202 + $0x70] sm:$0xff]
      %s1211 = scalar_lea.vmem [#allocation2], 320
      %v1212 = vld [vmem:[%s1211 + $0x1] sm:$0xff]
      %v1213 = vld [vmem:[%s1211 + $0x11] sm:$0xff]
      %v1214 = vld [vmem:[%s1211 + $0x21] sm:$0xff]
      %v1215 = vld [vmem:[%s1211 + $0x31] sm:$0xff]
      %v1216 = vld [vmem:[%s1211 + $0x41] sm:$0xff]
      %v1217 = vld [vmem:[%s1211 + $0x51] sm:$0xff]
      %v1218 = vld [vmem:[%s1211 + $0x61] sm:$0xff]
      %v1219 = vld [vmem:[%s1211 + $0x71] sm:$0xff]
      %v1220 = vld [vmem:[%s1202 + $0x1] sm:$0xff]
      %v1221 = vld [vmem:[%s1202 + $0x11] sm:$0xff]
      %v1222 = vld [vmem:[%s1202 + $0x21] sm:$0xff]
      %v1223 = vld [vmem:[%s1202 + $0x31] sm:$0xff]
      %v1224 = vld [vmem:[%s1202 + $0x41] sm:$0xff]
      %v1225 = vld [vmem:[%s1202 + $0x51] sm:$0xff]
      %v1226 = vld [vmem:[%s1202 + $0x61] sm:$0xff]
      %v1227 = vld [vmem:[%s1202 + $0x71] sm:$0xff]
      %v1228 = vpack.c.bf16 %v1204, %v1203
      %v1229 = vpack.c.bf16 %v1213, %v1212
      %v1230 = vpack.c.bf16 %v1221, %v1220
      %v1231 = vpack.c.bf16 %v1206, %v1205
      %v1232 = vpack.c.bf16 %v1215, %v1214
      %v1233 = vpack.c.bf16 %v1223, %v1222
      %v1234 = vpack.c.bf16 %v1208, %v1207
      %v1235 = vpack.c.bf16 %v1217, %v1216
      %v1236 = vpack.c.bf16 %v1225, %v1224
      %v1237 = vpack.c.bf16 %v1210, %v1209
      %v1238 = vpack.c.bf16 %v1219, %v1218
      %v1239 = vpack.c.bf16 %v1227, %v1226
      %v1240 = vld [vmem:[%s5] sm:$0xf]
      %v1241 = vld [vmem:[%s5 + $0x4] sm:$0xf]
      %v1242 = vld [vmem:[%s5 + $0x8] sm:$0xf]
      %v1243 = vld [vmem:[%s5 + $0xc] sm:$0xf]
      %v1244 = vld [vmem:[%s5 + $0x10] sm:$0xf]
      %v1245 = vld [vmem:[%s5 + $0x14] sm:$0xf]
      %v1246 = vld [vmem:[%s5 + $0x18] sm:$0xf]
      %v1247 = vld [vmem:[%s5 + $0x1c] sm:$0xf]
      %v1248 = vld [vmem:[%s5 + $0x20] sm:$0xf]
      %v1249 = vld [vmem:[%s5 + $0x24] sm:$0xf]
      %v1250 = vld [vmem:[%s5 + $0x28] sm:$0xf]
      %v1251 = vld [vmem:[%s5 + $0x2c] sm:$0xf]
      %v1252 = vld [vmem:[%s5 + $0x30] sm:$0xf]
      %v1253 = vld [vmem:[%s5 + $0x34] sm:$0xf]
      %v1254 = vld [vmem:[%s5 + $0x38] sm:$0xf]
      %v1255 = vld [vmem:[%s5 + $0x3c] sm:$0xf]
      %v1256 = vld [vmem:[%s5 + $0x40] sm:$0xf]
      %v1257 = vld [vmem:[%s5 + $0x44] sm:$0xf]
      %v1258 = vld [vmem:[%s5 + $0x48] sm:$0xf]
      %v1259 = vld [vmem:[%s5 + $0x4c] sm:$0xf]
      %v1260 = vld [vmem:[%s5 + $0x50] sm:$0xf]
      %v1261 = vld [vmem:[%s5 + $0x54] sm:$0xf]
      %v1262 = vld [vmem:[%s5 + $0x58] sm:$0xf]
      %v1263 = vld [vmem:[%s5 + $0x5c] sm:$0xf]
      %v1264 = vld [vmem:[%s5 + $0x60] sm:$0xf]
      %v1265 = vld [vmem:[%s5 + $0x64] sm:$0xf]
      %v1266 = vld [vmem:[%s5 + $0x68] sm:$0xf]
      %v1267 = vld [vmem:[%s5 + $0x6c] sm:$0xf]
      %v1268 = vld [vmem:[%s5 + $0x70] sm:$0xf]
      %v1269 = vld [vmem:[%s5 + $0x74] sm:$0xf]
      %v1270 = vld [vmem:[%s5 + $0x78] sm:$0xf]
      %v1271 = vld [vmem:[%s5 + $0x7c] sm:$0xf]
      %v1272 = vld [vmem:[%s5 + $0x80] sm:$0xf]
      %v1273 = vld [vmem:[%s5 + $0x84] sm:$0xf]
      %v1274 = vld [vmem:[%s5 + $0x88] sm:$0xf]
      %v1275 = vld [vmem:[%s5 + $0x8c] sm:$0xf]
      %v1276 = vld [vmem:[%s5 + $0x90] sm:$0xf]
      %v1277 = vld [vmem:[%s5 + $0x94] sm:$0xf]
      %v1278 = vld [vmem:[%s5 + $0x98] sm:$0xf]
      %v1279 = vld [vmem:[%s5 + $0x9c] sm:$0xf]
      %v1280 = vld [vmem:[%s5 + $0xa0] sm:$0xf]
      %v1281 = vld [vmem:[%s5 + $0xa4] sm:$0xf]
      %v1282 = vld [vmem:[%s5 + $0xa8] sm:$0xf]
      %v1283 = vld [vmem:[%s5 + $0xac] sm:$0xf]
      %v1284 = vld [vmem:[%s5 + $0xb0] sm:$0xf]
      %v1285 = vld [vmem:[%s5 + $0xb4] sm:$0xf]
      %v1286 = vld [vmem:[%s5 + $0xb8] sm:$0xf]
      %v1287 = vld [vmem:[%s5 + $0xbc] sm:$0xf]
      %v1288 = vld [vmem:[%s856] sm:$0xff]
      %v1289 = vld [vmem:[%s856 + $0x10] sm:$0xff]
      %v1290 = vld [vmem:[%s856 + $0x20] sm:$0xff]
      %v1291 = vld [vmem:[%s856 + $0x30] sm:$0xff]
      %v1292 = vld [vmem:[%s856 + $0x40] sm:$0xff]
      %v1293 = vld [vmem:[%s856 + $0x50] sm:$0xff]
      %v1294 = vld [vmem:[%s856 + $0x60] sm:$0xff]
      %v1295 = vld [vmem:[%s856 + $0x70] sm:$0xff]
      %v1296 = vld [vmem:[%s690 + $0x1] sm:$0xff]
      %v1297 = vld [vmem:[%s690 + $0x11] sm:$0xff]
      %v1298 = vld [vmem:[%s690 + $0x21] sm:$0xff]
      %v1299 = vld [vmem:[%s690 + $0x31] sm:$0xff]
      %v1300 = vld [vmem:[%s690 + $0x41] sm:$0xff]
      %v1301 = vld [vmem:[%s690 + $0x51] sm:$0xff]
      %v1302 = vld [vmem:[%s690 + $0x61] sm:$0xff]
      %v1303 = vld [vmem:[%s690 + $0x71] sm:$0xff]
      %v1304 = vld [vmem:[%s856 + $0x1] sm:$0xff]
      %v1305 = vld [vmem:[%s856 + $0x11] sm:$0xff]
      %v1306 = vld [vmem:[%s856 + $0x21] sm:$0xff]
      %v1307 = vld [vmem:[%s856 + $0x31] sm:$0xff]
      %v1308 = vld [vmem:[%s856 + $0x41] sm:$0xff]
      %v1309 = vld [vmem:[%s856 + $0x51] sm:$0xff]
      %v1310 = vld [vmem:[%s856 + $0x61] sm:$0xff]
      %v1311 = vld [vmem:[%s856 + $0x71] sm:$0xff]
      %v1312 = vpack.c.bf16 %v1289, %v1288
      %v1313 = vpack.c.bf16 %v1297, %v1296
      %v1314 = vpack.c.bf16 %v1305, %v1304
      %v1315 = vpack.c.bf16 %v1291, %v1290
      %v1316 = vpack.c.bf16 %v1299, %v1298
      %v1317 = vpack.c.bf16 %v1307, %v1306
      %v1318 = vpack.c.bf16 %v1293, %v1292
      %v1319 = vpack.c.bf16 %v1301, %v1300
      %v1320 = vpack.c.bf16 %v1309, %v1308
      %v1321 = vpack.c.bf16 %v1295, %v1294
      %v1322 = vpack.c.bf16 %v1303, %v1302
      %v1323 = vpack.c.bf16 %v1311, %v1310
      %s1324 = scalar_lea.vmem %s5, 192
      %v1325 = vld [vmem:[%s1324] sm:$0xf]
      %v1326 = vld [vmem:[%s1324 + $0x4] sm:$0xf]
      %v1327 = vld [vmem:[%s1324 + $0x8] sm:$0xf]
      %v1328 = vld [vmem:[%s1324 + $0xc] sm:$0xf]
      %v1329 = vld [vmem:[%s1324 + $0x10] sm:$0xf]
      %v1330 = vld [vmem:[%s1324 + $0x14] sm:$0xf]
      %v1331 = vld [vmem:[%s1324 + $0x18] sm:$0xf]
      %v1332 = vld [vmem:[%s1324 + $0x1c] sm:$0xf]
      %v1333 = vld [vmem:[%s1324 + $0x20] sm:$0xf]
      %v1334 = vld [vmem:[%s1324 + $0x24] sm:$0xf]
      %v1335 = vld [vmem:[%s1324 + $0x28] sm:$0xf]
      %v1336 = vld [vmem:[%s1324 + $0x2c] sm:$0xf]
      %v1337 = vld [vmem:[%s1324 + $0x30] sm:$0xf]
      %v1338 = vld [vmem:[%s1324 + $0x34] sm:$0xf]
      %v1339 = vld [vmem:[%s1324 + $0x38] sm:$0xf]
      %v1340 = vld [vmem:[%s1324 + $0x3c] sm:$0xf]
      %v1341 = vld [vmem:[%s1324 + $0x40] sm:$0xf]
      %v1342 = vld [vmem:[%s1324 + $0x44] sm:$0xf]
      %v1343 = vld [vmem:[%s1324 + $0x48] sm:$0xf]
      %v1344 = vld [vmem:[%s1324 + $0x4c] sm:$0xf]
      %v1345 = vld [vmem:[%s1324 + $0x50] sm:$0xf]
      %v1346 = vld [vmem:[%s1324 + $0x54] sm:$0xf]
      %v1347 = vld [vmem:[%s1324 + $0x58] sm:$0xf]
      %v1348 = vld [vmem:[%s1324 + $0x5c] sm:$0xf]
      %v1349 = vld [vmem:[%s1324 + $0x60] sm:$0xf]
      %v1350 = vld [vmem:[%s1324 + $0x64] sm:$0xf]
      %v1351 = vld [vmem:[%s1324 + $0x68] sm:$0xf]
      %v1352 = vld [vmem:[%s1324 + $0x6c] sm:$0xf]
      %v1353 = vld [vmem:[%s1324 + $0x70] sm:$0xf]
      %v1354 = vld [vmem:[%s1324 + $0x74] sm:$0xf]
      %v1355 = vld [vmem:[%s1324 + $0x78] sm:$0xf]
      %v1356 = vld [vmem:[%s1324 + $0x7c] sm:$0xf]
      %v1357 = vld [vmem:[%s1324 + $0x80] sm:$0xf]
      %v1358 = vld [vmem:[%s1324 + $0x84] sm:$0xf]
      %v1359 = vld [vmem:[%s1324 + $0x88] sm:$0xf]
      %v1360 = vld [vmem:[%s1324 + $0x8c] sm:$0xf]
      %v1361 = vld [vmem:[%s1324 + $0x90] sm:$0xf]
      %v1362 = vld [vmem:[%s1324 + $0x94] sm:$0xf]
      %v1363 = vld [vmem:[%s1324 + $0x98] sm:$0xf]
      %v1364 = vld [vmem:[%s1324 + $0x9c] sm:$0xf]
      %v1365 = vld [vmem:[%s1324 + $0xa0] sm:$0xf]
      %v1366 = vld [vmem:[%s1324 + $0xa4] sm:$0xf]
      %v1367 = vld [vmem:[%s1324 + $0xa8] sm:$0xf]
      %v1368 = vld [vmem:[%s1324 + $0xac] sm:$0xf]
      %v1369 = vld [vmem:[%s1324 + $0xb0] sm:$0xf]
      %v1370 = vld [vmem:[%s1324 + $0xb4] sm:$0xf]
      %v1371 = vld [vmem:[%s1324 + $0xb8] sm:$0xf]
      %v1372 = vld [vmem:[%s1324 + $0xbc] sm:$0xf]
      %v1421 = vunpack.c.l.b16 %v1325
      %v1422 = vunpack.c.l.b16 %v1326
      %v1423 = vunpack.c.l.b16 %v1327
      %v1424 = vunpack.c.l.b16 %v1328
      %v1425 = vunpack.c.l.b16 %v1329
      %v1426 = vunpack.c.l.b16 %v1330
      %v1427 = vunpack.c.l.b16 %v1331
      %v1428 = vunpack.c.l.b16 %v1332
      %v1429 = vunpack.c.l.b16 %v1333
      %v1430 = vunpack.c.l.b16 %v1334
      %v1431 = vunpack.c.l.b16 %v1335
      %v1432 = vunpack.c.l.b16 %v1336
      %v1433 = vunpack.c.l.b16 %v1337
      %v1434 = vunpack.c.l.b16 %v1338
      %v1435 = vunpack.c.l.b16 %v1339
      %v1436 = vunpack.c.l.b16 %v1340
      %v1437 = vunpack.c.l.b16 %v1341
      %v1438 = vunpack.c.l.b16 %v1342
      %v1439 = vunpack.c.l.b16 %v1343
      %v1440 = vunpack.c.l.b16 %v1344
      %v1441 = vunpack.c.l.b16 %v1345
      %v1442 = vunpack.c.l.b16 %v1346
      %v1443 = vunpack.c.l.b16 %v1347
      %v1444 = vunpack.c.l.b16 %v1348
      %v1445 = vunpack.c.l.b16 %v1349
      %v1446 = vunpack.c.l.b16 %v1350
      %v1447 = vunpack.c.l.b16 %v1351
      %v1448 = vunpack.c.l.b16 %v1352
      %v1449 = vunpack.c.l.b16 %v1353
      %v1450 = vunpack.c.l.b16 %v1354
      %v1451 = vunpack.c.l.b16 %v1355
      %v1452 = vunpack.c.l.b16 %v1356
      %v1453 = vunpack.c.l.b16 %v1357
      %v1454 = vunpack.c.l.b16 %v1358
      %v1455 = vunpack.c.l.b16 %v1359
      %v1456 = vunpack.c.l.b16 %v1360
      %v1457 = vunpack.c.l.b16 %v1361
      %v1458 = vunpack.c.l.b16 %v1362
      %v1459 = vunpack.c.l.b16 %v1363
      %v1460 = vunpack.c.l.b16 %v1364
      %v1461 = vunpack.c.l.b16 %v1365
      %v1462 = vunpack.c.l.b16 %v1366
      %v1463 = vunpack.c.l.b16 %v1367
      %v1464 = vunpack.c.l.b16 %v1368
      %v1465 = vunpack.c.l.b16 %v1369
      %v1466 = vunpack.c.l.b16 %v1370
      %v1467 = vunpack.c.l.b16 %v1371
      %v1468 = vunpack.c.l.b16 %v1372
      %v1469 = vpack.c.b16 %v1422, %v1421
      %v1470 = vpack.c.b16 %v1424, %v1423
      %v1471 = vpack.c.b16 %v1426, %v1425
      %v1472 = vpack.c.b16 %v1428, %v1427
      %v1473 = vpack.c.b16 %v1430, %v1429
      %v1474 = vpack.c.b16 %v1432, %v1431
      %v1475 = vpack.c.b16 %v1434, %v1433
      %v1476 = vpack.c.b16 %v1436, %v1435
      %v1477 = vpack.c.b16 %v1438, %v1437
      %v1478 = vpack.c.b16 %v1440, %v1439
      %v1479 = vpack.c.b16 %v1442, %v1441
      %v1480 = vpack.c.b16 %v1444, %v1443
      %v1481 = vpack.c.b16 %v1446, %v1445
      %v1482 = vpack.c.b16 %v1448, %v1447
      %v1483 = vpack.c.b16 %v1450, %v1449
      %v1484 = vpack.c.b16 %v1452, %v1451
      %v1485 = vpack.c.b16 %v1454, %v1453
      %v1486 = vpack.c.b16 %v1456, %v1455
      %v1487 = vpack.c.b16 %v1458, %v1457
      %v1488 = vpack.c.b16 %v1460, %v1459
      %v1489 = vpack.c.b16 %v1462, %v1461
      %v1490 = vpack.c.b16 %v1464, %v1463
      %v1491 = vpack.c.b16 %v1466, %v1465
      %v1492 = vpack.c.b16 %v1468, %v1467
      %1517 = vmatpush.bf16.msra.mxu0 %v1476
      %1518 = vmatpush.bf16.msra.mxu0 %v1475
      %1519 = vmatpush.bf16.msra.mxu0 %v1474
      %1520 = vmatpush.bf16.msra.mxu0 %v1473
      %1521 = vmatpush.bf16.msra.mxu0 %v1472
      %1522 = vmatpush.bf16.msra.mxu0 %v1471
      %1523 = vmatpush.bf16.msra.mxu0 %v1470
      %1524 = vmatpush.bf16.msra.mxu0 %v1469
      %1525 = vmatmul.bf16.gmra.mxu0 %v1312
      %v1526 = vpop.f32.mrf.mxu0
      %v1527 = vadd.f32 0.0, %v1526
      %v1528 = vpop.f32.mrf.mxu0
      %v1529 = vadd.f32 0.0, %v1528
      %1530 = vmatmul.bf16.gmra.mxu0 %v1315
      %v1531 = vpop.f32.mrf.mxu0
      %v1532 = vadd.f32 0.0, %v1531
      %v1533 = vpop.f32.mrf.mxu0
      %v1534 = vadd.f32 0.0, %v1533
      %1535 = vmatmul.bf16.gmra.mxu0 %v1318
      %v1536 = vpop.f32.mrf.mxu0
      %v1537 = vadd.f32 0.0, %v1536
      %v1538 = vpop.f32.mrf.mxu0
      %v1539 = vadd.f32 0.0, %v1538
      %1540 = vmatmul.bf16.gmra.mxu0 %v1321
      %v1541 = vpop.f32.mrf.mxu0
      %v1542 = vadd.f32 0.0, %v1541
      %v1543 = vpop.f32.mrf.mxu0
      %v1544 = vadd.f32 0.0, %v1543
      %1545 = vdwg.mxu0
      %1546 = vmatpush.bf16.msra.mxu0 %v1484
      %1547 = vmatpush.bf16.msra.mxu0 %v1483
      %1548 = vmatpush.bf16.msra.mxu0 %v1482
      %1549 = vmatpush.bf16.msra.mxu0 %v1481
      %1550 = vmatpush.bf16.msra.mxu0 %v1480
      %1551 = vmatpush.bf16.msra.mxu0 %v1479
      %1552 = vmatpush.bf16.msra.mxu0 %v1478
      %1553 = vmatpush.bf16.msra.mxu0 %v1477
      %1554 = vmatmul.bf16.gmra.mxu0 %v1313
      %v1555 = vpop.f32.mrf.mxu0
      %v1556 = vadd.f32 %v1527, %v1555
      %v1557 = vpop.f32.mrf.mxu0
      %v1558 = vadd.f32 %v1529, %v1557
      %1559 = vmatmul.bf16.gmra.mxu0 %v1316
      %v1560 = vpop.f32.mrf.mxu0
      %v1561 = vadd.f32 %v1532, %v1560
      %v1562 = vpop.f32.mrf.mxu0
      %v1563 = vadd.f32 %v1534, %v1562
      %1564 = vmatmul.bf16.gmra.mxu0 %v1319
      %v1565 = vpop.f32.mrf.mxu0
      %v1566 = vadd.f32 %v1537, %v1565
      %v1567 = vpop.f32.mrf.mxu0
      %v1568 = vadd.f32 %v1539, %v1567
      %1569 = vmatmul.bf16.gmra.mxu0 %v1322
      %v1570 = vpop.f32.mrf.mxu0
      %v1571 = vadd.f32 %v1542, %v1570
      %v1572 = vpop.f32.mrf.mxu0
      %v1573 = vadd.f32 %v1544, %v1572
      %1574 = vdwg.mxu0
      %1575 = vmatpush.bf16.msra.mxu0 %v1492
      %1576 = vmatpush.bf16.msra.mxu0 %v1491
      %1577 = vmatpush.bf16.msra.mxu0 %v1490
      %1578 = vmatpush.bf16.msra.mxu0 %v1489
      %1579 = vmatpush.bf16.msra.mxu0 %v1488
      %1580 = vmatpush.bf16.msra.mxu0 %v1487
      %1581 = vmatpush.bf16.msra.mxu0 %v1486
      %1582 = vmatpush.bf16.msra.mxu0 %v1485
      %1583 = vmatmul.bf16.gmra.mxu0 %v1314
      %v1584 = vpop.f32.mrf.mxu0
      %v1585 = vadd.f32 %v1556, %v1584
      %v1586 = vpop.f32.mrf.mxu0
      %v1587 = vadd.f32 %v1558, %v1586
      %1588 = vmatmul.bf16.gmra.mxu0 %v1317
      %v1589 = vpop.f32.mrf.mxu0
      %v1590 = vadd.f32 %v1561, %v1589
      %v1591 = vpop.f32.mrf.mxu0
      %v1592 = vadd.f32 %v1563, %v1591
      %1593 = vmatmul.bf16.gmra.mxu0 %v1320
      %v1594 = vpop.f32.mrf.mxu0
      %v1595 = vadd.f32 %v1566, %v1594
      %v1596 = vpop.f32.mrf.mxu0
      %v1597 = vadd.f32 %v1568, %v1596
      %1598 = vmatmul.bf16.gmra.mxu0 %v1323
      %v1599 = vpop.f32.mrf.mxu0
      %v1600 = vadd.f32 %v1571, %v1599
      %v1601 = vpop.f32.mrf.mxu0
      %v1602 = vadd.f32 %v1573, %v1601
      %1603 = vdwg.mxu0
      %v1652 = vunpack.c.l.b16 %v1240
      %v1653 = vunpack.c.l.b16 %v1241
      %v1654 = vunpack.c.l.b16 %v1242
      %v1655 = vunpack.c.l.b16 %v1243
      %v1656 = vunpack.c.l.b16 %v1244
      %v1657 = vunpack.c.l.b16 %v1245
      %v1658 = vunpack.c.l.b16 %v1246
      %v1659 = vunpack.c.l.b16 %v1247
      %v1660 = vunpack.c.l.b16 %v1248
      %v1661 = vunpack.c.l.b16 %v1249
      %v1662 = vunpack.c.l.b16 %v1250
      %v1663 = vunpack.c.l.b16 %v1251
      %v1664 = vunpack.c.l.b16 %v1252
      %v1665 = vunpack.c.l.b16 %v1253
      %v1666 = vunpack.c.l.b16 %v1254
      %v1667 = vunpack.c.l.b16 %v1255
      %v1668 = vunpack.c.l.b16 %v1256
      %v1669 = vunpack.c.l.b16 %v1257
      %v1670 = vunpack.c.l.b16 %v1258
      %v1671 = vunpack.c.l.b16 %v1259
      %v1672 = vunpack.c.l.b16 %v1260
      %v1673 = vunpack.c.l.b16 %v1261
      %v1674 = vunpack.c.l.b16 %v1262
      %v1675 = vunpack.c.l.b16 %v1263
      %v1676 = vunpack.c.l.b16 %v1264
      %v1677 = vunpack.c.l.b16 %v1265
      %v1678 = vunpack.c.l.b16 %v1266
      %v1679 = vunpack.c.l.b16 %v1267
      %v1680 = vunpack.c.l.b16 %v1268
      %v1681 = vunpack.c.l.b16 %v1269
      %v1682 = vunpack.c.l.b16 %v1270
      %v1683 = vunpack.c.l.b16 %v1271
      %v1684 = vunpack.c.l.b16 %v1272
      %v1685 = vunpack.c.l.b16 %v1273
      %v1686 = vunpack.c.l.b16 %v1274
      %v1687 = vunpack.c.l.b16 %v1275
      %v1688 = vunpack.c.l.b16 %v1276
      %v1689 = vunpack.c.l.b16 %v1277
      %v1690 = vunpack.c.l.b16 %v1278
      %v1691 = vunpack.c.l.b16 %v1279
      %v1692 = vunpack.c.l.b16 %v1280
      %v1693 = vunpack.c.l.b16 %v1281
      %v1694 = vunpack.c.l.b16 %v1282
      %v1695 = vunpack.c.l.b16 %v1283
      %v1696 = vunpack.c.l.b16 %v1284
      %v1697 = vunpack.c.l.b16 %v1285
      %v1698 = vunpack.c.l.b16 %v1286
      %v1699 = vunpack.c.l.b16 %v1287
      %v1700 = vpack.c.b16 %v1653, %v1652
      %v1701 = vpack.c.b16 %v1655, %v1654
      %v1702 = vpack.c.b16 %v1657, %v1656
      %v1703 = vpack.c.b16 %v1659, %v1658
      %v1704 = vpack.c.b16 %v1661, %v1660
      %v1705 = vpack.c.b16 %v1663, %v1662
      %v1706 = vpack.c.b16 %v1665, %v1664
      %v1707 = vpack.c.b16 %v1667, %v1666
      %v1708 = vpack.c.b16 %v1669, %v1668
      %v1709 = vpack.c.b16 %v1671, %v1670
      %v1710 = vpack.c.b16 %v1673, %v1672
      %v1711 = vpack.c.b16 %v1675, %v1674
      %v1712 = vpack.c.b16 %v1677, %v1676
      %v1713 = vpack.c.b16 %v1679, %v1678
      %v1714 = vpack.c.b16 %v1681, %v1680
      %v1715 = vpack.c.b16 %v1683, %v1682
      %v1716 = vpack.c.b16 %v1685, %v1684
      %v1717 = vpack.c.b16 %v1687, %v1686
      %v1718 = vpack.c.b16 %v1689, %v1688
      %v1719 = vpack.c.b16 %v1691, %v1690
      %v1720 = vpack.c.b16 %v1693, %v1692
      %v1721 = vpack.c.b16 %v1695, %v1694
      %v1722 = vpack.c.b16 %v1697, %v1696
      %v1723 = vpack.c.b16 %v1699, %v1698
      %1748 = vmatpush.bf16.msra.mxu0 %v1707
      %1749 = vmatpush.bf16.msra.mxu0 %v1706
      %1750 = vmatpush.bf16.msra.mxu0 %v1705
      %1751 = vmatpush.bf16.msra.mxu0 %v1704
      %1752 = vmatpush.bf16.msra.mxu0 %v1703
      %1753 = vmatpush.bf16.msra.mxu0 %v1702
      %1754 = vmatpush.bf16.msra.mxu0 %v1701
      %1755 = vmatpush.bf16.msra.mxu0 %v1700
      %1756 = vmatmul.bf16.gmra.mxu0 %v1228
      %v1757 = vpop.f32.mrf.mxu0
      %v1758 = vadd.f32 %v1585, %v1757
      %v1759 = vpop.f32.mrf.mxu0
      %v1760 = vadd.f32 %v1587, %v1759
      %1761 = vmatmul.bf16.gmra.mxu0 %v1231
      %v1762 = vpop.f32.mrf.mxu0
      %v1763 = vadd.f32 %v1590, %v1762
      %v1764 = vpop.f32.mrf.mxu0
      %v1765 = vadd.f32 %v1592, %v1764
      %1766 = vmatmul.bf16.gmra.mxu0 %v1234
      %v1767 = vpop.f32.mrf.mxu0
      %v1768 = vadd.f32 %v1595, %v1767
      %v1769 = vpop.f32.mrf.mxu0
      %v1770 = vadd.f32 %v1597, %v1769
      %1771 = vmatmul.bf16.gmra.mxu0 %v1237
      %v1772 = vpop.f32.mrf.mxu0
      %v1773 = vadd.f32 %v1600, %v1772
      %v1774 = vpop.f32.mrf.mxu0
      %v1775 = vadd.f32 %v1602, %v1774
      %1776 = vdwg.mxu0
      %1777 = vmatpush.bf16.msra.mxu0 %v1715
      %1778 = vmatpush.bf16.msra.mxu0 %v1714
      %1779 = vmatpush.bf16.msra.mxu0 %v1713
      %1780 = vmatpush.bf16.msra.mxu0 %v1712
      %1781 = vmatpush.bf16.msra.mxu0 %v1711
      %1782 = vmatpush.bf16.msra.mxu0 %v1710
      %1783 = vmatpush.bf16.msra.mxu0 %v1709
      %1784 = vmatpush.bf16.msra.mxu0 %v1708
      %1785 = vmatmul.bf16.gmra.mxu0 %v1229
      %v1786 = vpop.f32.mrf.mxu0
      %v1787 = vadd.f32 %v1758, %v1786
      %v1788 = vpop.f32.mrf.mxu0
      %v1789 = vadd.f32 %v1760, %v1788
      %1790 = vmatmul.bf16.gmra.mxu0 %v1232
      %v1791 = vpop.f32.mrf.mxu0
      %v1792 = vadd.f32 %v1763, %v1791
      %v1793 = vpop.f32.mrf.mxu0
      %v1794 = vadd.f32 %v1765, %v1793
      %1795 = vmatmul.bf16.gmra.mxu0 %v1235
      %v1796 = vpop.f32.mrf.mxu0
      %v1797 = vadd.f32 %v1768, %v1796
      %v1798 = vpop.f32.mrf.mxu0
      %v1799 = vadd.f32 %v1770, %v1798
      %1800 = vmatmul.bf16.gmra.mxu0 %v1238
      %v1801 = vpop.f32.mrf.mxu0
      %v1802 = vadd.f32 %v1773, %v1801
      %v1803 = vpop.f32.mrf.mxu0
      %v1804 = vadd.f32 %v1775, %v1803
      %1805 = vdwg.mxu0
      %1806 = vmatpush.bf16.msra.mxu0 %v1723
      %1807 = vmatpush.bf16.msra.mxu0 %v1722
      %1808 = vmatpush.bf16.msra.mxu0 %v1721
      %1809 = vmatpush.bf16.msra.mxu0 %v1720
      %1810 = vmatpush.bf16.msra.mxu0 %v1719
      %1811 = vmatpush.bf16.msra.mxu0 %v1718
      %1812 = vmatpush.bf16.msra.mxu0 %v1717
      %1813 = vmatpush.bf16.msra.mxu0 %v1716
      %1814 = vmatmul.bf16.gmra.mxu0 %v1230
      %v1815 = vpop.f32.mrf.mxu0
      %v1816 = vadd.f32 %v1787, %v1815
      %v1817 = vpop.f32.mrf.mxu0
      %v1818 = vadd.f32 %v1789, %v1817
      %1819 = vmatmul.bf16.gmra.mxu0 %v1233
      %v1820 = vpop.f32.mrf.mxu0
      %v1821 = vadd.f32 %v1792, %v1820
      %v1822 = vpop.f32.mrf.mxu0
      %v1823 = vadd.f32 %v1794, %v1822
      %1824 = vmatmul.bf16.gmra.mxu0 %v1236
      %v1825 = vpop.f32.mrf.mxu0
      %v1826 = vadd.f32 %v1797, %v1825
      %v1827 = vpop.f32.mrf.mxu0
      %v1828 = vadd.f32 %v1799, %v1827
      %1829 = vmatmul.bf16.gmra.mxu0 %v1239
      %v1830 = vpop.f32.mrf.mxu0
      %v1831 = vadd.f32 %v1802, %v1830
      %v1832 = vpop.f32.mrf.mxu0
      %v1833 = vadd.f32 %v1804, %v1832
      %1834 = vdwg.mxu0
      %v1835 = vld [vmem:[%s1189] sm:$0xff]
      %v1836 = vld [vmem:[%s1189 + $0x10] sm:$0xff]
      %v1837 = vld [vmem:[%s1189 + $0x20] sm:$0xff]
      %v1838 = vld [vmem:[%s1189 + $0x30] sm:$0xff]
      %v1839 = vld [vmem:[%s1189 + $0x40] sm:$0xff]
      %v1840 = vld [vmem:[%s1189 + $0x50] sm:$0xff]
      %v1841 = vld [vmem:[%s1189 + $0x60] sm:$0xff]
      %v1842 = vld [vmem:[%s1189 + $0x70] sm:$0xff]
      %v1843 = vld [vmem:[%s1023 + $0x1] sm:$0xff]
      %v1844 = vld [vmem:[%s1023 + $0x11] sm:$0xff]
      %v1845 = vld [vmem:[%s1023 + $0x21] sm:$0xff]
      %v1846 = vld [vmem:[%s1023 + $0x31] sm:$0xff]
      %v1847 = vld [vmem:[%s1023 + $0x41] sm:$0xff]
      %v1848 = vld [vmem:[%s1023 + $0x51] sm:$0xff]
      %v1849 = vld [vmem:[%s1023 + $0x61] sm:$0xff]
      %v1850 = vld [vmem:[%s1023 + $0x71] sm:$0xff]
      %v1851 = vld [vmem:[%s1189 + $0x1] sm:$0xff]
      %v1852 = vld [vmem:[%s1189 + $0x11] sm:$0xff]
      %v1853 = vld [vmem:[%s1189 + $0x21] sm:$0xff]
      %v1854 = vld [vmem:[%s1189 + $0x31] sm:$0xff]
      %v1855 = vld [vmem:[%s1189 + $0x41] sm:$0xff]
      %v1856 = vld [vmem:[%s1189 + $0x51] sm:$0xff]
      %v1857 = vld [vmem:[%s1189 + $0x61] sm:$0xff]
      %v1858 = vld [vmem:[%s1189 + $0x71] sm:$0xff]
      %v1859 = vpack.c.bf16 %v1836, %v1835
      %v1860 = vpack.c.bf16 %v1844, %v1843
      %v1861 = vpack.c.bf16 %v1852, %v1851
      %v1862 = vpack.c.bf16 %v1838, %v1837
      %v1863 = vpack.c.bf16 %v1846, %v1845
      %v1864 = vpack.c.bf16 %v1854, %v1853
      %v1865 = vpack.c.bf16 %v1840, %v1839
      %v1866 = vpack.c.bf16 %v1848, %v1847
      %v1867 = vpack.c.bf16 %v1856, %v1855
      %v1868 = vpack.c.bf16 %v1842, %v1841
      %v1869 = vpack.c.bf16 %v1850, %v1849
      %v1870 = vpack.c.bf16 %v1858, %v1857
      %s1871 = scalar_lea.vmem %s5, 384
      %v1872 = vld [vmem:[%s1871] sm:$0xf]
      %v1873 = vld [vmem:[%s1871 + $0x4] sm:$0xf]
      %v1874 = vld [vmem:[%s1871 + $0x8] sm:$0xf]
      %v1875 = vld [vmem:[%s1871 + $0xc] sm:$0xf]
      %v1876 = vld [vmem:[%s1871 + $0x10] sm:$0xf]
      %v1877 = vld [vmem:[%s1871 + $0x14] sm:$0xf]
      %v1878 = vld [vmem:[%s1871 + $0x18] sm:$0xf]
      %v1879 = vld [vmem:[%s1871 + $0x1c] sm:$0xf]
      %v1880 = vld [vmem:[%s1871 + $0x20] sm:$0xf]
      %v1881 = vld [vmem:[%s1871 + $0x24] sm:$0xf]
      %v1882 = vld [vmem:[%s1871 + $0x28] sm:$0xf]
      %v1883 = vld [vmem:[%s1871 + $0x2c] sm:$0xf]
      %v1884 = vld [vmem:[%s1871 + $0x30] sm:$0xf]
      %v1885 = vld [vmem:[%s1871 + $0x34] sm:$0xf]
      %v1886 = vld [vmem:[%s1871 + $0x38] sm:$0xf]
      %v1887 = vld [vmem:[%s1871 + $0x3c] sm:$0xf]
      %v1888 = vld [vmem:[%s1871 + $0x40] sm:$0xf]
      %v1889 = vld [vmem:[%s1871 + $0x44] sm:$0xf]
      %v1890 = vld [vmem:[%s1871 + $0x48] sm:$0xf]
      %v1891 = vld [vmem:[%s1871 + $0x4c] sm:$0xf]
      %v1892 = vld [vmem:[%s1871 + $0x50] sm:$0xf]
      %v1893 = vld [vmem:[%s1871 + $0x54] sm:$0xf]
      %v1894 = vld [vmem:[%s1871 + $0x58] sm:$0xf]
      %v1895 = vld [vmem:[%s1871 + $0x5c] sm:$0xf]
      %v1896 = vld [vmem:[%s1871 + $0x60] sm:$0xf]
      %v1897 = vld [vmem:[%s1871 + $0x64] sm:$0xf]
      %v1898 = vld [vmem:[%s1871 + $0x68] sm:$0xf]
      %v1899 = vld [vmem:[%s1871 + $0x6c] sm:$0xf]
      %v1900 = vld [vmem:[%s1871 + $0x70] sm:$0xf]
      %v1901 = vld [vmem:[%s1871 + $0x74] sm:$0xf]
      %v1902 = vld [vmem:[%s1871 + $0x78] sm:$0xf]
      %v1903 = vld [vmem:[%s1871 + $0x7c] sm:$0xf]
      %v1904 = vld [vmem:[%s1871 + $0x80] sm:$0xf]
      %v1905 = vld [vmem:[%s1871 + $0x84] sm:$0xf]
      %v1906 = vld [vmem:[%s1871 + $0x88] sm:$0xf]
      %v1907 = vld [vmem:[%s1871 + $0x8c] sm:$0xf]
      %v1908 = vld [vmem:[%s1871 + $0x90] sm:$0xf]
      %v1909 = vld [vmem:[%s1871 + $0x94] sm:$0xf]
      %v1910 = vld [vmem:[%s1871 + $0x98] sm:$0xf]
      %v1911 = vld [vmem:[%s1871 + $0x9c] sm:$0xf]
      %v1912 = vld [vmem:[%s1871 + $0xa0] sm:$0xf]
      %v1913 = vld [vmem:[%s1871 + $0xa4] sm:$0xf]
      %v1914 = vld [vmem:[%s1871 + $0xa8] sm:$0xf]
      %v1915 = vld [vmem:[%s1871 + $0xac] sm:$0xf]
      %v1916 = vld [vmem:[%s1871 + $0xb0] sm:$0xf]
      %v1917 = vld [vmem:[%s1871 + $0xb4] sm:$0xf]
      %v1918 = vld [vmem:[%s1871 + $0xb8] sm:$0xf]
      %v1919 = vld [vmem:[%s1871 + $0xbc] sm:$0xf]
      %v1968 = vunpack.c.l.b16 %v1872
      %v1969 = vunpack.c.l.b16 %v1873
      %v1970 = vunpack.c.l.b16 %v1874
      %v1971 = vunpack.c.l.b16 %v1875
      %v1972 = vunpack.c.l.b16 %v1876
      %v1973 = vunpack.c.l.b16 %v1877
      %v1974 = vunpack.c.l.b16 %v1878
      %v1975 = vunpack.c.l.b16 %v1879
      %v1976 = vunpack.c.l.b16 %v1880
      %v1977 = vunpack.c.l.b16 %v1881
      %v1978 = vunpack.c.l.b16 %v1882
      %v1979 = vunpack.c.l.b16 %v1883
      %v1980 = vunpack.c.l.b16 %v1884
      %v1981 = vunpack.c.l.b16 %v1885
      %v1982 = vunpack.c.l.b16 %v1886
      %v1983 = vunpack.c.l.b16 %v1887
      %v1984 = vunpack.c.l.b16 %v1888
      %v1985 = vunpack.c.l.b16 %v1889
      %v1986 = vunpack.c.l.b16 %v1890
      %v1987 = vunpack.c.l.b16 %v1891
      %v1988 = vunpack.c.l.b16 %v1892
      %v1989 = vunpack.c.l.b16 %v1893
      %v1990 = vunpack.c.l.b16 %v1894
      %v1991 = vunpack.c.l.b16 %v1895
      %v1992 = vunpack.c.l.b16 %v1896
      %v1993 = vunpack.c.l.b16 %v1897
      %v1994 = vunpack.c.l.b16 %v1898
      %v1995 = vunpack.c.l.b16 %v1899
      %v1996 = vunpack.c.l.b16 %v1900
      %v1997 = vunpack.c.l.b16 %v1901
      %v1998 = vunpack.c.l.b16 %v1902
      %v1999 = vunpack.c.l.b16 %v1903
      %v2000 = vunpack.c.l.b16 %v1904
      %v2001 = vunpack.c.l.b16 %v1905
      %v2002 = vunpack.c.l.b16 %v1906
      %v2003 = vunpack.c.l.b16 %v1907
      %v2004 = vunpack.c.l.b16 %v1908
      %v2005 = vunpack.c.l.b16 %v1909
      %v2006 = vunpack.c.l.b16 %v1910
      %v2007 = vunpack.c.l.b16 %v1911
      %v2008 = vunpack.c.l.b16 %v1912
      %v2009 = vunpack.c.l.b16 %v1913
      %v2010 = vunpack.c.l.b16 %v1914
      %v2011 = vunpack.c.l.b16 %v1915
      %v2012 = vunpack.c.l.b16 %v1916
      %v2013 = vunpack.c.l.b16 %v1917
      %v2014 = vunpack.c.l.b16 %v1918
      %v2015 = vunpack.c.l.b16 %v1919
      %v2016 = vpack.c.b16 %v1969, %v1968
      %v2017 = vpack.c.b16 %v1971, %v1970
      %v2018 = vpack.c.b16 %v1973, %v1972
      %v2019 = vpack.c.b16 %v1975, %v1974
      %v2020 = vpack.c.b16 %v1977, %v1976
      %v2021 = vpack.c.b16 %v1979, %v1978
      %v2022 = vpack.c.b16 %v1981, %v1980
      %v2023 = vpack.c.b16 %v1983, %v1982
      %v2024 = vpack.c.b16 %v1985, %v1984
      %v2025 = vpack.c.b16 %v1987, %v1986
      %v2026 = vpack.c.b16 %v1989, %v1988
      %v2027 = vpack.c.b16 %v1991, %v1990
      %v2028 = vpack.c.b16 %v1993, %v1992
      %v2029 = vpack.c.b16 %v1995, %v1994
      %v2030 = vpack.c.b16 %v1997, %v1996
      %v2031 = vpack.c.b16 %v1999, %v1998
      %v2032 = vpack.c.b16 %v2001, %v2000
      %v2033 = vpack.c.b16 %v2003, %v2002
      %v2034 = vpack.c.b16 %v2005, %v2004
      %v2035 = vpack.c.b16 %v2007, %v2006
      %v2036 = vpack.c.b16 %v2009, %v2008
      %v2037 = vpack.c.b16 %v2011, %v2010
      %v2038 = vpack.c.b16 %v2013, %v2012
      %v2039 = vpack.c.b16 %v2015, %v2014
      %2064 = vmatpush.bf16.msra.mxu0 %v2023
      %2065 = vmatpush.bf16.msra.mxu0 %v2022
      %2066 = vmatpush.bf16.msra.mxu0 %v2021
      %2067 = vmatpush.bf16.msra.mxu0 %v2020
      %2068 = vmatpush.bf16.msra.mxu0 %v2019
      %2069 = vmatpush.bf16.msra.mxu0 %v2018
      %2070 = vmatpush.bf16.msra.mxu0 %v2017
      %2071 = vmatpush.bf16.msra.mxu0 %v2016
      %2072 = vmatmul.bf16.gmra.mxu0 %v1859
      %v2073 = vpop.f32.mrf.mxu0
      %v2074 = vadd.f32 0.0, %v2073
      %v2075 = vpop.f32.mrf.mxu0
      %v2076 = vadd.f32 0.0, %v2075
      %2077 = vmatmul.bf16.gmra.mxu0 %v1862
      %v2078 = vpop.f32.mrf.mxu0
      %v2079 = vadd.f32 0.0, %v2078
      %v2080 = vpop.f32.mrf.mxu0
      %v2081 = vadd.f32 0.0, %v2080
      %2082 = vmatmul.bf16.gmra.mxu0 %v1865
      %v2083 = vpop.f32.mrf.mxu0
      %v2084 = vadd.f32 0.0, %v2083
      %v2085 = vpop.f32.mrf.mxu0
      %v2086 = vadd.f32 0.0, %v2085
      %2087 = vmatmul.bf16.gmra.mxu0 %v1868
      %v2088 = vpop.f32.mrf.mxu0
      %v2089 = vadd.f32 0.0, %v2088
      %v2090 = vpop.f32.mrf.mxu0
      %v2091 = vadd.f32 0.0, %v2090
      %2092 = vdwg.mxu0
      %2093 = vmatpush.bf16.msra.mxu0 %v2031
      %2094 = vmatpush.bf16.msra.mxu0 %v2030
      %2095 = vmatpush.bf16.msra.mxu0 %v2029
      %2096 = vmatpush.bf16.msra.mxu0 %v2028
      %2097 = vmatpush.bf16.msra.mxu0 %v2027
      %2098 = vmatpush.bf16.msra.mxu0 %v2026
      %2099 = vmatpush.bf16.msra.mxu0 %v2025
      %2100 = vmatpush.bf16.msra.mxu0 %v2024
      %2101 = vmatmul.bf16.gmra.mxu0 %v1860
      %v2102 = vpop.f32.mrf.mxu0
      %v2103 = vadd.f32 %v2074, %v2102
      %v2104 = vpop.f32.mrf.mxu0
      %v2105 = vadd.f32 %v2076, %v2104
      %2106 = vmatmul.bf16.gmra.mxu0 %v1863
      %v2107 = vpop.f32.mrf.mxu0
      %v2108 = vadd.f32 %v2079, %v2107
      %v2109 = vpop.f32.mrf.mxu0
      %v2110 = vadd.f32 %v2081, %v2109
      %2111 = vmatmul.bf16.gmra.mxu0 %v1866
      %v2112 = vpop.f32.mrf.mxu0
      %v2113 = vadd.f32 %v2084, %v2112
      %v2114 = vpop.f32.mrf.mxu0
      %v2115 = vadd.f32 %v2086, %v2114
      %2116 = vmatmul.bf16.gmra.mxu0 %v1869
      %v2117 = vpop.f32.mrf.mxu0
      %v2118 = vadd.f32 %v2089, %v2117
      %v2119 = vpop.f32.mrf.mxu0
      %v2120 = vadd.f32 %v2091, %v2119
      %2121 = vdwg.mxu0
      %2122 = vmatpush.bf16.msra.mxu0 %v2039
      %2123 = vmatpush.bf16.msra.mxu0 %v2038
      %2124 = vmatpush.bf16.msra.mxu0 %v2037
      %2125 = vmatpush.bf16.msra.mxu0 %v2036
      %2126 = vmatpush.bf16.msra.mxu0 %v2035
      %2127 = vmatpush.bf16.msra.mxu0 %v2034
      %2128 = vmatpush.bf16.msra.mxu0 %v2033
      %2129 = vmatpush.bf16.msra.mxu0 %v2032
      %2130 = vmatmul.bf16.gmra.mxu0 %v1861
      %v2131 = vpop.f32.mrf.mxu0
      %v2132 = vadd.f32 %v2103, %v2131
      %v2133 = vpop.f32.mrf.mxu0
      %v2134 = vadd.f32 %v2105, %v2133
      %2135 = vmatmul.bf16.gmra.mxu0 %v1864
      %v2136 = vpop.f32.mrf.mxu0
      %v2137 = vadd.f32 %v2108, %v2136
      %v2138 = vpop.f32.mrf.mxu0
      %v2139 = vadd.f32 %v2110, %v2138
      %2140 = vmatmul.bf16.gmra.mxu0 %v1867
      %v2141 = vpop.f32.mrf.mxu0
      %v2142 = vadd.f32 %v2113, %v2141
      %v2143 = vpop.f32.mrf.mxu0
      %v2144 = vadd.f32 %v2115, %v2143
      %2145 = vmatmul.bf16.gmra.mxu0 %v1870
      %v2146 = vpop.f32.mrf.mxu0
      %v2147 = vadd.f32 %v2118, %v2146
      %v2148 = vpop.f32.mrf.mxu0
      %v2149 = vadd.f32 %v2120, %v2148
      %2150 = vdwg.mxu0
      %v2151 = vadd.f32 %v1816, %v2132
      %v2152 = vadd.f32 %v1818, %v2134
      %v2153 = vadd.f32 %v1821, %v2137
      %v2154 = vadd.f32 %v1823, %v2139
      %v2155 = vadd.f32 %v1826, %v2142
      %v2156 = vadd.f32 %v1828, %v2144
      %v2157 = vadd.f32 %v1831, %v2147
      %v2158 = vadd.f32 %v1833, %v2149
      %v2160 = vperm.slane %v1198, 0
      %v2162 = vmul.f32 %v2151, %v2160
      %v2163 = vmul.f32 %v2152, %v2160
      %v2164 = vmul.f32 %v2153, %v2160
      %v2165 = vmul.f32 %v2154, %v2160
      %v2166 = vmul.f32 %v2155, %v2160
      %v2167 = vmul.f32 %v2156, %v2160
      %v2168 = vmul.f32 %v2157, %v2160
      %v2169 = vmul.f32 %v2158, %v2160
      %v2171 = vperm.slane %v1199, 0
      %v2173 = vadd.f32 %v2162, %v2171
      %v2174 = vadd.f32 %v2163, %v2171
      %v2175 = vadd.f32 %v2164, %v2171
      %v2176 = vadd.f32 %v2165, %v2171
      %v2177 = vadd.f32 %v2166, %v2171
      %v2178 = vadd.f32 %v2167, %v2171
      %v2179 = vadd.f32 %v2168, %v2171
      %v2180 = vadd.f32 %v2169, %v2171
      %v2181 = vmax.f32 %v2173, 0.0
      %v2182 = vmax.f32 %v2174, 0.0
      %v2183 = vmax.f32 %v2175, 0.0
      %v2184 = vmax.f32 %v2176, 0.0
      %v2185 = vmax.f32 %v2177, 0.0
      %v2186 = vmax.f32 %v2178, 0.0
      %v2187 = vmax.f32 %v2179, 0.0
      %v2188 = vmax.f32 %v2180, 0.0
      %v2189 = vpack.c.bf16 %v2182, %v2181
      %v2190 = vpack.c.bf16 %v2184, %v2183
      %v2191 = vpack.c.bf16 %v2186, %v2185
      %v2192 = vpack.c.bf16 %v2188, %v2187
      %2194 = vset.pattern.permute.xlu0 0
      %2195 = vperm.xlu0 %2194, %v1201
      %v2196 = vpop.permute.xlu0 %2195
      %vm2198 = vcmask 523264
      %v2200 = vsel %vm2198, %v1200, 0
      %v2203 = vsel %vm2198, %v2189, 0
      %v2206 = vsel %vm2198, %v2190, 0
      %v2209 = vsel %vm2198, %v2191, 0
      %v2212 = vsel %vm2198, %v2192, 0
      %2214 = vmatpush.bf16.xpose.msra.mxu0 0
      %2215 = vmatpush.bf16.xpose.msra.mxu0 0
      %2216 = vmatpush.bf16.xpose.msra.mxu0 0
      %2217 = vmatpush.bf16.xpose.msra.mxu0 0
      %2218 = vmatpush.bf16.xpose.msra.mxu0 %v2212
      %2219 = vmatpush.bf16.xpose.msra.mxu0 %v2209
      %2220 = vmatpush.bf16.xpose.msra.mxu0 %v2206
      %2221 = vmatpush.bf16.xpose.msra.mxu0 %v2203
      %2222 = vmatmul.bf16.gmra.mxu0 %v2200
      %v2223 = vpop.f32.mrf.mxu0
      %v2224 = vadd.f32 %v2196, %v2223
      %v2225 = vpop.f32.mrf.mxu0
      %2226 = vdwg.mxu0
      %vm2227 = vcmask 518144
      %2228 = vst.msk [vmem:[%s359] sm:$0x7] %vm2227, %v2224
      %v2229 = vld [vmem:[%s1211 + $0x1] sm:$0xff]
      %v2230 = vld [vmem:[%s1211 + $0x11] sm:$0xff]
      %v2231 = vld [vmem:[%s1211 + $0x21] sm:$0xff]
      %v2232 = vld [vmem:[%s1211 + $0x31] sm:$0xff]
      %v2233 = vld [vmem:[%s1211 + $0x41] sm:$0xff]
      %v2234 = vld [vmem:[%s1211 + $0x51] sm:$0xff]
      %v2235 = vld [vmem:[%s1211 + $0x61] sm:$0xff]
      %v2236 = vld [vmem:[%s1211 + $0x71] sm:$0xff]
      %v2237 = vld [vmem:[%s1202 + $0x1] sm:$0xff]
      %v2238 = vld [vmem:[%s1202 + $0x11] sm:$0xff]
      %v2239 = vld [vmem:[%s1202 + $0x21] sm:$0xff]
      %v2240 = vld [vmem:[%s1202 + $0x31] sm:$0xff]
      %v2241 = vld [vmem:[%s1202 + $0x41] sm:$0xff]
      %v2242 = vld [vmem:[%s1202 + $0x51] sm:$0xff]
      %v2243 = vld [vmem:[%s1202 + $0x61] sm:$0xff]
      %v2244 = vld [vmem:[%s1202 + $0x71] sm:$0xff]
      %v2245 = vld [vmem:[%s1211 + $0x2] sm:$0xff]
      %v2246 = vld [vmem:[%s1211 + $0x12] sm:$0xff]
      %v2247 = vld [vmem:[%s1211 + $0x22] sm:$0xff]
      %v2248 = vld [vmem:[%s1211 + $0x32] sm:$0xff]
      %v2249 = vld [vmem:[%s1211 + $0x42] sm:$0xff]
      %v2250 = vld [vmem:[%s1211 + $0x52] sm:$0xff]
      %v2251 = vld [vmem:[%s1211 + $0x62] sm:$0xff]
      %v2252 = vld [vmem:[%s1211 + $0x72] sm:$0xff]
      %v2253 = vpack.c.bf16 %v2230, %v2229
      %v2254 = vpack.c.bf16 %v2238, %v2237
      %v2255 = vpack.c.bf16 %v2246, %v2245
      %v2256 = vpack.c.bf16 %v2232, %v2231
      %v2257 = vpack.c.bf16 %v2240, %v2239
      %v2258 = vpack.c.bf16 %v2248, %v2247
      %v2259 = vpack.c.bf16 %v2234, %v2233
      %v2260 = vpack.c.bf16 %v2242, %v2241
      %v2261 = vpack.c.bf16 %v2250, %v2249
      %v2262 = vpack.c.bf16 %v2236, %v2235
      %v2263 = vpack.c.bf16 %v2244, %v2243
      %v2264 = vpack.c.bf16 %v2252, %v2251
      %v2265 = vld [vmem:[%s5] sm:$0xf]
      %v2266 = vld [vmem:[%s5 + $0x4] sm:$0xf]
      %v2267 = vld [vmem:[%s5 + $0x8] sm:$0xf]
      %v2268 = vld [vmem:[%s5 + $0xc] sm:$0xf]
      %v2269 = vld [vmem:[%s5 + $0x10] sm:$0xf]
      %v2270 = vld [vmem:[%s5 + $0x14] sm:$0xf]
      %v2271 = vld [vmem:[%s5 + $0x18] sm:$0xf]
      %v2272 = vld [vmem:[%s5 + $0x1c] sm:$0xf]
      %v2273 = vld [vmem:[%s5 + $0x20] sm:$0xf]
      %v2274 = vld [vmem:[%s5 + $0x24] sm:$0xf]
      %v2275 = vld [vmem:[%s5 + $0x28] sm:$0xf]
      %v2276 = vld [vmem:[%s5 + $0x2c] sm:$0xf]
      %v2277 = vld [vmem:[%s5 + $0x30] sm:$0xf]
      %v2278 = vld [vmem:[%s5 + $0x34] sm:$0xf]
      %v2279 = vld [vmem:[%s5 + $0x38] sm:$0xf]
      %v2280 = vld [vmem:[%s5 + $0x3c] sm:$0xf]
      %v2281 = vld [vmem:[%s5 + $0x40] sm:$0xf]
      %v2282 = vld [vmem:[%s5 + $0x44] sm:$0xf]
      %v2283 = vld [vmem:[%s5 + $0x48] sm:$0xf]
      %v2284 = vld [vmem:[%s5 + $0x4c] sm:$0xf]
      %v2285 = vld [vmem:[%s5 + $0x50] sm:$0xf]
      %v2286 = vld [vmem:[%s5 + $0x54] sm:$0xf]
      %v2287 = vld [vmem:[%s5 + $0x58] sm:$0xf]
      %v2288 = vld [vmem:[%s5 + $0x5c] sm:$0xf]
      %v2289 = vld [vmem:[%s5 + $0x60] sm:$0xf]
      %v2290 = vld [vmem:[%s5 + $0x64] sm:$0xf]
      %v2291 = vld [vmem:[%s5 + $0x68] sm:$0xf]
      %v2292 = vld [vmem:[%s5 + $0x6c] sm:$0xf]
      %v2293 = vld [vmem:[%s5 + $0x70] sm:$0xf]
      %v2294 = vld [vmem:[%s5 + $0x74] sm:$0xf]
      %v2295 = vld [vmem:[%s5 + $0x78] sm:$0xf]
      %v2296 = vld [vmem:[%s5 + $0x7c] sm:$0xf]
      %v2297 = vld [vmem:[%s5 + $0x80] sm:$0xf]
      %v2298 = vld [vmem:[%s5 + $0x84] sm:$0xf]
      %v2299 = vld [vmem:[%s5 + $0x88] sm:$0xf]
      %v2300 = vld [vmem:[%s5 + $0x8c] sm:$0xf]
      %v2301 = vld [vmem:[%s5 + $0x90] sm:$0xf]
      %v2302 = vld [vmem:[%s5 + $0x94] sm:$0xf]
      %v2303 = vld [vmem:[%s5 + $0x98] sm:$0xf]
      %v2304 = vld [vmem:[%s5 + $0x9c] sm:$0xf]
      %v2305 = vld [vmem:[%s5 + $0xa0] sm:$0xf]
      %v2306 = vld [vmem:[%s5 + $0xa4] sm:$0xf]
      %v2307 = vld [vmem:[%s5 + $0xa8] sm:$0xf]
      %v2308 = vld [vmem:[%s5 + $0xac] sm:$0xf]
      %v2309 = vld [vmem:[%s5 + $0xb0] sm:$0xf]
      %v2310 = vld [vmem:[%s5 + $0xb4] sm:$0xf]
      %v2311 = vld [vmem:[%s5 + $0xb8] sm:$0xf]
      %v2312 = vld [vmem:[%s5 + $0xbc] sm:$0xf]
      %v2313 = vld [vmem:[%s690 + $0x1] sm:$0xff]
      %v2314 = vld [vmem:[%s690 + $0x11] sm:$0xff]
      %v2315 = vld [vmem:[%s690 + $0x21] sm:$0xff]
      %v2316 = vld [vmem:[%s690 + $0x31] sm:$0xff]
      %v2317 = vld [vmem:[%s690 + $0x41] sm:$0xff]
      %v2318 = vld [vmem:[%s690 + $0x51] sm:$0xff]
      %v2319 = vld [vmem:[%s690 + $0x61] sm:$0xff]
      %v2320 = vld [vmem:[%s690 + $0x71] sm:$0xff]
      %v2321 = vld [vmem:[%s856 + $0x1] sm:$0xff]
      %v2322 = vld [vmem:[%s856 + $0x11] sm:$0xff]
      %v2323 = vld [vmem:[%s856 + $0x21] sm:$0xff]
      %v2324 = vld [vmem:[%s856 + $0x31] sm:$0xff]
      %v2325 = vld [vmem:[%s856 + $0x41] sm:$0xff]
      %v2326 = vld [vmem:[%s856 + $0x51] sm:$0xff]
      %v2327 = vld [vmem:[%s856 + $0x61] sm:$0xff]
      %v2328 = vld [vmem:[%s856 + $0x71] sm:$0xff]
      %v2329 = vld [vmem:[%s690 + $0x2] sm:$0xff]
      %v2330 = vld [vmem:[%s690 + $0x12] sm:$0xff]
      %v2331 = vld [vmem:[%s690 + $0x22] sm:$0xff]
      %v2332 = vld [vmem:[%s690 + $0x32] sm:$0xff]
      %v2333 = vld [vmem:[%s690 + $0x42] sm:$0xff]
      %v2334 = vld [vmem:[%s690 + $0x52] sm:$0xff]
      %v2335 = vld [vmem:[%s690 + $0x62] sm:$0xff]
      %v2336 = vld [vmem:[%s690 + $0x72] sm:$0xff]
      %v2337 = vpack.c.bf16 %v2314, %v2313
      %v2338 = vpack.c.bf16 %v2322, %v2321
      %v2339 = vpack.c.bf16 %v2330, %v2329
      %v2340 = vpack.c.bf16 %v2316, %v2315
      %v2341 = vpack.c.bf16 %v2324, %v2323
      %v2342 = vpack.c.bf16 %v2332, %v2331
      %v2343 = vpack.c.bf16 %v2318, %v2317
      %v2344 = vpack.c.bf16 %v2326, %v2325
      %v2345 = vpack.c.bf16 %v2334, %v2333
      %v2346 = vpack.c.bf16 %v2320, %v2319
      %v2347 = vpack.c.bf16 %v2328, %v2327
      %v2348 = vpack.c.bf16 %v2336, %v2335
      %v2349 = vld [vmem:[%s1324] sm:$0xf]
      %v2350 = vld [vmem:[%s1324 + $0x4] sm:$0xf]
      %v2351 = vld [vmem:[%s1324 + $0x8] sm:$0xf]
      %v2352 = vld [vmem:[%s1324 + $0xc] sm:$0xf]
      %v2353 = vld [vmem:[%s1324 + $0x10] sm:$0xf]
      %v2354 = vld [vmem:[%s1324 + $0x14] sm:$0xf]
      %v2355 = vld [vmem:[%s1324 + $0x18] sm:$0xf]
      %v2356 = vld [vmem:[%s1324 + $0x1c] sm:$0xf]
      %v2357 = vld [vmem:[%s1324 + $0x20] sm:$0xf]
      %v2358 = vld [vmem:[%s1324 + $0x24] sm:$0xf]
      %v2359 = vld [vmem:[%s1324 + $0x28] sm:$0xf]
      %v2360 = vld [vmem:[%s1324 + $0x2c] sm:$0xf]
      %v2361 = vld [vmem:[%s1324 + $0x30] sm:$0xf]
      %v2362 = vld [vmem:[%s1324 + $0x34] sm:$0xf]
      %v2363 = vld [vmem:[%s1324 + $0x38] sm:$0xf]
      %v2364 = vld [vmem:[%s1324 + $0x3c] sm:$0xf]
      %v2365 = vld [vmem:[%s1324 + $0x40] sm:$0xf]
      %v2366 = vld [vmem:[%s1324 + $0x44] sm:$0xf]
      %v2367 = vld [vmem:[%s1324 + $0x48] sm:$0xf]
      %v2368 = vld [vmem:[%s1324 + $0x4c] sm:$0xf]
      %v2369 = vld [vmem:[%s1324 + $0x50] sm:$0xf]
      %v2370 = vld [vmem:[%s1324 + $0x54] sm:$0xf]
      %v2371 = vld [vmem:[%s1324 + $0x58] sm:$0xf]
      %v2372 = vld [vmem:[%s1324 + $0x5c] sm:$0xf]
      %v2373 = vld [vmem:[%s1324 + $0x60] sm:$0xf]
      %v2374 = vld [vmem:[%s1324 + $0x64] sm:$0xf]
      %v2375 = vld [vmem:[%s1324 + $0x68] sm:$0xf]
      %v2376 = vld [vmem:[%s1324 + $0x6c] sm:$0xf]
      %v2377 = vld [vmem:[%s1324 + $0x70] sm:$0xf]
      %v2378 = vld [vmem:[%s1324 + $0x74] sm:$0xf]
      %v2379 = vld [vmem:[%s1324 + $0x78] sm:$0xf]
      %v2380 = vld [vmem:[%s1324 + $0x7c] sm:$0xf]
      %v2381 = vld [vmem:[%s1324 + $0x80] sm:$0xf]
      %v2382 = vld [vmem:[%s1324 + $0x84] sm:$0xf]
      %v2383 = vld [vmem:[%s1324 + $0x88] sm:$0xf]
      %v2384 = vld [vmem:[%s1324 + $0x8c] sm:$0xf]
      %v2385 = vld [vmem:[%s1324 + $0x90] sm:$0xf]
      %v2386 = vld [vmem:[%s1324 + $0x94] sm:$0xf]
      %v2387 = vld [vmem:[%s1324 + $0x98] sm:$0xf]
      %v2388 = vld [vmem:[%s1324 + $0x9c] sm:$0xf]
      %v2389 = vld [vmem:[%s1324 + $0xa0] sm:$0xf]
      %v2390 = vld [vmem:[%s1324 + $0xa4] sm:$0xf]
      %v2391 = vld [vmem:[%s1324 + $0xa8] sm:$0xf]
      %v2392 = vld [vmem:[%s1324 + $0xac] sm:$0xf]
      %v2393 = vld [vmem:[%s1324 + $0xb0] sm:$0xf]
      %v2394 = vld [vmem:[%s1324 + $0xb4] sm:$0xf]
      %v2395 = vld [vmem:[%s1324 + $0xb8] sm:$0xf]
      %v2396 = vld [vmem:[%s1324 + $0xbc] sm:$0xf]
      %v2445 = vunpack.c.l.b16 %v2349
      %v2446 = vunpack.c.l.b16 %v2350
      %v2447 = vunpack.c.l.b16 %v2351
      %v2448 = vunpack.c.l.b16 %v2352
      %v2449 = vunpack.c.l.b16 %v2353
      %v2450 = vunpack.c.l.b16 %v2354
      %v2451 = vunpack.c.l.b16 %v2355
      %v2452 = vunpack.c.l.b16 %v2356
      %v2453 = vunpack.c.l.b16 %v2357
      %v2454 = vunpack.c.l.b16 %v2358
      %v2455 = vunpack.c.l.b16 %v2359
      %v2456 = vunpack.c.l.b16 %v2360
      %v2457 = vunpack.c.l.b16 %v2361
      %v2458 = vunpack.c.l.b16 %v2362
      %v2459 = vunpack.c.l.b16 %v2363
      %v2460 = vunpack.c.l.b16 %v2364
      %v2461 = vunpack.c.l.b16 %v2365
      %v2462 = vunpack.c.l.b16 %v2366
      %v2463 = vunpack.c.l.b16 %v2367
      %v2464 = vunpack.c.l.b16 %v2368
      %v2465 = vunpack.c.l.b16 %v2369
      %v2466 = vunpack.c.l.b16 %v2370
      %v2467 = vunpack.c.l.b16 %v2371
      %v2468 = vunpack.c.l.b16 %v2372
      %v2469 = vunpack.c.l.b16 %v2373
      %v2470 = vunpack.c.l.b16 %v2374
      %v2471 = vunpack.c.l.b16 %v2375
      %v2472 = vunpack.c.l.b16 %v2376
      %v2473 = vunpack.c.l.b16 %v2377
      %v2474 = vunpack.c.l.b16 %v2378
      %v2475 = vunpack.c.l.b16 %v2379
      %v2476 = vunpack.c.l.b16 %v2380
      %v2477 = vunpack.c.l.b16 %v2381
      %v2478 = vunpack.c.l.b16 %v2382
      %v2479 = vunpack.c.l.b16 %v2383
      %v2480 = vunpack.c.l.b16 %v2384
      %v2481 = vunpack.c.l.b16 %v2385
      %v2482 = vunpack.c.l.b16 %v2386
      %v2483 = vunpack.c.l.b16 %v2387
      %v2484 = vunpack.c.l.b16 %v2388
      %v2485 = vunpack.c.l.b16 %v2389
      %v2486 = vunpack.c.l.b16 %v2390
      %v2487 = vunpack.c.l.b16 %v2391
      %v2488 = vunpack.c.l.b16 %v2392
      %v2489 = vunpack.c.l.b16 %v2393
      %v2490 = vunpack.c.l.b16 %v2394
      %v2491 = vunpack.c.l.b16 %v2395
      %v2492 = vunpack.c.l.b16 %v2396
      %v2493 = vpack.c.b16 %v2446, %v2445
      %v2494 = vpack.c.b16 %v2448, %v2447
      %v2495 = vpack.c.b16 %v2450, %v2449
      %v2496 = vpack.c.b16 %v2452, %v2451
      %v2497 = vpack.c.b16 %v2454, %v2453
      %v2498 = vpack.c.b16 %v2456, %v2455
      %v2499 = vpack.c.b16 %v2458, %v2457
      %v2500 = vpack.c.b16 %v2460, %v2459
      %v2501 = vpack.c.b16 %v2462, %v2461
      %v2502 = vpack.c.b16 %v2464, %v2463
      %v2503 = vpack.c.b16 %v2466, %v2465
      %v2504 = vpack.c.b16 %v2468, %v2467
      %v2505 = vpack.c.b16 %v2470, %v2469
      %v2506 = vpack.c.b16 %v2472, %v2471
      %v2507 = vpack.c.b16 %v2474, %v2473
      %v2508 = vpack.c.b16 %v2476, %v2475
      %v2509 = vpack.c.b16 %v2478, %v2477
      %v2510 = vpack.c.b16 %v2480, %v2479
      %v2511 = vpack.c.b16 %v2482, %v2481
      %v2512 = vpack.c.b16 %v2484, %v2483
      %v2513 = vpack.c.b16 %v2486, %v2485
      %v2514 = vpack.c.b16 %v2488, %v2487
      %v2515 = vpack.c.b16 %v2490, %v2489
      %v2516 = vpack.c.b16 %v2492, %v2491
      %2541 = vmatpush.bf16.msra.mxu0 %v2500
      %2542 = vmatpush.bf16.msra.mxu0 %v2499
      %2543 = vmatpush.bf16.msra.mxu0 %v2498
      %2544 = vmatpush.bf16.msra.mxu0 %v2497
      %2545 = vmatpush.bf16.msra.mxu0 %v2496
      %2546 = vmatpush.bf16.msra.mxu0 %v2495
      %2547 = vmatpush.bf16.msra.mxu0 %v2494
      %2548 = vmatpush.bf16.msra.mxu0 %v2493
      %2549 = vmatmul.bf16.gmra.mxu0 %v2337
      %v2550 = vpop.f32.mrf.mxu0
      %v2551 = vadd.f32 0.0, %v2550
      %v2552 = vpop.f32.mrf.mxu0
      %v2553 = vadd.f32 0.0, %v2552
      %2554 = vmatmul.bf16.gmra.mxu0 %v2340
      %v2555 = vpop.f32.mrf.mxu0
      %v2556 = vadd.f32 0.0, %v2555
      %v2557 = vpop.f32.mrf.mxu0
      %v2558 = vadd.f32 0.0, %v2557
      %2559 = vmatmul.bf16.gmra.mxu0 %v2343
      %v2560 = vpop.f32.mrf.mxu0
      %v2561 = vadd.f32 0.0, %v2560
      %v2562 = vpop.f32.mrf.mxu0
      %v2563 = vadd.f32 0.0, %v2562
      %2564 = vmatmul.bf16.gmra.mxu0 %v2346
      %v2565 = vpop.f32.mrf.mxu0
      %v2566 = vadd.f32 0.0, %v2565
      %v2567 = vpop.f32.mrf.mxu0
      %v2568 = vadd.f32 0.0, %v2567
      %2569 = vdwg.mxu0
      %2570 = vmatpush.bf16.msra.mxu0 %v2508
      %2571 = vmatpush.bf16.msra.mxu0 %v2507
      %2572 = vmatpush.bf16.msra.mxu0 %v2506
      %2573 = vmatpush.bf16.msra.mxu0 %v2505
      %2574 = vmatpush.bf16.msra.mxu0 %v2504
      %2575 = vmatpush.bf16.msra.mxu0 %v2503
      %2576 = vmatpush.bf16.msra.mxu0 %v2502
      %2577 = vmatpush.bf16.msra.mxu0 %v2501
      %2578 = vmatmul.bf16.gmra.mxu0 %v2338
      %v2579 = vpop.f32.mrf.mxu0
      %v2580 = vadd.f32 %v2551, %v2579
      %v2581 = vpop.f32.mrf.mxu0
      %v2582 = vadd.f32 %v2553, %v2581
      %2583 = vmatmul.bf16.gmra.mxu0 %v2341
      %v2584 = vpop.f32.mrf.mxu0
      %v2585 = vadd.f32 %v2556, %v2584
      %v2586 = vpop.f32.mrf.mxu0
      %v2587 = vadd.f32 %v2558, %v2586
      %2588 = vmatmul.bf16.gmra.mxu0 %v2344
      %v2589 = vpop.f32.mrf.mxu0
      %v2590 = vadd.f32 %v2561, %v2589
      %v2591 = vpop.f32.mrf.mxu0
      %v2592 = vadd.f32 %v2563, %v2591
      %2593 = vmatmul.bf16.gmra.mxu0 %v2347
      %v2594 = vpop.f32.mrf.mxu0
      %v2595 = vadd.f32 %v2566, %v2594
      %v2596 = vpop.f32.mrf.mxu0
      %v2597 = vadd.f32 %v2568, %v2596
      %2598 = vdwg.mxu0
      %2599 = vmatpush.bf16.msra.mxu0 %v2516
      %2600 = vmatpush.bf16.msra.mxu0 %v2515
      %2601 = vmatpush.bf16.msra.mxu0 %v2514
      %2602 = vmatpush.bf16.msra.mxu0 %v2513
      %2603 = vmatpush.bf16.msra.mxu0 %v2512
      %2604 = vmatpush.bf16.msra.mxu0 %v2511
      %2605 = vmatpush.bf16.msra.mxu0 %v2510
      %2606 = vmatpush.bf16.msra.mxu0 %v2509
      %2607 = vmatmul.bf16.gmra.mxu0 %v2339
      %v2608 = vpop.f32.mrf.mxu0
      %v2609 = vadd.f32 %v2580, %v2608
      %v2610 = vpop.f32.mrf.mxu0
      %v2611 = vadd.f32 %v2582, %v2610
      %2612 = vmatmul.bf16.gmra.mxu0 %v2342
      %v2613 = vpop.f32.mrf.mxu0
      %v2614 = vadd.f32 %v2585, %v2613
      %v2615 = vpop.f32.mrf.mxu0
      %v2616 = vadd.f32 %v2587, %v2615
      %2617 = vmatmul.bf16.gmra.mxu0 %v2345
      %v2618 = vpop.f32.mrf.mxu0
      %v2619 = vadd.f32 %v2590, %v2618
      %v2620 = vpop.f32.mrf.mxu0
      %v2621 = vadd.f32 %v2592, %v2620
      %2622 = vmatmul.bf16.gmra.mxu0 %v2348
      %v2623 = vpop.f32.mrf.mxu0
      %v2624 = vadd.f32 %v2595, %v2623
      %v2625 = vpop.f32.mrf.mxu0
      %v2626 = vadd.f32 %v2597, %v2625
      %2627 = vdwg.mxu0
      %v2676 = vunpack.c.l.b16 %v2265
      %v2677 = vunpack.c.l.b16 %v2266
      %v2678 = vunpack.c.l.b16 %v2267
      %v2679 = vunpack.c.l.b16 %v2268
      %v2680 = vunpack.c.l.b16 %v2269
      %v2681 = vunpack.c.l.b16 %v2270
      %v2682 = vunpack.c.l.b16 %v2271
      %v2683 = vunpack.c.l.b16 %v2272
      %v2684 = vunpack.c.l.b16 %v2273
      %v2685 = vunpack.c.l.b16 %v2274
      %v2686 = vunpack.c.l.b16 %v2275
      %v2687 = vunpack.c.l.b16 %v2276
      %v2688 = vunpack.c.l.b16 %v2277
      %v2689 = vunpack.c.l.b16 %v2278
      %v2690 = vunpack.c.l.b16 %v2279
      %v2691 = vunpack.c.l.b16 %v2280
      %v2692 = vunpack.c.l.b16 %v2281
      %v2693 = vunpack.c.l.b16 %v2282
      %v2694 = vunpack.c.l.b16 %v2283
      %v2695 = vunpack.c.l.b16 %v2284
      %v2696 = vunpack.c.l.b16 %v2285
      %v2697 = vunpack.c.l.b16 %v2286
      %v2698 = vunpack.c.l.b16 %v2287
      %v2699 = vunpack.c.l.b16 %v2288
      %v2700 = vunpack.c.l.b16 %v2289
      %v2701 = vunpack.c.l.b16 %v2290
      %v2702 = vunpack.c.l.b16 %v2291
      %v2703 = vunpack.c.l.b16 %v2292
      %v2704 = vunpack.c.l.b16 %v2293
      %v2705 = vunpack.c.l.b16 %v2294
      %v2706 = vunpack.c.l.b16 %v2295
      %v2707 = vunpack.c.l.b16 %v2296
      %v2708 = vunpack.c.l.b16 %v2297
      %v2709 = vunpack.c.l.b16 %v2298
      %v2710 = vunpack.c.l.b16 %v2299
      %v2711 = vunpack.c.l.b16 %v2300
      %v2712 = vunpack.c.l.b16 %v2301
      %v2713 = vunpack.c.l.b16 %v2302
      %v2714 = vunpack.c.l.b16 %v2303
      %v2715 = vunpack.c.l.b16 %v2304
      %v2716 = vunpack.c.l.b16 %v2305
      %v2717 = vunpack.c.l.b16 %v2306
      %v2718 = vunpack.c.l.b16 %v2307
      %v2719 = vunpack.c.l.b16 %v2308
      %v2720 = vunpack.c.l.b16 %v2309
      %v2721 = vunpack.c.l.b16 %v2310
      %v2722 = vunpack.c.l.b16 %v2311
      %v2723 = vunpack.c.l.b16 %v2312
      %v2724 = vpack.c.b16 %v2677, %v2676
      %v2725 = vpack.c.b16 %v2679, %v2678
      %v2726 = vpack.c.b16 %v2681, %v2680
      %v2727 = vpack.c.b16 %v2683, %v2682
      %v2728 = vpack.c.b16 %v2685, %v2684
      %v2729 = vpack.c.b16 %v2687, %v2686
      %v2730 = vpack.c.b16 %v2689, %v2688
      %v2731 = vpack.c.b16 %v2691, %v2690
      %v2732 = vpack.c.b16 %v2693, %v2692
      %v2733 = vpack.c.b16 %v2695, %v2694
      %v2734 = vpack.c.b16 %v2697, %v2696
      %v2735 = vpack.c.b16 %v2699, %v2698
      %v2736 = vpack.c.b16 %v2701, %v2700
      %v2737 = vpack.c.b16 %v2703, %v2702
      %v2738 = vpack.c.b16 %v2705, %v2704
      %v2739 = vpack.c.b16 %v2707, %v2706
      %v2740 = vpack.c.b16 %v2709, %v2708
      %v2741 = vpack.c.b16 %v2711, %v2710
      %v2742 = vpack.c.b16 %v2713, %v2712
      %v2743 = vpack.c.b16 %v2715, %v2714
      %v2744 = vpack.c.b16 %v2717, %v2716
      %v2745 = vpack.c.b16 %v2719, %v2718
      %v2746 = vpack.c.b16 %v2721, %v2720
      %v2747 = vpack.c.b16 %v2723, %v2722
      %2772 = vmatpush.bf16.msra.mxu0 %v2731
      %2773 = vmatpush.bf16.msra.mxu0 %v2730
      %2774 = vmatpush.bf16.msra.mxu0 %v2729
      %2775 = vmatpush.bf16.msra.mxu0 %v2728
      %2776 = vmatpush.bf16.msra.mxu0 %v2727
      %2777 = vmatpush.bf16.msra.mxu0 %v2726
      %2778 = vmatpush.bf16.msra.mxu0 %v2725
      %2779 = vmatpush.bf16.msra.mxu0 %v2724
      %2780 = vmatmul.bf16.gmra.mxu0 %v2253
      %v2781 = vpop.f32.mrf.mxu0
      %v2782 = vadd.f32 %v2609, %v2781
      %v2783 = vpop.f32.mrf.mxu0
      %v2784 = vadd.f32 %v2611, %v2783
      %2785 = vmatmul.bf16.gmra.mxu0 %v2256
      %v2786 = vpop.f32.mrf.mxu0
      %v2787 = vadd.f32 %v2614, %v2786
      %v2788 = vpop.f32.mrf.mxu0
      %v2789 = vadd.f32 %v2616, %v2788
      %2790 = vmatmul.bf16.gmra.mxu0 %v2259
      %v2791 = vpop.f32.mrf.mxu0
      %v2792 = vadd.f32 %v2619, %v2791
      %v2793 = vpop.f32.mrf.mxu0
      %v2794 = vadd.f32 %v2621, %v2793
      %2795 = vmatmul.bf16.gmra.mxu0 %v2262
      %v2796 = vpop.f32.mrf.mxu0
      %v2797 = vadd.f32 %v2624, %v2796
      %v2798 = vpop.f32.mrf.mxu0
      %v2799 = vadd.f32 %v2626, %v2798
      %2800 = vdwg.mxu0
      %2801 = vmatpush.bf16.msra.mxu0 %v2739
      %2802 = vmatpush.bf16.msra.mxu0 %v2738
      %2803 = vmatpush.bf16.msra.mxu0 %v2737
      %2804 = vmatpush.bf16.msra.mxu0 %v2736
      %2805 = vmatpush.bf16.msra.mxu0 %v2735
      %2806 = vmatpush.bf16.msra.mxu0 %v2734
      %2807 = vmatpush.bf16.msra.mxu0 %v2733
      %2808 = vmatpush.bf16.msra.mxu0 %v2732
      %2809 = vmatmul.bf16.gmra.mxu0 %v2254
      %v2810 = vpop.f32.mrf.mxu0
      %v2811 = vadd.f32 %v2782, %v2810
      %v2812 = vpop.f32.mrf.mxu0
      %v2813 = vadd.f32 %v2784, %v2812
      %2814 = vmatmul.bf16.gmra.mxu0 %v2257
      %v2815 = vpop.f32.mrf.mxu0
      %v2816 = vadd.f32 %v2787, %v2815
      %v2817 = vpop.f32.mrf.mxu0
      %v2818 = vadd.f32 %v2789, %v2817
      %2819 = vmatmul.bf16.gmra.mxu0 %v2260
      %v2820 = vpop.f32.mrf.mxu0
      %v2821 = vadd.f32 %v2792, %v2820
      %v2822 = vpop.f32.mrf.mxu0
      %v2823 = vadd.f32 %v2794, %v2822
      %2824 = vmatmul.bf16.gmra.mxu0 %v2263
      %v2825 = vpop.f32.mrf.mxu0
      %v2826 = vadd.f32 %v2797, %v2825
      %v2827 = vpop.f32.mrf.mxu0
      %v2828 = vadd.f32 %v2799, %v2827
      %2829 = vdwg.mxu0
      %2830 = vmatpush.bf16.msra.mxu0 %v2747
      %2831 = vmatpush.bf16.msra.mxu0 %v2746
      %2832 = vmatpush.bf16.msra.mxu0 %v2745
      %2833 = vmatpush.bf16.msra.mxu0 %v2744
      %2834 = vmatpush.bf16.msra.mxu0 %v2743
      %2835 = vmatpush.bf16.msra.mxu0 %v2742
      %2836 = vmatpush.bf16.msra.mxu0 %v2741
      %2837 = vmatpush.bf16.msra.mxu0 %v2740
      %2838 = vmatmul.bf16.gmra.mxu0 %v2255
      %v2839 = vpop.f32.mrf.mxu0
      %v2840 = vadd.f32 %v2811, %v2839
      %v2841 = vpop.f32.mrf.mxu0
      %v2842 = vadd.f32 %v2813, %v2841
      %2843 = vmatmul.bf16.gmra.mxu0 %v2258
      %v2844 = vpop.f32.mrf.mxu0
      %v2845 = vadd.f32 %v2816, %v2844
      %v2846 = vpop.f32.mrf.mxu0
      %v2847 = vadd.f32 %v2818, %v2846
      %2848 = vmatmul.bf16.gmra.mxu0 %v2261
      %v2849 = vpop.f32.mrf.mxu0
      %v2850 = vadd.f32 %v2821, %v2849
      %v2851 = vpop.f32.mrf.mxu0
      %v2852 = vadd.f32 %v2823, %v2851
      %2853 = vmatmul.bf16.gmra.mxu0 %v2264
      %v2854 = vpop.f32.mrf.mxu0
      %v2855 = vadd.f32 %v2826, %v2854
      %v2856 = vpop.f32.mrf.mxu0
      %v2857 = vadd.f32 %v2828, %v2856
      %2858 = vdwg.mxu0
      %v2859 = vld [vmem:[%s1023 + $0x1] sm:$0xff]
      %v2860 = vld [vmem:[%s1023 + $0x11] sm:$0xff]
      %v2861 = vld [vmem:[%s1023 + $0x21] sm:$0xff]
      %v2862 = vld [vmem:[%s1023 + $0x31] sm:$0xff]
      %v2863 = vld [vmem:[%s1023 + $0x41] sm:$0xff]
      %v2864 = vld [vmem:[%s1023 + $0x51] sm:$0xff]
      %v2865 = vld [vmem:[%s1023 + $0x61] sm:$0xff]
      %v2866 = vld [vmem:[%s1023 + $0x71] sm:$0xff]
      %v2867 = vld [vmem:[%s1189 + $0x1] sm:$0xff]
      %v2868 = vld [vmem:[%s1189 + $0x11] sm:$0xff]
      %v2869 = vld [vmem:[%s1189 + $0x21] sm:$0xff]
      %v2870 = vld [vmem:[%s1189 + $0x31] sm:$0xff]
      %v2871 = vld [vmem:[%s1189 + $0x41] sm:$0xff]
      %v2872 = vld [vmem:[%s1189 + $0x51] sm:$0xff]
      %v2873 = vld [vmem:[%s1189 + $0x61] sm:$0xff]
      %v2874 = vld [vmem:[%s1189 + $0x71] sm:$0xff]
      %v2875 = vld [vmem:[%s1023 + $0x2] sm:$0xff]
      %v2876 = vld [vmem:[%s1023 + $0x12] sm:$0xff]
      %v2877 = vld [vmem:[%s1023 + $0x22] sm:$0xff]
      %v2878 = vld [vmem:[%s1023 + $0x32] sm:$0xff]
      %v2879 = vld [vmem:[%s1023 + $0x42] sm:$0xff]
      %v2880 = vld [vmem:[%s1023 + $0x52] sm:$0xff]
      %v2881 = vld [vmem:[%s1023 + $0x62] sm:$0xff]
      %v2882 = vld [vmem:[%s1023 + $0x72] sm:$0xff]
      %v2883 = vpack.c.bf16 %v2860, %v2859
      %v2884 = vpack.c.bf16 %v2868, %v2867
      %v2885 = vpack.c.bf16 %v2876, %v2875
      %v2886 = vpack.c.bf16 %v2862, %v2861
      %v2887 = vpack.c.bf16 %v2870, %v2869
      %v2888 = vpack.c.bf16 %v2878, %v2877
      %v2889 = vpack.c.bf16 %v2864, %v2863
      %v2890 = vpack.c.bf16 %v2872, %v2871
      %v2891 = vpack.c.bf16 %v2880, %v2879
      %v2892 = vpack.c.bf16 %v2866, %v2865
      %v2893 = vpack.c.bf16 %v2874, %v2873
      %v2894 = vpack.c.bf16 %v2882, %v2881
      %v2895 = vld [vmem:[%s1871] sm:$0xf]
      %v2896 = vld [vmem:[%s1871 + $0x4] sm:$0xf]
      %v2897 = vld [vmem:[%s1871 + $0x8] sm:$0xf]
      %v2898 = vld [vmem:[%s1871 + $0xc] sm:$0xf]
      %v2899 = vld [vmem:[%s1871 + $0x10] sm:$0xf]
      %v2900 = vld [vmem:[%s1871 + $0x14] sm:$0xf]
      %v2901 = vld [vmem:[%s1871 + $0x18] sm:$0xf]
      %v2902 = vld [vmem:[%s1871 + $0x1c] sm:$0xf]
      %v2903 = vld [vmem:[%s1871 + $0x20] sm:$0xf]
      %v2904 = vld [vmem:[%s1871 + $0x24] sm:$0xf]
      %v2905 = vld [vmem:[%s1871 + $0x28] sm:$0xf]
      %v2906 = vld [vmem:[%s1871 + $0x2c] sm:$0xf]
      %v2907 = vld [vmem:[%s1871 + $0x30] sm:$0xf]
      %v2908 = vld [vmem:[%s1871 + $0x34] sm:$0xf]
      %v2909 = vld [vmem:[%s1871 + $0x38] sm:$0xf]
      %v2910 = vld [vmem:[%s1871 + $0x3c] sm:$0xf]
      %v2911 = vld [vmem:[%s1871 + $0x40] sm:$0xf]
      %v2912 = vld [vmem:[%s1871 + $0x44] sm:$0xf]
      %v2913 = vld [vmem:[%s1871 + $0x48] sm:$0xf]
      %v2914 = vld [vmem:[%s1871 + $0x4c] sm:$0xf]
      %v2915 = vld [vmem:[%s1871 + $0x50] sm:$0xf]
      %v2916 = vld [vmem:[%s1871 + $0x54] sm:$0xf]
      %v2917 = vld [vmem:[%s1871 + $0x58] sm:$0xf]
      %v2918 = vld [vmem:[%s1871 + $0x5c] sm:$0xf]
      %v2919 = vld [vmem:[%s1871 + $0x60] sm:$0xf]
      %v2920 = vld [vmem:[%s1871 + $0x64] sm:$0xf]
      %v2921 = vld [vmem:[%s1871 + $0x68] sm:$0xf]
      %v2922 = vld [vmem:[%s1871 + $0x6c] sm:$0xf]
      %v2923 = vld [vmem:[%s1871 + $0x70] sm:$0xf]
      %v2924 = vld [vmem:[%s1871 + $0x74] sm:$0xf]
      %v2925 = vld [vmem:[%s1871 + $0x78] sm:$0xf]
      %v2926 = vld [vmem:[%s1871 + $0x7c] sm:$0xf]
      %v2927 = vld [vmem:[%s1871 + $0x80] sm:$0xf]
      %v2928 = vld [vmem:[%s1871 + $0x84] sm:$0xf]
      %v2929 = vld [vmem:[%s1871 + $0x88] sm:$0xf]
      %v2930 = vld [vmem:[%s1871 + $0x8c] sm:$0xf]
      %v2931 = vld [vmem:[%s1871 + $0x90] sm:$0xf]
      %v2932 = vld [vmem:[%s1871 + $0x94] sm:$0xf]
      %v2933 = vld [vmem:[%s1871 + $0x98] sm:$0xf]
      %v2934 = vld [vmem:[%s1871 + $0x9c] sm:$0xf]
      %v2935 = vld [vmem:[%s1871 + $0xa0] sm:$0xf]
      %v2936 = vld [vmem:[%s1871 + $0xa4] sm:$0xf]
      %v2937 = vld [vmem:[%s1871 + $0xa8] sm:$0xf]
      %v2938 = vld [vmem:[%s1871 + $0xac] sm:$0xf]
      %v2939 = vld [vmem:[%s1871 + $0xb0] sm:$0xf]
      %v2940 = vld [vmem:[%s1871 + $0xb4] sm:$0xf]
      %v2941 = vld [vmem:[%s1871 + $0xb8] sm:$0xf]
      %v2942 = vld [vmem:[%s1871 + $0xbc] sm:$0xf]
      %v2991 = vunpack.c.l.b16 %v2895
      %v2992 = vunpack.c.l.b16 %v2896
      %v2993 = vunpack.c.l.b16 %v2897
      %v2994 = vunpack.c.l.b16 %v2898
      %v2995 = vunpack.c.l.b16 %v2899
      %v2996 = vunpack.c.l.b16 %v2900
      %v2997 = vunpack.c.l.b16 %v2901
      %v2998 = vunpack.c.l.b16 %v2902
      %v2999 = vunpack.c.l.b16 %v2903
      %v3000 = vunpack.c.l.b16 %v2904
      %v3001 = vunpack.c.l.b16 %v2905
      %v3002 = vunpack.c.l.b16 %v2906
      %v3003 = vunpack.c.l.b16 %v2907
      %v3004 = vunpack.c.l.b16 %v2908
      %v3005 = vunpack.c.l.b16 %v2909
      %v3006 = vunpack.c.l.b16 %v2910
      %v3007 = vunpack.c.l.b16 %v2911
      %v3008 = vunpack.c.l.b16 %v2912
      %v3009 = vunpack.c.l.b16 %v2913
      %v3010 = vunpack.c.l.b16 %v2914
      %v3011 = vunpack.c.l.b16 %v2915
      %v3012 = vunpack.c.l.b16 %v2916
      %v3013 = vunpack.c.l.b16 %v2917
      %v3014 = vunpack.c.l.b16 %v2918
      %v3015 = vunpack.c.l.b16 %v2919
      %v3016 = vunpack.c.l.b16 %v2920
      %v3017 = vunpack.c.l.b16 %v2921
      %v3018 = vunpack.c.l.b16 %v2922
      %v3019 = vunpack.c.l.b16 %v2923
      %v3020 = vunpack.c.l.b16 %v2924
      %v3021 = vunpack.c.l.b16 %v2925
      %v3022 = vunpack.c.l.b16 %v2926
      %v3023 = vunpack.c.l.b16 %v2927
      %v3024 = vunpack.c.l.b16 %v2928
      %v3025 = vunpack.c.l.b16 %v2929
      %v3026 = vunpack.c.l.b16 %v2930
      %v3027 = vunpack.c.l.b16 %v2931
      %v3028 = vunpack.c.l.b16 %v2932
      %v3029 = vunpack.c.l.b16 %v2933
      %v3030 = vunpack.c.l.b16 %v2934
      %v3031 = vunpack.c.l.b16 %v2935
      %v3032 = vunpack.c.l.b16 %v2936
      %v3033 = vunpack.c.l.b16 %v2937
      %v3034 = vunpack.c.l.b16 %v2938
      %v3035 = vunpack.c.l.b16 %v2939
      %v3036 = vunpack.c.l.b16 %v2940
      %v3037 = vunpack.c.l.b16 %v2941
      %v3038 = vunpack.c.l.b16 %v2942
      %v3039 = vpack.c.b16 %v2992, %v2991
      %v3040 = vpack.c.b16 %v2994, %v2993
      %v3041 = vpack.c.b16 %v2996, %v2995
      %v3042 = vpack.c.b16 %v2998, %v2997
      %v3043 = vpack.c.b16 %v3000, %v2999
      %v3044 = vpack.c.b16 %v3002, %v3001
      %v3045 = vpack.c.b16 %v3004, %v3003
      %v3046 = vpack.c.b16 %v3006, %v3005
      %v3047 = vpack.c.b16 %v3008, %v3007
      %v3048 = vpack.c.b16 %v3010, %v3009
      %v3049 = vpack.c.b16 %v3012, %v3011
      %v3050 = vpack.c.b16 %v3014, %v3013
      %v3051 = vpack.c.b16 %v3016, %v3015
      %v3052 = vpack.c.b16 %v3018, %v3017
      %v3053 = vpack.c.b16 %v3020, %v3019
      %v3054 = vpack.c.b16 %v3022, %v3021
      %v3055 = vpack.c.b16 %v3024, %v3023
      %v3056 = vpack.c.b16 %v3026, %v3025
      %v3057 = vpack.c.b16 %v3028, %v3027
      %v3058 = vpack.c.b16 %v3030, %v3029
      %v3059 = vpack.c.b16 %v3032, %v3031
      %v3060 = vpack.c.b16 %v3034, %v3033
      %v3061 = vpack.c.b16 %v3036, %v3035
      %v3062 = vpack.c.b16 %v3038, %v3037
      %3087 = vmatpush.bf16.msra.mxu0 %v3046
      %3088 = vmatpush.bf16.msra.mxu0 %v3045
      %3089 = vmatpush.bf16.msra.mxu0 %v3044
      %3090 = vmatpush.bf16.msra.mxu0 %v3043
      %3091 = vmatpush.bf16.msra.mxu0 %v3042
      %3092 = vmatpush.bf16.msra.mxu0 %v3041
      %3093 = vmatpush.bf16.msra.mxu0 %v3040
      %3094 = vmatpush.bf16.msra.mxu0 %v3039
      %3095 = vmatmul.bf16.gmra.mxu0 %v2883
      %v3096 = vpop.f32.mrf.mxu0
      %v3097 = vadd.f32 0.0, %v3096
      %v3098 = vpop.f32.mrf.mxu0
      %v3099 = vadd.f32 0.0, %v3098
      %3100 = vmatmul.bf16.gmra.mxu0 %v2886
      %v3101 = vpop.f32.mrf.mxu0
      %v3102 = vadd.f32 0.0, %v3101
      %v3103 = vpop.f32.mrf.mxu0
      %v3104 = vadd.f32 0.0, %v3103
      %3105 = vmatmul.bf16.gmra.mxu0 %v2889
      %v3106 = vpop.f32.mrf.mxu0
      %v3107 = vadd.f32 0.0, %v3106
      %v3108 = vpop.f32.mrf.mxu0
      %v3109 = vadd.f32 0.0, %v3108
      %3110 = vmatmul.bf16.gmra.mxu0 %v2892
      %v3111 = vpop.f32.mrf.mxu0
      %v3112 = vadd.f32 0.0, %v3111
      %v3113 = vpop.f32.mrf.mxu0
      %v3114 = vadd.f32 0.0, %v3113
      %3115 = vdwg.mxu0
      %3116 = vmatpush.bf16.msra.mxu0 %v3054
      %3117 = vmatpush.bf16.msra.mxu0 %v3053
      %3118 = vmatpush.bf16.msra.mxu0 %v3052
      %3119 = vmatpush.bf16.msra.mxu0 %v3051
      %3120 = vmatpush.bf16.msra.mxu0 %v3050
      %3121 = vmatpush.bf16.msra.mxu0 %v3049
      %3122 = vmatpush.bf16.msra.mxu0 %v3048
      %3123 = vmatpush.bf16.msra.mxu0 %v3047
      %3124 = vmatmul.bf16.gmra.mxu0 %v2884
      %v3125 = vpop.f32.mrf.mxu0
      %v3126 = vadd.f32 %v3097, %v3125
      %v3127 = vpop.f32.mrf.mxu0
      %v3128 = vadd.f32 %v3099, %v3127
      %3129 = vmatmul.bf16.gmra.mxu0 %v2887
      %v3130 = vpop.f32.mrf.mxu0
      %v3131 = vadd.f32 %v3102, %v3130
      %v3132 = vpop.f32.mrf.mxu0
      %v3133 = vadd.f32 %v3104, %v3132
      %3134 = vmatmul.bf16.gmra.mxu0 %v2890
      %v3135 = vpop.f32.mrf.mxu0
      %v3136 = vadd.f32 %v3107, %v3135
      %v3137 = vpop.f32.mrf.mxu0
      %v3138 = vadd.f32 %v3109, %v3137
      %3139 = vmatmul.bf16.gmra.mxu0 %v2893
      %v3140 = vpop.f32.mrf.mxu0
      %v3141 = vadd.f32 %v3112, %v3140
      %v3142 = vpop.f32.mrf.mxu0
      %v3143 = vadd.f32 %v3114, %v3142
      %3144 = vdwg.mxu0
      %3145 = vmatpush.bf16.msra.mxu0 %v3062
      %3146 = vmatpush.bf16.msra.mxu0 %v3061
      %3147 = vmatpush.bf16.msra.mxu0 %v3060
      %3148 = vmatpush.bf16.msra.mxu0 %v3059
      %3149 = vmatpush.bf16.msra.mxu0 %v3058
      %3150 = vmatpush.bf16.msra.mxu0 %v3057
      %3151 = vmatpush.bf16.msra.mxu0 %v3056
      %3152 = vmatpush.bf16.msra.mxu0 %v3055
      %3153 = vmatmul.bf16.gmra.mxu0 %v2885
      %v3154 = vpop.f32.mrf.mxu0
      %v3155 = vadd.f32 %v3126, %v3154
      %v3156 = vpop.f32.mrf.mxu0
      %v3157 = vadd.f32 %v3128, %v3156
      %3158 = vmatmul.bf16.gmra.mxu0 %v2888
      %v3159 = vpop.f32.mrf.mxu0
      %v3160 = vadd.f32 %v3131, %v3159
      %v3161 = vpop.f32.mrf.mxu0
      %v3162 = vadd.f32 %v3133, %v3161
      %3163 = vmatmul.bf16.gmra.mxu0 %v2891
      %v3164 = vpop.f32.mrf.mxu0
      %v3165 = vadd.f32 %v3136, %v3164
      %v3166 = vpop.f32.mrf.mxu0
      %v3167 = vadd.f32 %v3138, %v3166
      %3168 = vmatmul.bf16.gmra.mxu0 %v2894
      %v3169 = vpop.f32.mrf.mxu0
      %v3170 = vadd.f32 %v3141, %v3169
      %v3171 = vpop.f32.mrf.mxu0
      %v3172 = vadd.f32 %v3143, %v3171
      %3173 = vdwg.mxu0
      %v3174 = vadd.f32 %v2840, %v3155
      %v3175 = vadd.f32 %v2842, %v3157
      %v3176 = vadd.f32 %v2845, %v3160
      %v3177 = vadd.f32 %v2847, %v3162
      %v3178 = vadd.f32 %v2850, %v3165
      %v3179 = vadd.f32 %v2852, %v3167
      %v3180 = vadd.f32 %v2855, %v3170
      %v3181 = vadd.f32 %v2857, %v3172
      %v3182 = vmul.f32 %v3174, %v2160
      %v3183 = vmul.f32 %v3175, %v2160
      %v3184 = vmul.f32 %v3176, %v2160
      %v3185 = vmul.f32 %v3177, %v2160
      %v3186 = vmul.f32 %v3178, %v2160
      %v3187 = vmul.f32 %v3179, %v2160
      %v3188 = vmul.f32 %v3180, %v2160
      %v3189 = vmul.f32 %v3181, %v2160
      %v3190 = vadd.f32 %v3182, %v2171
      %v3191 = vadd.f32 %v3183, %v2171
      %v3192 = vadd.f32 %v3184, %v2171
      %v3193 = vadd.f32 %v3185, %v2171
      %v3194 = vadd.f32 %v3186, %v2171
      %v3195 = vadd.f32 %v3187, %v2171
      %v3196 = vadd.f32 %v3188, %v2171
      %v3197 = vadd.f32 %v3189, %v2171
      %v3198 = vmax.f32 %v3190, 0.0
      %v3199 = vmax.f32 %v3191, 0.0
      %v3200 = vmax.f32 %v3192, 0.0
      %v3201 = vmax.f32 %v3193, 0.0
      %v3202 = vmax.f32 %v3194, 0.0
      %v3203 = vmax.f32 %v3195, 0.0
      %v3204 = vmax.f32 %v3196, 0.0
      %v3205 = vmax.f32 %v3197, 0.0
      %v3206 = vpack.c.bf16 %v3199, %v3198
      %v3207 = vpack.c.bf16 %v3201, %v3200
      %v3208 = vpack.c.bf16 %v3203, %v3202
      %v3209 = vpack.c.bf16 %v3205, %v3204
      %v3211 = vsel %vm2198, %v3206, 0
      %v3214 = vsel %vm2198, %v3207, 0
      %v3217 = vsel %vm2198, %v3208, 0
      %v3220 = vsel %vm2198, %v3209, 0
      %3222 = vmatpush.bf16.xpose.msra.mxu0 0
      %3223 = vmatpush.bf16.xpose.msra.mxu0 0
      %3224 = vmatpush.bf16.xpose.msra.mxu0 0
      %3225 = vmatpush.bf16.xpose.msra.mxu0 0
      %3226 = vmatpush.bf16.xpose.msra.mxu0 %v3220
      %3227 = vmatpush.bf16.xpose.msra.mxu0 %v3217
      %3228 = vmatpush.bf16.xpose.msra.mxu0 %v3214
      %3229 = vmatpush.bf16.xpose.msra.mxu0 %v3211
      %3230 = vmatmul.bf16.gmra.mxu0 %v2200
      %v3231 = vpop.f32.mrf.mxu0
      %v3232 = vadd.f32 %v2196, %v3231
      %v3233 = vpop.f32.mrf.mxu0
      %3234 = vdwg.mxu0
      %s3235 = scalar_lea.vmem %s359, 4
      %3236 = vst.msk [vmem:[%s3235] sm:$0x7] %vm2227, %v3232
      %v3237 = vld [vmem:[%s856] sm:$0xff]
      %v3238 = vld [vmem:[%s856 + $0x10] sm:$0xff]
      %v3239 = vld [vmem:[%s856 + $0x20] sm:$0xff]
      %v3240 = vld [vmem:[%s856 + $0x30] sm:$0xff]
      %v3241 = vld [vmem:[%s856 + $0x40] sm:$0xff]
      %v3242 = vld [vmem:[%s856 + $0x50] sm:$0xff]
      %v3243 = vld [vmem:[%s856 + $0x60] sm:$0xff]
      %v3244 = vld [vmem:[%s856 + $0x70] sm:$0xff]
      %v3245 = vld [vmem:[%s690 + $0x1] sm:$0xff]
      %v3246 = vld [vmem:[%s690 + $0x11] sm:$0xff]
      %v3247 = vld [vmem:[%s690 + $0x21] sm:$0xff]
      %v3248 = vld [vmem:[%s690 + $0x31] sm:$0xff]
      %v3249 = vld [vmem:[%s690 + $0x41] sm:$0xff]
      %v3250 = vld [vmem:[%s690 + $0x51] sm:$0xff]
      %v3251 = vld [vmem:[%s690 + $0x61] sm:$0xff]
      %v3252 = vld [vmem:[%s690 + $0x71] sm:$0xff]
      %v3253 = vld [vmem:[%s856 + $0x1] sm:$0xff]
      %v3254 = vld [vmem:[%s856 + $0x11] sm:$0xff]
      %v3255 = vld [vmem:[%s856 + $0x21] sm:$0xff]
      %v3256 = vld [vmem:[%s856 + $0x31] sm:$0xff]
      %v3257 = vld [vmem:[%s856 + $0x41] sm:$0xff]
      %v3258 = vld [vmem:[%s856 + $0x51] sm:$0xff]
      %v3259 = vld [vmem:[%s856 + $0x61] sm:$0xff]
      %v3260 = vld [vmem:[%s856 + $0x71] sm:$0xff]
      %v3261 = vpack.c.bf16 %v3238, %v3237
      %v3262 = vpack.c.bf16 %v3246, %v3245
      %v3263 = vpack.c.bf16 %v3254, %v3253
      %v3264 = vpack.c.bf16 %v3240, %v3239
      %v3265 = vpack.c.bf16 %v3248, %v3247
      %v3266 = vpack.c.bf16 %v3256, %v3255
      %v3267 = vpack.c.bf16 %v3242, %v3241
      %v3268 = vpack.c.bf16 %v3250, %v3249
      %v3269 = vpack.c.bf16 %v3258, %v3257
      %v3270 = vpack.c.bf16 %v3244, %v3243
      %v3271 = vpack.c.bf16 %v3252, %v3251
      %v3272 = vpack.c.bf16 %v3260, %v3259
      %v3273 = vld [vmem:[%s5] sm:$0xf]
      %v3274 = vld [vmem:[%s5 + $0x4] sm:$0xf]
      %v3275 = vld [vmem:[%s5 + $0x8] sm:$0xf]
      %v3276 = vld [vmem:[%s5 + $0xc] sm:$0xf]
      %v3277 = vld [vmem:[%s5 + $0x10] sm:$0xf]
      %v3278 = vld [vmem:[%s5 + $0x14] sm:$0xf]
      %v3279 = vld [vmem:[%s5 + $0x18] sm:$0xf]
      %v3280 = vld [vmem:[%s5 + $0x1c] sm:$0xf]
      %v3281 = vld [vmem:[%s5 + $0x20] sm:$0xf]
      %v3282 = vld [vmem:[%s5 + $0x24] sm:$0xf]
      %v3283 = vld [vmem:[%s5 + $0x28] sm:$0xf]
      %v3284 = vld [vmem:[%s5 + $0x2c] sm:$0xf]
      %v3285 = vld [vmem:[%s5 + $0x30] sm:$0xf]
      %v3286 = vld [vmem:[%s5 + $0x34] sm:$0xf]
      %v3287 = vld [vmem:[%s5 + $0x38] sm:$0xf]
      %v3288 = vld [vmem:[%s5 + $0x3c] sm:$0xf]
      %v3289 = vld [vmem:[%s5 + $0x40] sm:$0xf]
      %v3290 = vld [vmem:[%s5 + $0x44] sm:$0xf]
      %v3291 = vld [vmem:[%s5 + $0x48] sm:$0xf]
      %v3292 = vld [vmem:[%s5 + $0x4c] sm:$0xf]
      %v3293 = vld [vmem:[%s5 + $0x50] sm:$0xf]
      %v3294 = vld [vmem:[%s5 + $0x54] sm:$0xf]
      %v3295 = vld [vmem:[%s5 + $0x58] sm:$0xf]
      %v3296 = vld [vmem:[%s5 + $0x5c] sm:$0xf]
      %v3297 = vld [vmem:[%s5 + $0x60] sm:$0xf]
      %v3298 = vld [vmem:[%s5 + $0x64] sm:$0xf]
      %v3299 = vld [vmem:[%s5 + $0x68] sm:$0xf]
      %v3300 = vld [vmem:[%s5 + $0x6c] sm:$0xf]
      %v3301 = vld [vmem:[%s5 + $0x70] sm:$0xf]
      %v3302 = vld [vmem:[%s5 + $0x74] sm:$0xf]
      %v3303 = vld [vmem:[%s5 + $0x78] sm:$0xf]
      %v3304 = vld [vmem:[%s5 + $0x7c] sm:$0xf]
      %v3305 = vld [vmem:[%s5 + $0x80] sm:$0xf]
      %v3306 = vld [vmem:[%s5 + $0x84] sm:$0xf]
      %v3307 = vld [vmem:[%s5 + $0x88] sm:$0xf]
      %v3308 = vld [vmem:[%s5 + $0x8c] sm:$0xf]
      %v3309 = vld [vmem:[%s5 + $0x90] sm:$0xf]
      %v3310 = vld [vmem:[%s5 + $0x94] sm:$0xf]
      %v3311 = vld [vmem:[%s5 + $0x98] sm:$0xf]
      %v3312 = vld [vmem:[%s5 + $0x9c] sm:$0xf]
      %v3313 = vld [vmem:[%s5 + $0xa0] sm:$0xf]
      %v3314 = vld [vmem:[%s5 + $0xa4] sm:$0xf]
      %v3315 = vld [vmem:[%s5 + $0xa8] sm:$0xf]
      %v3316 = vld [vmem:[%s5 + $0xac] sm:$0xf]
      %v3317 = vld [vmem:[%s5 + $0xb0] sm:$0xf]
      %v3318 = vld [vmem:[%s5 + $0xb4] sm:$0xf]
      %v3319 = vld [vmem:[%s5 + $0xb8] sm:$0xf]
      %v3320 = vld [vmem:[%s5 + $0xbc] sm:$0xf]
      %v3321 = vld [vmem:[%s1189] sm:$0xff]
      %v3322 = vld [vmem:[%s1189 + $0x10] sm:$0xff]
      %v3323 = vld [vmem:[%s1189 + $0x20] sm:$0xff]
      %v3324 = vld [vmem:[%s1189 + $0x30] sm:$0xff]
      %v3325 = vld [vmem:[%s1189 + $0x40] sm:$0xff]
      %v3326 = vld [vmem:[%s1189 + $0x50] sm:$0xff]
      %v3327 = vld [vmem:[%s1189 + $0x60] sm:$0xff]
      %v3328 = vld [vmem:[%s1189 + $0x70] sm:$0xff]
      %v3329 = vld [vmem:[%s1023 + $0x1] sm:$0xff]
      %v3330 = vld [vmem:[%s1023 + $0x11] sm:$0xff]
      %v3331 = vld [vmem:[%s1023 + $0x21] sm:$0xff]
      %v3332 = vld [vmem:[%s1023 + $0x31] sm:$0xff]
      %v3333 = vld [vmem:[%s1023 + $0x41] sm:$0xff]
      %v3334 = vld [vmem:[%s1023 + $0x51] sm:$0xff]
      %v3335 = vld [vmem:[%s1023 + $0x61] sm:$0xff]
      %v3336 = vld [vmem:[%s1023 + $0x71] sm:$0xff]
      %v3337 = vld [vmem:[%s1189 + $0x1] sm:$0xff]
      %v3338 = vld [vmem:[%s1189 + $0x11] sm:$0xff]
      %v3339 = vld [vmem:[%s1189 + $0x21] sm:$0xff]
      %v3340 = vld [vmem:[%s1189 + $0x31] sm:$0xff]
      %v3341 = vld [vmem:[%s1189 + $0x41] sm:$0xff]
      %v3342 = vld [vmem:[%s1189 + $0x51] sm:$0xff]
      %v3343 = vld [vmem:[%s1189 + $0x61] sm:$0xff]
      %v3344 = vld [vmem:[%s1189 + $0x71] sm:$0xff]
      %v3345 = vpack.c.bf16 %v3322, %v3321
      %v3346 = vpack.c.bf16 %v3330, %v3329
      %v3347 = vpack.c.bf16 %v3338, %v3337
      %v3348 = vpack.c.bf16 %v3324, %v3323
      %v3349 = vpack.c.bf16 %v3332, %v3331
      %v3350 = vpack.c.bf16 %v3340, %v3339
      %v3351 = vpack.c.bf16 %v3326, %v3325
      %v3352 = vpack.c.bf16 %v3334, %v3333
      %v3353 = vpack.c.bf16 %v3342, %v3341
      %v3354 = vpack.c.bf16 %v3328, %v3327
      %v3355 = vpack.c.bf16 %v3336, %v3335
      %v3356 = vpack.c.bf16 %v3344, %v3343
      %v3357 = vld [vmem:[%s1324] sm:$0xf]
      %v3358 = vld [vmem:[%s1324 + $0x4] sm:$0xf]
      %v3359 = vld [vmem:[%s1324 + $0x8] sm:$0xf]
      %v3360 = vld [vmem:[%s1324 + $0xc] sm:$0xf]
      %v3361 = vld [vmem:[%s1324 + $0x10] sm:$0xf]
      %v3362 = vld [vmem:[%s1324 + $0x14] sm:$0xf]
      %v3363 = vld [vmem:[%s1324 + $0x18] sm:$0xf]
      %v3364 = vld [vmem:[%s1324 + $0x1c] sm:$0xf]
      %v3365 = vld [vmem:[%s1324 + $0x20] sm:$0xf]
      %v3366 = vld [vmem:[%s1324 + $0x24] sm:$0xf]
      %v3367 = vld [vmem:[%s1324 + $0x28] sm:$0xf]
      %v3368 = vld [vmem:[%s1324 + $0x2c] sm:$0xf]
      %v3369 = vld [vmem:[%s1324 + $0x30] sm:$0xf]
      %v3370 = vld [vmem:[%s1324 + $0x34] sm:$0xf]
      %v3371 = vld [vmem:[%s1324 + $0x38] sm:$0xf]
      %v3372 = vld [vmem:[%s1324 + $0x3c] sm:$0xf]
      %v3373 = vld [vmem:[%s1324 + $0x40] sm:$0xf]
      %v3374 = vld [vmem:[%s1324 + $0x44] sm:$0xf]
      %v3375 = vld [vmem:[%s1324 + $0x48] sm:$0xf]
      %v3376 = vld [vmem:[%s1324 + $0x4c] sm:$0xf]
      %v3377 = vld [vmem:[%s1324 + $0x50] sm:$0xf]
      %v3378 = vld [vmem:[%s1324 + $0x54] sm:$0xf]
      %v3379 = vld [vmem:[%s1324 + $0x58] sm:$0xf]
      %v3380 = vld [vmem:[%s1324 + $0x5c] sm:$0xf]
      %v3381 = vld [vmem:[%s1324 + $0x60] sm:$0xf]
      %v3382 = vld [vmem:[%s1324 + $0x64] sm:$0xf]
      %v3383 = vld [vmem:[%s1324 + $0x68] sm:$0xf]
      %v3384 = vld [vmem:[%s1324 + $0x6c] sm:$0xf]
      %v3385 = vld [vmem:[%s1324 + $0x70] sm:$0xf]
      %v3386 = vld [vmem:[%s1324 + $0x74] sm:$0xf]
      %v3387 = vld [vmem:[%s1324 + $0x78] sm:$0xf]
      %v3388 = vld [vmem:[%s1324 + $0x7c] sm:$0xf]
      %v3389 = vld [vmem:[%s1324 + $0x80] sm:$0xf]
      %v3390 = vld [vmem:[%s1324 + $0x84] sm:$0xf]
      %v3391 = vld [vmem:[%s1324 + $0x88] sm:$0xf]
      %v3392 = vld [vmem:[%s1324 + $0x8c] sm:$0xf]
      %v3393 = vld [vmem:[%s1324 + $0x90] sm:$0xf]
      %v3394 = vld [vmem:[%s1324 + $0x94] sm:$0xf]
      %v3395 = vld [vmem:[%s1324 + $0x98] sm:$0xf]
      %v3396 = vld [vmem:[%s1324 + $0x9c] sm:$0xf]
      %v3397 = vld [vmem:[%s1324 + $0xa0] sm:$0xf]
      %v3398 = vld [vmem:[%s1324 + $0xa4] sm:$0xf]
      %v3399 = vld [vmem:[%s1324 + $0xa8] sm:$0xf]
      %v3400 = vld [vmem:[%s1324 + $0xac] sm:$0xf]
      %v3401 = vld [vmem:[%s1324 + $0xb0] sm:$0xf]
      %v3402 = vld [vmem:[%s1324 + $0xb4] sm:$0xf]
      %v3403 = vld [vmem:[%s1324 + $0xb8] sm:$0xf]
      %v3404 = vld [vmem:[%s1324 + $0xbc] sm:$0xf]
      %v3453 = vunpack.c.l.b16 %v3357
      %v3454 = vunpack.c.l.b16 %v3358
      %v3455 = vunpack.c.l.b16 %v3359
      %v3456 = vunpack.c.l.b16 %v3360
      %v3457 = vunpack.c.l.b16 %v3361
      %v3458 = vunpack.c.l.b16 %v3362
      %v3459 = vunpack.c.l.b16 %v3363
      %v3460 = vunpack.c.l.b16 %v3364
      %v3461 = vunpack.c.l.b16 %v3365
      %v3462 = vunpack.c.l.b16 %v3366
      %v3463 = vunpack.c.l.b16 %v3367
      %v3464 = vunpack.c.l.b16 %v3368
      %v3465 = vunpack.c.l.b16 %v3369
      %v3466 = vunpack.c.l.b16 %v3370
      %v3467 = vunpack.c.l.b16 %v3371
      %v3468 = vunpack.c.l.b16 %v3372
      %v3469 = vunpack.c.l.b16 %v3373
      %v3470 = vunpack.c.l.b16 %v3374
      %v3471 = vunpack.c.l.b16 %v3375
      %v3472 = vunpack.c.l.b16 %v3376
      %v3473 = vunpack.c.l.b16 %v3377
      %v3474 = vunpack.c.l.b16 %v3378
      %v3475 = vunpack.c.l.b16 %v3379
      %v3476 = vunpack.c.l.b16 %v3380
      %v3477 = vunpack.c.l.b16 %v3381
      %v3478 = vunpack.c.l.b16 %v3382
      %v3479 = vunpack.c.l.b16 %v3383
      %v3480 = vunpack.c.l.b16 %v3384
      %v3481 = vunpack.c.l.b16 %v3385
      %v3482 = vunpack.c.l.b16 %v3386
      %v3483 = vunpack.c.l.b16 %v3387
      %v3484 = vunpack.c.l.b16 %v3388
      %v3485 = vunpack.c.l.b16 %v3389
      %v3486 = vunpack.c.l.b16 %v3390
      %v3487 = vunpack.c.l.b16 %v3391
      %v3488 = vunpack.c.l.b16 %v3392
      %v3489 = vunpack.c.l.b16 %v3393
      %v3490 = vunpack.c.l.b16 %v3394
      %v3491 = vunpack.c.l.b16 %v3395
      %v3492 = vunpack.c.l.b16 %v3396
      %v3493 = vunpack.c.l.b16 %v3397
      %v3494 = vunpack.c.l.b16 %v3398
      %v3495 = vunpack.c.l.b16 %v3399
      %v3496 = vunpack.c.l.b16 %v3400
      %v3497 = vunpack.c.l.b16 %v3401
      %v3498 = vunpack.c.l.b16 %v3402
      %v3499 = vunpack.c.l.b16 %v3403
      %v3500 = vunpack.c.l.b16 %v3404
      %v3501 = vpack.c.b16 %v3454, %v3453
      %v3502 = vpack.c.b16 %v3456, %v3455
      %v3503 = vpack.c.b16 %v3458, %v3457
      %v3504 = vpack.c.b16 %v3460, %v3459
      %v3505 = vpack.c.b16 %v3462, %v3461
      %v3506 = vpack.c.b16 %v3464, %v3463
      %v3507 = vpack.c.b16 %v3466, %v3465
      %v3508 = vpack.c.b16 %v3468, %v3467
      %v3509 = vpack.c.b16 %v3470, %v3469
      %v3510 = vpack.c.b16 %v3472, %v3471
      %v3511 = vpack.c.b16 %v3474, %v3473
      %v3512 = vpack.c.b16 %v3476, %v3475
      %v3513 = vpack.c.b16 %v3478, %v3477
      %v3514 = vpack.c.b16 %v3480, %v3479
      %v3515 = vpack.c.b16 %v3482, %v3481
      %v3516 = vpack.c.b16 %v3484, %v3483
      %v3517 = vpack.c.b16 %v3486, %v3485
      %v3518 = vpack.c.b16 %v3488, %v3487
      %v3519 = vpack.c.b16 %v3490, %v3489
      %v3520 = vpack.c.b16 %v3492, %v3491
      %v3521 = vpack.c.b16 %v3494, %v3493
      %v3522 = vpack.c.b16 %v3496, %v3495
      %v3523 = vpack.c.b16 %v3498, %v3497
      %v3524 = vpack.c.b16 %v3500, %v3499
      %3549 = vmatpush.bf16.msra.mxu0 %v3508
      %3550 = vmatpush.bf16.msra.mxu0 %v3507
      %3551 = vmatpush.bf16.msra.mxu0 %v3506
      %3552 = vmatpush.bf16.msra.mxu0 %v3505
      %3553 = vmatpush.bf16.msra.mxu0 %v3504
      %3554 = vmatpush.bf16.msra.mxu0 %v3503
      %3555 = vmatpush.bf16.msra.mxu0 %v3502
      %3556 = vmatpush.bf16.msra.mxu0 %v3501
      %3557 = vmatmul.bf16.gmra.mxu0 %v3345
      %v3558 = vpop.f32.mrf.mxu0
      %v3559 = vadd.f32 0.0, %v3558
      %v3560 = vpop.f32.mrf.mxu0
      %v3561 = vadd.f32 0.0, %v3560
      %3562 = vmatmul.bf16.gmra.mxu0 %v3348
      %v3563 = vpop.f32.mrf.mxu0
      %v3564 = vadd.f32 0.0, %v3563
      %v3565 = vpop.f32.mrf.mxu0
      %v3566 = vadd.f32 0.0, %v3565
      %3567 = vmatmul.bf16.gmra.mxu0 %v3351
      %v3568 = vpop.f32.mrf.mxu0
      %v3569 = vadd.f32 0.0, %v3568
      %v3570 = vpop.f32.mrf.mxu0
      %v3571 = vadd.f32 0.0, %v3570
      %3572 = vmatmul.bf16.gmra.mxu0 %v3354
      %v3573 = vpop.f32.mrf.mxu0
      %v3574 = vadd.f32 0.0, %v3573
      %v3575 = vpop.f32.mrf.mxu0
      %v3576 = vadd.f32 0.0, %v3575
      %3577 = vdwg.mxu0
      %3578 = vmatpush.bf16.msra.mxu0 %v3516
      %3579 = vmatpush.bf16.msra.mxu0 %v3515
      %3580 = vmatpush.bf16.msra.mxu0 %v3514
      %3581 = vmatpush.bf16.msra.mxu0 %v3513
      %3582 = vmatpush.bf16.msra.mxu0 %v3512
      %3583 = vmatpush.bf16.msra.mxu0 %v3511
      %3584 = vmatpush.bf16.msra.mxu0 %v3510
      %3585 = vmatpush.bf16.msra.mxu0 %v3509
      %3586 = vmatmul.bf16.gmra.mxu0 %v3346
      %v3587 = vpop.f32.mrf.mxu0
      %v3588 = vadd.f32 %v3559, %v3587
      %v3589 = vpop.f32.mrf.mxu0
      %v3590 = vadd.f32 %v3561, %v3589
      %3591 = vmatmul.bf16.gmra.mxu0 %v3349
      %v3592 = vpop.f32.mrf.mxu0
      %v3593 = vadd.f32 %v3564, %v3592
      %v3594 = vpop.f32.mrf.mxu0
      %v3595 = vadd.f32 %v3566, %v3594
      %3596 = vmatmul.bf16.gmra.mxu0 %v3352
      %v3597 = vpop.f32.mrf.mxu0
      %v3598 = vadd.f32 %v3569, %v3597
      %v3599 = vpop.f32.mrf.mxu0
      %v3600 = vadd.f32 %v3571, %v3599
      %3601 = vmatmul.bf16.gmra.mxu0 %v3355
      %v3602 = vpop.f32.mrf.mxu0
      %v3603 = vadd.f32 %v3574, %v3602
      %v3604 = vpop.f32.mrf.mxu0
      %v3605 = vadd.f32 %v3576, %v3604
      %3606 = vdwg.mxu0
      %3607 = vmatpush.bf16.msra.mxu0 %v3524
      %3608 = vmatpush.bf16.msra.mxu0 %v3523
      %3609 = vmatpush.bf16.msra.mxu0 %v3522
      %3610 = vmatpush.bf16.msra.mxu0 %v3521
      %3611 = vmatpush.bf16.msra.mxu0 %v3520
      %3612 = vmatpush.bf16.msra.mxu0 %v3519
      %3613 = vmatpush.bf16.msra.mxu0 %v3518
      %3614 = vmatpush.bf16.msra.mxu0 %v3517
      %3615 = vmatmul.bf16.gmra.mxu0 %v3347
      %v3616 = vpop.f32.mrf.mxu0
      %v3617 = vadd.f32 %v3588, %v3616
      %v3618 = vpop.f32.mrf.mxu0
      %v3619 = vadd.f32 %v3590, %v3618
      %3620 = vmatmul.bf16.gmra.mxu0 %v3350
      %v3621 = vpop.f32.mrf.mxu0
      %v3622 = vadd.f32 %v3593, %v3621
      %v3623 = vpop.f32.mrf.mxu0
      %v3624 = vadd.f32 %v3595, %v3623
      %3625 = vmatmul.bf16.gmra.mxu0 %v3353
      %v3626 = vpop.f32.mrf.mxu0
      %v3627 = vadd.f32 %v3598, %v3626
      %v3628 = vpop.f32.mrf.mxu0
      %v3629 = vadd.f32 %v3600, %v3628
      %3630 = vmatmul.bf16.gmra.mxu0 %v3356
      %v3631 = vpop.f32.mrf.mxu0
      %v3632 = vadd.f32 %v3603, %v3631
      %v3633 = vpop.f32.mrf.mxu0
      %v3634 = vadd.f32 %v3605, %v3633
      %3635 = vdwg.mxu0
      %v3684 = vunpack.c.l.b16 %v3273
      %v3685 = vunpack.c.l.b16 %v3274
      %v3686 = vunpack.c.l.b16 %v3275
      %v3687 = vunpack.c.l.b16 %v3276
      %v3688 = vunpack.c.l.b16 %v3277
      %v3689 = vunpack.c.l.b16 %v3278
      %v3690 = vunpack.c.l.b16 %v3279
      %v3691 = vunpack.c.l.b16 %v3280
      %v3692 = vunpack.c.l.b16 %v3281
      %v3693 = vunpack.c.l.b16 %v3282
      %v3694 = vunpack.c.l.b16 %v3283
      %v3695 = vunpack.c.l.b16 %v3284
      %v3696 = vunpack.c.l.b16 %v3285
      %v3697 = vunpack.c.l.b16 %v3286
      %v3698 = vunpack.c.l.b16 %v3287
      %v3699 = vunpack.c.l.b16 %v3288
      %v3700 = vunpack.c.l.b16 %v3289
      %v3701 = vunpack.c.l.b16 %v3290
      %v3702 = vunpack.c.l.b16 %v3291
      %v3703 = vunpack.c.l.b16 %v3292
      %v3704 = vunpack.c.l.b16 %v3293
      %v3705 = vunpack.c.l.b16 %v3294
      %v3706 = vunpack.c.l.b16 %v3295
      %v3707 = vunpack.c.l.b16 %v3296
      %v3708 = vunpack.c.l.b16 %v3297
      %v3709 = vunpack.c.l.b16 %v3298
      %v3710 = vunpack.c.l.b16 %v3299
      %v3711 = vunpack.c.l.b16 %v3300
      %v3712 = vunpack.c.l.b16 %v3301
      %v3713 = vunpack.c.l.b16 %v3302
      %v3714 = vunpack.c.l.b16 %v3303
      %v3715 = vunpack.c.l.b16 %v3304
      %v3716 = vunpack.c.l.b16 %v3305
      %v3717 = vunpack.c.l.b16 %v3306
      %v3718 = vunpack.c.l.b16 %v3307
      %v3719 = vunpack.c.l.b16 %v3308
      %v3720 = vunpack.c.l.b16 %v3309
      %v3721 = vunpack.c.l.b16 %v3310
      %v3722 = vunpack.c.l.b16 %v3311
      %v3723 = vunpack.c.l.b16 %v3312
      %v3724 = vunpack.c.l.b16 %v3313
      %v3725 = vunpack.c.l.b16 %v3314
      %v3726 = vunpack.c.l.b16 %v3315
      %v3727 = vunpack.c.l.b16 %v3316
      %v3728 = vunpack.c.l.b16 %v3317
      %v3729 = vunpack.c.l.b16 %v3318
      %v3730 = vunpack.c.l.b16 %v3319
      %v3731 = vunpack.c.l.b16 %v3320
      %v3732 = vpack.c.b16 %v3685, %v3684
      %v3733 = vpack.c.b16 %v3687, %v3686
      %v3734 = vpack.c.b16 %v3689, %v3688
      %v3735 = vpack.c.b16 %v3691, %v3690
      %v3736 = vpack.c.b16 %v3693, %v3692
      %v3737 = vpack.c.b16 %v3695, %v3694
      %v3738 = vpack.c.b16 %v3697, %v3696
      %v3739 = vpack.c.b16 %v3699, %v3698
      %v3740 = vpack.c.b16 %v3701, %v3700
      %v3741 = vpack.c.b16 %v3703, %v3702
      %v3742 = vpack.c.b16 %v3705, %v3704
      %v3743 = vpack.c.b16 %v3707, %v3706
      %v3744 = vpack.c.b16 %v3709, %v3708
      %v3745 = vpack.c.b16 %v3711, %v3710
      %v3746 = vpack.c.b16 %v3713, %v3712
      %v3747 = vpack.c.b16 %v3715, %v3714
      %v3748 = vpack.c.b16 %v3717, %v3716
      %v3749 = vpack.c.b16 %v3719, %v3718
      %v3750 = vpack.c.b16 %v3721, %v3720
      %v3751 = vpack.c.b16 %v3723, %v3722
      %v3752 = vpack.c.b16 %v3725, %v3724
      %v3753 = vpack.c.b16 %v3727, %v3726
      %v3754 = vpack.c.b16 %v3729, %v3728
      %v3755 = vpack.c.b16 %v3731, %v3730
      %3780 = vmatpush.bf16.msra.mxu0 %v3739
      %3781 = vmatpush.bf16.msra.mxu0 %v3738
      %3782 = vmatpush.bf16.msra.mxu0 %v3737
      %3783 = vmatpush.bf16.msra.mxu0 %v3736
      %3784 = vmatpush.bf16.msra.mxu0 %v3735
      %3785 = vmatpush.bf16.msra.mxu0 %v3734
      %3786 = vmatpush.bf16.msra.mxu0 %v3733
      %3787 = vmatpush.bf16.msra.mxu0 %v3732
      %3788 = vmatmul.bf16.gmra.mxu0 %v3261
      %v3789 = vpop.f32.mrf.mxu0
      %v3790 = vadd.f32 %v3617, %v3789
      %v3791 = vpop.f32.mrf.mxu0
      %v3792 = vadd.f32 %v3619, %v3791
      %3793 = vmatmul.bf16.gmra.mxu0 %v3264
      %v3794 = vpop.f32.mrf.mxu0
      %v3795 = vadd.f32 %v3622, %v3794
      %v3796 = vpop.f32.mrf.mxu0
      %v3797 = vadd.f32 %v3624, %v3796
      %3798 = vmatmul.bf16.gmra.mxu0 %v3267
      %v3799 = vpop.f32.mrf.mxu0
      %v3800 = vadd.f32 %v3627, %v3799
      %v3801 = vpop.f32.mrf.mxu0
      %v3802 = vadd.f32 %v3629, %v3801
      %3803 = vmatmul.bf16.gmra.mxu0 %v3270
      %v3804 = vpop.f32.mrf.mxu0
      %v3805 = vadd.f32 %v3632, %v3804
      %v3806 = vpop.f32.mrf.mxu0
      %v3807 = vadd.f32 %v3634, %v3806
      %3808 = vdwg.mxu0
      %3809 = vmatpush.bf16.msra.mxu0 %v3747
      %3810 = vmatpush.bf16.msra.mxu0 %v3746
      %3811 = vmatpush.bf16.msra.mxu0 %v3745
      %3812 = vmatpush.bf16.msra.mxu0 %v3744
      %3813 = vmatpush.bf16.msra.mxu0 %v3743
      %3814 = vmatpush.bf16.msra.mxu0 %v3742
      %3815 = vmatpush.bf16.msra.mxu0 %v3741
      %3816 = vmatpush.bf16.msra.mxu0 %v3740
      %3817 = vmatmul.bf16.gmra.mxu0 %v3262
      %v3818 = vpop.f32.mrf.mxu0
      %v3819 = vadd.f32 %v3790, %v3818
      %v3820 = vpop.f32.mrf.mxu0
      %v3821 = vadd.f32 %v3792, %v3820
      %3822 = vmatmul.bf16.gmra.mxu0 %v3265
      %v3823 = vpop.f32.mrf.mxu0
      %v3824 = vadd.f32 %v3795, %v3823
      %v3825 = vpop.f32.mrf.mxu0
      %v3826 = vadd.f32 %v3797, %v3825
      %3827 = vmatmul.bf16.gmra.mxu0 %v3268
      %v3828 = vpop.f32.mrf.mxu0
      %v3829 = vadd.f32 %v3800, %v3828
      %v3830 = vpop.f32.mrf.mxu0
      %v3831 = vadd.f32 %v3802, %v3830
      %3832 = vmatmul.bf16.gmra.mxu0 %v3271
      %v3833 = vpop.f32.mrf.mxu0
      %v3834 = vadd.f32 %v3805, %v3833
      %v3835 = vpop.f32.mrf.mxu0
      %v3836 = vadd.f32 %v3807, %v3835
      %3837 = vdwg.mxu0
      %3838 = vmatpush.bf16.msra.mxu0 %v3755
      %3839 = vmatpush.bf16.msra.mxu0 %v3754
      %3840 = vmatpush.bf16.msra.mxu0 %v3753
      %3841 = vmatpush.bf16.msra.mxu0 %v3752
      %3842 = vmatpush.bf16.msra.mxu0 %v3751
      %3843 = vmatpush.bf16.msra.mxu0 %v3750
      %3844 = vmatpush.bf16.msra.mxu0 %v3749
      %3845 = vmatpush.bf16.msra.mxu0 %v3748
      %3846 = vmatmul.bf16.gmra.mxu0 %v3263
      %v3847 = vpop.f32.mrf.mxu0
      %v3848 = vadd.f32 %v3819, %v3847
      %v3849 = vpop.f32.mrf.mxu0
      %v3850 = vadd.f32 %v3821, %v3849
      %3851 = vmatmul.bf16.gmra.mxu0 %v3266
      %v3852 = vpop.f32.mrf.mxu0
      %v3853 = vadd.f32 %v3824, %v3852
      %v3854 = vpop.f32.mrf.mxu0
      %v3855 = vadd.f32 %v3826, %v3854
      %3856 = vmatmul.bf16.gmra.mxu0 %v3269
      %v3857 = vpop.f32.mrf.mxu0
      %v3858 = vadd.f32 %v3829, %v3857
      %v3859 = vpop.f32.mrf.mxu0
      %v3860 = vadd.f32 %v3831, %v3859
      %3861 = vmatmul.bf16.gmra.mxu0 %v3272
      %v3862 = vpop.f32.mrf.mxu0
      %v3863 = vadd.f32 %v3834, %v3862
      %v3864 = vpop.f32.mrf.mxu0
      %v3865 = vadd.f32 %v3836, %v3864
      %3866 = vdwg.mxu0
      %s3867 = scalar_lea.vmem [#allocation2], 192
      %v3868 = vld [vmem:[%s3867] sm:$0xff]
      %v3869 = vld [vmem:[%s3867 + $0x10] sm:$0xff]
      %v3870 = vld [vmem:[%s3867 + $0x20] sm:$0xff]
      %v3871 = vld [vmem:[%s3867 + $0x30] sm:$0xff]
      %v3872 = vld [vmem:[%s3867 + $0x40] sm:$0xff]
      %v3873 = vld [vmem:[%s3867 + $0x50] sm:$0xff]
      %v3874 = vld [vmem:[%s3867 + $0x60] sm:$0xff]
      %v3875 = vld [vmem:[%s3867 + $0x70] sm:$0xff]
      %s3876 = scalar_lea.vmem [#allocation2], 32
      %v3877 = vld [vmem:[%s3876 + $0x1] sm:$0xff]
      %v3878 = vld [vmem:[%s3876 + $0x11] sm:$0xff]
      %v3879 = vld [vmem:[%s3876 + $0x21] sm:$0xff]
      %v3880 = vld [vmem:[%s3876 + $0x31] sm:$0xff]
      %v3881 = vld [vmem:[%s3876 + $0x41] sm:$0xff]
      %v3882 = vld [vmem:[%s3876 + $0x51] sm:$0xff]
      %v3883 = vld [vmem:[%s3876 + $0x61] sm:$0xff]
      %v3884 = vld [vmem:[%s3876 + $0x71] sm:$0xff]
      %v3885 = vld [vmem:[%s3867 + $0x1] sm:$0xff]
      %v3886 = vld [vmem:[%s3867 + $0x11] sm:$0xff]
      %v3887 = vld [vmem:[%s3867 + $0x21] sm:$0xff]
      %v3888 = vld [vmem:[%s3867 + $0x31] sm:$0xff]
      %v3889 = vld [vmem:[%s3867 + $0x41] sm:$0xff]
      %v3890 = vld [vmem:[%s3867 + $0x51] sm:$0xff]
      %v3891 = vld [vmem:[%s3867 + $0x61] sm:$0xff]
      %v3892 = vld [vmem:[%s3867 + $0x71] sm:$0xff]
      %v3893 = vpack.c.bf16 %v3869, %v3868
      %v3894 = vpack.c.bf16 %v3878, %v3877
      %v3895 = vpack.c.bf16 %v3886, %v3885
      %v3896 = vpack.c.bf16 %v3871, %v3870
      %v3897 = vpack.c.bf16 %v3880, %v3879
      %v3898 = vpack.c.bf16 %v3888, %v3887
      %v3899 = vpack.c.bf16 %v3873, %v3872
      %v3900 = vpack.c.bf16 %v3882, %v3881
      %v3901 = vpack.c.bf16 %v3890, %v3889
      %v3902 = vpack.c.bf16 %v3875, %v3874
      %v3903 = vpack.c.bf16 %v3884, %v3883
      %v3904 = vpack.c.bf16 %v3892, %v3891
      %v3905 = vld [vmem:[%s1871] sm:$0xf]
      %v3906 = vld [vmem:[%s1871 + $0x4] sm:$0xf]
      %v3907 = vld [vmem:[%s1871 + $0x8] sm:$0xf]
      %v3908 = vld [vmem:[%s1871 + $0xc] sm:$0xf]
      %v3909 = vld [vmem:[%s1871 + $0x10] sm:$0xf]
      %v3910 = vld [vmem:[%s1871 + $0x14] sm:$0xf]
      %v3911 = vld [vmem:[%s1871 + $0x18] sm:$0xf]
      %v3912 = vld [vmem:[%s1871 + $0x1c] sm:$0xf]
      %v3913 = vld [vmem:[%s1871 + $0x20] sm:$0xf]
      %v3914 = vld [vmem:[%s1871 + $0x24] sm:$0xf]
      %v3915 = vld [vmem:[%s1871 + $0x28] sm:$0xf]
      %v3916 = vld [vmem:[%s1871 + $0x2c] sm:$0xf]
      %v3917 = vld [vmem:[%s1871 + $0x30] sm:$0xf]
      %v3918 = vld [vmem:[%s1871 + $0x34] sm:$0xf]
      %v3919 = vld [vmem:[%s1871 + $0x38] sm:$0xf]
      %v3920 = vld [vmem:[%s1871 + $0x3c] sm:$0xf]
      %v3921 = vld [vmem:[%s1871 + $0x40] sm:$0xf]
      %v3922 = vld [vmem:[%s1871 + $0x44] sm:$0xf]
      %v3923 = vld [vmem:[%s1871 + $0x48] sm:$0xf]
      %v3924 = vld [vmem:[%s1871 + $0x4c] sm:$0xf]
      %v3925 = vld [vmem:[%s1871 + $0x50] sm:$0xf]
      %v3926 = vld [vmem:[%s1871 + $0x54] sm:$0xf]
      %v3927 = vld [vmem:[%s1871 + $0x58] sm:$0xf]
      %v3928 = vld [vmem:[%s1871 + $0x5c] sm:$0xf]
      %v3929 = vld [vmem:[%s1871 + $0x60] sm:$0xf]
      %v3930 = vld [vmem:[%s1871 + $0x64] sm:$0xf]
      %v3931 = vld [vmem:[%s1871 + $0x68] sm:$0xf]
      %v3932 = vld [vmem:[%s1871 + $0x6c] sm:$0xf]
      %v3933 = vld [vmem:[%s1871 + $0x70] sm:$0xf]
      %v3934 = vld [vmem:[%s1871 + $0x74] sm:$0xf]
      %v3935 = vld [vmem:[%s1871 + $0x78] sm:$0xf]
      %v3936 = vld [vmem:[%s1871 + $0x7c] sm:$0xf]
      %v3937 = vld [vmem:[%s1871 + $0x80] sm:$0xf]
      %v3938 = vld [vmem:[%s1871 + $0x84] sm:$0xf]
      %v3939 = vld [vmem:[%s1871 + $0x88] sm:$0xf]
      %v3940 = vld [vmem:[%s1871 + $0x8c] sm:$0xf]
      %v3941 = vld [vmem:[%s1871 + $0x90] sm:$0xf]
      %v3942 = vld [vmem:[%s1871 + $0x94] sm:$0xf]
      %v3943 = vld [vmem:[%s1871 + $0x98] sm:$0xf]
      %v3944 = vld [vmem:[%s1871 + $0x9c] sm:$0xf]
      %v3945 = vld [vmem:[%s1871 + $0xa0] sm:$0xf]
      %v3946 = vld [vmem:[%s1871 + $0xa4] sm:$0xf]
      %v3947 = vld [vmem:[%s1871 + $0xa8] sm:$0xf]
      %v3948 = vld [vmem:[%s1871 + $0xac] sm:$0xf]
      %v3949 = vld [vmem:[%s1871 + $0xb0] sm:$0xf]
      %v3950 = vld [vmem:[%s1871 + $0xb4] sm:$0xf]
      %v3951 = vld [vmem:[%s1871 + $0xb8] sm:$0xf]
      %v3952 = vld [vmem:[%s1871 + $0xbc] sm:$0xf]
      %v4001 = vunpack.c.l.b16 %v3905
      %v4002 = vunpack.c.l.b16 %v3906
      %v4003 = vunpack.c.l.b16 %v3907
      %v4004 = vunpack.c.l.b16 %v3908
      %v4005 = vunpack.c.l.b16 %v3909
      %v4006 = vunpack.c.l.b16 %v3910
      %v4007 = vunpack.c.l.b16 %v3911
      %v4008 = vunpack.c.l.b16 %v3912
      %v4009 = vunpack.c.l.b16 %v3913
      %v4010 = vunpack.c.l.b16 %v3914
      %v4011 = vunpack.c.l.b16 %v3915
      %v4012 = vunpack.c.l.b16 %v3916
      %v4013 = vunpack.c.l.b16 %v3917
      %v4014 = vunpack.c.l.b16 %v3918
      %v4015 = vunpack.c.l.b16 %v3919
      %v4016 = vunpack.c.l.b16 %v3920
      %v4017 = vunpack.c.l.b16 %v3921
      %v4018 = vunpack.c.l.b16 %v3922
      %v4019 = vunpack.c.l.b16 %v3923
      %v4020 = vunpack.c.l.b16 %v3924
      %v4021 = vunpack.c.l.b16 %v3925
      %v4022 = vunpack.c.l.b16 %v3926
      %v4023 = vunpack.c.l.b16 %v3927
      %v4024 = vunpack.c.l.b16 %v3928
      %v4025 = vunpack.c.l.b16 %v3929
      %v4026 = vunpack.c.l.b16 %v3930
      %v4027 = vunpack.c.l.b16 %v3931
      %v4028 = vunpack.c.l.b16 %v3932
      %v4029 = vunpack.c.l.b16 %v3933
      %v4030 = vunpack.c.l.b16 %v3934
      %v4031 = vunpack.c.l.b16 %v3935
      %v4032 = vunpack.c.l.b16 %v3936
      %v4033 = vunpack.c.l.b16 %v3937
      %v4034 = vunpack.c.l.b16 %v3938
      %v4035 = vunpack.c.l.b16 %v3939
      %v4036 = vunpack.c.l.b16 %v3940
      %v4037 = vunpack.c.l.b16 %v3941
      %v4038 = vunpack.c.l.b16 %v3942
      %v4039 = vunpack.c.l.b16 %v3943
      %v4040 = vunpack.c.l.b16 %v3944
      %v4041 = vunpack.c.l.b16 %v3945
      %v4042 = vunpack.c.l.b16 %v3946
      %v4043 = vunpack.c.l.b16 %v3947
      %v4044 = vunpack.c.l.b16 %v3948
      %v4045 = vunpack.c.l.b16 %v3949
      %v4046 = vunpack.c.l.b16 %v3950
      %v4047 = vunpack.c.l.b16 %v3951
      %v4048 = vunpack.c.l.b16 %v3952
      %v4049 = vpack.c.b16 %v4002, %v4001
      %v4050 = vpack.c.b16 %v4004, %v4003
      %v4051 = vpack.c.b16 %v4006, %v4005
      %v4052 = vpack.c.b16 %v4008, %v4007
      %v4053 = vpack.c.b16 %v4010, %v4009
      %v4054 = vpack.c.b16 %v4012, %v4011
      %v4055 = vpack.c.b16 %v4014, %v4013
      %v4056 = vpack.c.b16 %v4016, %v4015
      %v4057 = vpack.c.b16 %v4018, %v4017
      %v4058 = vpack.c.b16 %v4020, %v4019
      %v4059 = vpack.c.b16 %v4022, %v4021
      %v4060 = vpack.c.b16 %v4024, %v4023
      %v4061 = vpack.c.b16 %v4026, %v4025
      %v4062 = vpack.c.b16 %v4028, %v4027
      %v4063 = vpack.c.b16 %v4030, %v4029
      %v4064 = vpack.c.b16 %v4032, %v4031
      %v4065 = vpack.c.b16 %v4034, %v4033
      %v4066 = vpack.c.b16 %v4036, %v4035
      %v4067 = vpack.c.b16 %v4038, %v4037
      %v4068 = vpack.c.b16 %v4040, %v4039
      %v4069 = vpack.c.b16 %v4042, %v4041
      %v4070 = vpack.c.b16 %v4044, %v4043
      %v4071 = vpack.c.b16 %v4046, %v4045
      %v4072 = vpack.c.b16 %v4048, %v4047
      %4097 = vmatpush.bf16.msra.mxu0 %v4056
      %4098 = vmatpush.bf16.msra.mxu0 %v4055
      %4099 = vmatpush.bf16.msra.mxu0 %v4054
      %4100 = vmatpush.bf16.msra.mxu0 %v4053
      %4101 = vmatpush.bf16.msra.mxu0 %v4052
      %4102 = vmatpush.bf16.msra.mxu0 %v4051
      %4103 = vmatpush.bf16.msra.mxu0 %v4050
      %4104 = vmatpush.bf16.msra.mxu0 %v4049
      %4105 = vmatmul.bf16.gmra.mxu0 %v3893
      %v4106 = vpop.f32.mrf.mxu0
      %v4107 = vadd.f32 0.0, %v4106
      %v4108 = vpop.f32.mrf.mxu0
      %v4109 = vadd.f32 0.0, %v4108
      %4110 = vmatmul.bf16.gmra.mxu0 %v3896
      %v4111 = vpop.f32.mrf.mxu0
      %v4112 = vadd.f32 0.0, %v4111
      %v4113 = vpop.f32.mrf.mxu0
      %v4114 = vadd.f32 0.0, %v4113
      %4115 = vmatmul.bf16.gmra.mxu0 %v3899
      %v4116 = vpop.f32.mrf.mxu0
      %v4117 = vadd.f32 0.0, %v4116
      %v4118 = vpop.f32.mrf.mxu0
      %v4119 = vadd.f32 0.0, %v4118
      %4120 = vmatmul.bf16.gmra.mxu0 %v3902
      %v4121 = vpop.f32.mrf.mxu0
      %v4122 = vadd.f32 0.0, %v4121
      %v4123 = vpop.f32.mrf.mxu0
      %v4124 = vadd.f32 0.0, %v4123
      %4125 = vdwg.mxu0
      %4126 = vmatpush.bf16.msra.mxu0 %v4064
      %4127 = vmatpush.bf16.msra.mxu0 %v4063
      %4128 = vmatpush.bf16.msra.mxu0 %v4062
      %4129 = vmatpush.bf16.msra.mxu0 %v4061
      %4130 = vmatpush.bf16.msra.mxu0 %v4060
      %4131 = vmatpush.bf16.msra.mxu0 %v4059
      %4132 = vmatpush.bf16.msra.mxu0 %v4058
      %4133 = vmatpush.bf16.msra.mxu0 %v4057
      %4134 = vmatmul.bf16.gmra.mxu0 %v3894
      %v4135 = vpop.f32.mrf.mxu0
      %v4136 = vadd.f32 %v4107, %v4135
      %v4137 = vpop.f32.mrf.mxu0
      %v4138 = vadd.f32 %v4109, %v4137
      %4139 = vmatmul.bf16.gmra.mxu0 %v3897
      %v4140 = vpop.f32.mrf.mxu0
      %v4141 = vadd.f32 %v4112, %v4140
      %v4142 = vpop.f32.mrf.mxu0
      %v4143 = vadd.f32 %v4114, %v4142
      %4144 = vmatmul.bf16.gmra.mxu0 %v3900
      %v4145 = vpop.f32.mrf.mxu0
      %v4146 = vadd.f32 %v4117, %v4145
      %v4147 = vpop.f32.mrf.mxu0
      %v4148 = vadd.f32 %v4119, %v4147
      %4149 = vmatmul.bf16.gmra.mxu0 %v3903
      %v4150 = vpop.f32.mrf.mxu0
      %v4151 = vadd.f32 %v4122, %v4150
      %v4152 = vpop.f32.mrf.mxu0
      %v4153 = vadd.f32 %v4124, %v4152
      %4154 = vdwg.mxu0
      %4155 = vmatpush.bf16.msra.mxu0 %v4072
      %4156 = vmatpush.bf16.msra.mxu0 %v4071
      %4157 = vmatpush.bf16.msra.mxu0 %v4070
      %4158 = vmatpush.bf16.msra.mxu0 %v4069
      %4159 = vmatpush.bf16.msra.mxu0 %v4068
      %4160 = vmatpush.bf16.msra.mxu0 %v4067
      %4161 = vmatpush.bf16.msra.mxu0 %v4066
      %4162 = vmatpush.bf16.msra.mxu0 %v4065
      %4163 = vmatmul.bf16.gmra.mxu0 %v3895
      %v4164 = vpop.f32.mrf.mxu0
      %v4165 = vadd.f32 %v4136, %v4164
      %v4166 = vpop.f32.mrf.mxu0
      %v4167 = vadd.f32 %v4138, %v4166
      %4168 = vmatmul.bf16.gmra.mxu0 %v3898
      %v4169 = vpop.f32.mrf.mxu0
      %v4170 = vadd.f32 %v4141, %v4169
      %v4171 = vpop.f32.mrf.mxu0
      %v4172 = vadd.f32 %v4143, %v4171
      %4173 = vmatmul.bf16.gmra.mxu0 %v3901
      %v4174 = vpop.f32.mrf.mxu0
      %v4175 = vadd.f32 %v4146, %v4174
      %v4176 = vpop.f32.mrf.mxu0
      %v4177 = vadd.f32 %v4148, %v4176
      %4178 = vmatmul.bf16.gmra.mxu0 %v3904
      %v4179 = vpop.f32.mrf.mxu0
      %v4180 = vadd.f32 %v4151, %v4179
      %v4181 = vpop.f32.mrf.mxu0
      %v4182 = vadd.f32 %v4153, %v4181
      %4183 = vdwg.mxu0
      %v4184 = vadd.f32 %v3848, %v4165
      %v4185 = vadd.f32 %v3850, %v4167
      %v4186 = vadd.f32 %v3853, %v4170
      %v4187 = vadd.f32 %v3855, %v4172
      %v4188 = vadd.f32 %v3858, %v4175
      %v4189 = vadd.f32 %v3860, %v4177
      %v4190 = vadd.f32 %v3863, %v4180
      %v4191 = vadd.f32 %v3865, %v4182
      %v4192 = vmul.f32 %v4184, %v2160
      %v4193 = vmul.f32 %v4185, %v2160
      %v4194 = vmul.f32 %v4186, %v2160
      %v4195 = vmul.f32 %v4187, %v2160
      %v4196 = vmul.f32 %v4188, %v2160
      %v4197 = vmul.f32 %v4189, %v2160
      %v4198 = vmul.f32 %v4190, %v2160
      %v4199 = vmul.f32 %v4191, %v2160
      %v4200 = vadd.f32 %v4192, %v2171
      %v4201 = vadd.f32 %v4193, %v2171
      %v4202 = vadd.f32 %v4194, %v2171
      %v4203 = vadd.f32 %v4195, %v2171
      %v4204 = vadd.f32 %v4196, %v2171
      %v4205 = vadd.f32 %v4197, %v2171
      %v4206 = vadd.f32 %v4198, %v2171
      %v4207 = vadd.f32 %v4199, %v2171
      %v4208 = vmax.f32 %v4200, 0.0
      %v4209 = vmax.f32 %v4201, 0.0
      %v4210 = vmax.f32 %v4202, 0.0
      %v4211 = vmax.f32 %v4203, 0.0
      %v4212 = vmax.f32 %v4204, 0.0
      %v4213 = vmax.f32 %v4205, 0.0
      %v4214 = vmax.f32 %v4206, 0.0
      %v4215 = vmax.f32 %v4207, 0.0
      %v4216 = vpack.c.bf16 %v4209, %v4208
      %v4217 = vpack.c.bf16 %v4211, %v4210
      %v4218 = vpack.c.bf16 %v4213, %v4212
      %v4219 = vpack.c.bf16 %v4215, %v4214
      %v4221 = vsel %vm2198, %v4216, 0
      %v4224 = vsel %vm2198, %v4217, 0
      %v4227 = vsel %vm2198, %v4218, 0
      %v4230 = vsel %vm2198, %v4219, 0
      %4232 = vmatpush.bf16.xpose.msra.mxu0 0
      %4233 = vmatpush.bf16.xpose.msra.mxu0 0
      %4234 = vmatpush.bf16.xpose.msra.mxu0 0
      %4235 = vmatpush.bf16.xpose.msra.mxu0 0
      %4236 = vmatpush.bf16.xpose.msra.mxu0 %v4230
      %4237 = vmatpush.bf16.xpose.msra.mxu0 %v4227
      %4238 = vmatpush.bf16.xpose.msra.mxu0 %v4224
      %4239 = vmatpush.bf16.xpose.msra.mxu0 %v4221
      %4240 = vmatmul.bf16.gmra.mxu0 %v2200
      %v4241 = vpop.f32.mrf.mxu0
      %v4242 = vadd.f32 %v2196, %v4241
      %v4243 = vpop.f32.mrf.mxu0
      %4244 = vdwg.mxu0
      %s4245 = scalar_lea.vmem %s359, 8
      %4246 = vst.msk [vmem:[%s4245] sm:$0x7] %vm2227, %v4242
      %v4247 = vld [vmem:[%s690 + $0x1] sm:$0xff]
      %v4248 = vld [vmem:[%s690 + $0x11] sm:$0xff]
      %v4249 = vld [vmem:[%s690 + $0x21] sm:$0xff]
      %v4250 = vld [vmem:[%s690 + $0x31] sm:$0xff]
      %v4251 = vld [vmem:[%s690 + $0x41] sm:$0xff]
      %v4252 = vld [vmem:[%s690 + $0x51] sm:$0xff]
      %v4253 = vld [vmem:[%s690 + $0x61] sm:$0xff]
      %v4254 = vld [vmem:[%s690 + $0x71] sm:$0xff]
      %v4255 = vld [vmem:[%s856 + $0x1] sm:$0xff]
      %v4256 = vld [vmem:[%s856 + $0x11] sm:$0xff]
      %v4257 = vld [vmem:[%s856 + $0x21] sm:$0xff]
      %v4258 = vld [vmem:[%s856 + $0x31] sm:$0xff]
      %v4259 = vld [vmem:[%s856 + $0x41] sm:$0xff]
      %v4260 = vld [vmem:[%s856 + $0x51] sm:$0xff]
      %v4261 = vld [vmem:[%s856 + $0x61] sm:$0xff]
      %v4262 = vld [vmem:[%s856 + $0x71] sm:$0xff]
      %v4263 = vld [vmem:[%s690 + $0x2] sm:$0xff]
      %v4264 = vld [vmem:[%s690 + $0x12] sm:$0xff]
      %v4265 = vld [vmem:[%s690 + $0x22] sm:$0xff]
      %v4266 = vld [vmem:[%s690 + $0x32] sm:$0xff]
      %v4267 = vld [vmem:[%s690 + $0x42] sm:$0xff]
      %v4268 = vld [vmem:[%s690 + $0x52] sm:$0xff]
      %v4269 = vld [vmem:[%s690 + $0x62] sm:$0xff]
      %v4270 = vld [vmem:[%s690 + $0x72] sm:$0xff]
      %v4271 = vpack.c.bf16 %v4248, %v4247
      %v4272 = vpack.c.bf16 %v4256, %v4255
      %v4273 = vpack.c.bf16 %v4264, %v4263
      %v4274 = vpack.c.bf16 %v4250, %v4249
      %v4275 = vpack.c.bf16 %v4258, %v4257
      %v4276 = vpack.c.bf16 %v4266, %v4265
      %v4277 = vpack.c.bf16 %v4252, %v4251
      %v4278 = vpack.c.bf16 %v4260, %v4259
      %v4279 = vpack.c.bf16 %v4268, %v4267
      %v4280 = vpack.c.bf16 %v4254, %v4253
      %v4281 = vpack.c.bf16 %v4262, %v4261
      %v4282 = vpack.c.bf16 %v4270, %v4269
      %v4283 = vld [vmem:[%s5] sm:$0xf]
      %v4284 = vld [vmem:[%s5 + $0x4] sm:$0xf]
      %v4285 = vld [vmem:[%s5 + $0x8] sm:$0xf]
      %v4286 = vld [vmem:[%s5 + $0xc] sm:$0xf]
      %v4287 = vld [vmem:[%s5 + $0x10] sm:$0xf]
      %v4288 = vld [vmem:[%s5 + $0x14] sm:$0xf]
      %v4289 = vld [vmem:[%s5 + $0x18] sm:$0xf]
      %v4290 = vld [vmem:[%s5 + $0x1c] sm:$0xf]
      %v4291 = vld [vmem:[%s5 + $0x20] sm:$0xf]
      %v4292 = vld [vmem:[%s5 + $0x24] sm:$0xf]
      %v4293 = vld [vmem:[%s5 + $0x28] sm:$0xf]
      %v4294 = vld [vmem:[%s5 + $0x2c] sm:$0xf]
      %v4295 = vld [vmem:[%s5 + $0x30] sm:$0xf]
      %v4296 = vld [vmem:[%s5 + $0x34] sm:$0xf]
      %v4297 = vld [vmem:[%s5 + $0x38] sm:$0xf]
      %v4298 = vld [vmem:[%s5 + $0x3c] sm:$0xf]
      %v4299 = vld [vmem:[%s5 + $0x40] sm:$0xf]
      %v4300 = vld [vmem:[%s5 + $0x44] sm:$0xf]
      %v4301 = vld [vmem:[%s5 + $0x48] sm:$0xf]
      %v4302 = vld [vmem:[%s5 + $0x4c] sm:$0xf]
      %v4303 = vld [vmem:[%s5 + $0x50] sm:$0xf]
      %v4304 = vld [vmem:[%s5 + $0x54] sm:$0xf]
      %v4305 = vld [vmem:[%s5 + $0x58] sm:$0xf]
      %v4306 = vld [vmem:[%s5 + $0x5c] sm:$0xf]
      %v4307 = vld [vmem:[%s5 + $0x60] sm:$0xf]
      %v4308 = vld [vmem:[%s5 + $0x64] sm:$0xf]
      %v4309 = vld [vmem:[%s5 + $0x68] sm:$0xf]
      %v4310 = vld [vmem:[%s5 + $0x6c] sm:$0xf]
      %v4311 = vld [vmem:[%s5 + $0x70] sm:$0xf]
      %v4312 = vld [vmem:[%s5 + $0x74] sm:$0xf]
      %v4313 = vld [vmem:[%s5 + $0x78] sm:$0xf]
      %v4314 = vld [vmem:[%s5 + $0x7c] sm:$0xf]
      %v4315 = vld [vmem:[%s5 + $0x80] sm:$0xf]
      %v4316 = vld [vmem:[%s5 + $0x84] sm:$0xf]
      %v4317 = vld [vmem:[%s5 + $0x88] sm:$0xf]
      %v4318 = vld [vmem:[%s5 + $0x8c] sm:$0xf]
      %v4319 = vld [vmem:[%s5 + $0x90] sm:$0xf]
      %v4320 = vld [vmem:[%s5 + $0x94] sm:$0xf]
      %v4321 = vld [vmem:[%s5 + $0x98] sm:$0xf]
      %v4322 = vld [vmem:[%s5 + $0x9c] sm:$0xf]
      %v4323 = vld [vmem:[%s5 + $0xa0] sm:$0xf]
      %v4324 = vld [vmem:[%s5 + $0xa4] sm:$0xf]
      %v4325 = vld [vmem:[%s5 + $0xa8] sm:$0xf]
      %v4326 = vld [vmem:[%s5 + $0xac] sm:$0xf]
      %v4327 = vld [vmem:[%s5 + $0xb0] sm:$0xf]
      %v4328 = vld [vmem:[%s5 + $0xb4] sm:$0xf]
      %v4329 = vld [vmem:[%s5 + $0xb8] sm:$0xf]
      %v4330 = vld [vmem:[%s5 + $0xbc] sm:$0xf]
      %v4331 = vld [vmem:[%s1023 + $0x1] sm:$0xff]
      %v4332 = vld [vmem:[%s1023 + $0x11] sm:$0xff]
      %v4333 = vld [vmem:[%s1023 + $0x21] sm:$0xff]
      %v4334 = vld [vmem:[%s1023 + $0x31] sm:$0xff]
      %v4335 = vld [vmem:[%s1023 + $0x41] sm:$0xff]
      %v4336 = vld [vmem:[%s1023 + $0x51] sm:$0xff]
      %v4337 = vld [vmem:[%s1023 + $0x61] sm:$0xff]
      %v4338 = vld [vmem:[%s1023 + $0x71] sm:$0xff]
      %v4339 = vld [vmem:[%s1189 + $0x1] sm:$0xff]
      %v4340 = vld [vmem:[%s1189 + $0x11] sm:$0xff]
      %v4341 = vld [vmem:[%s1189 + $0x21] sm:$0xff]
      %v4342 = vld [vmem:[%s1189 + $0x31] sm:$0xff]
      %v4343 = vld [vmem:[%s1189 + $0x41] sm:$0xff]
      %v4344 = vld [vmem:[%s1189 + $0x51] sm:$0xff]
      %v4345 = vld [vmem:[%s1189 + $0x61] sm:$0xff]
      %v4346 = vld [vmem:[%s1189 + $0x71] sm:$0xff]
      %v4347 = vld [vmem:[%s1023 + $0x2] sm:$0xff]
      %v4348 = vld [vmem:[%s1023 + $0x12] sm:$0xff]
      %v4349 = vld [vmem:[%s1023 + $0x22] sm:$0xff]
      %v4350 = vld [vmem:[%s1023 + $0x32] sm:$0xff]
      %v4351 = vld [vmem:[%s1023 + $0x42] sm:$0xff]
      %v4352 = vld [vmem:[%s1023 + $0x52] sm:$0xff]
      %v4353 = vld [vmem:[%s1023 + $0x62] sm:$0xff]
      %v4354 = vld [vmem:[%s1023 + $0x72] sm:$0xff]
      %v4355 = vpack.c.bf16 %v4332, %v4331
      %v4356 = vpack.c.bf16 %v4340, %v4339
      %v4357 = vpack.c.bf16 %v4348, %v4347
      %v4358 = vpack.c.bf16 %v4334, %v4333
      %v4359 = vpack.c.bf16 %v4342, %v4341
      %v4360 = vpack.c.bf16 %v4350, %v4349
      %v4361 = vpack.c.bf16 %v4336, %v4335
      %v4362 = vpack.c.bf16 %v4344, %v4343
      %v4363 = vpack.c.bf16 %v4352, %v4351
      %v4364 = vpack.c.bf16 %v4338, %v4337
      %v4365 = vpack.c.bf16 %v4346, %v4345
      %v4366 = vpack.c.bf16 %v4354, %v4353
      %v4367 = vld [vmem:[%s1324] sm:$0xf]
      %v4368 = vld [vmem:[%s1324 + $0x4] sm:$0xf]
      %v4369 = vld [vmem:[%s1324 + $0x8] sm:$0xf]
      %v4370 = vld [vmem:[%s1324 + $0xc] sm:$0xf]
      %v4371 = vld [vmem:[%s1324 + $0x10] sm:$0xf]
      %v4372 = vld [vmem:[%s1324 + $0x14] sm:$0xf]
      %v4373 = vld [vmem:[%s1324 + $0x18] sm:$0xf]
      %v4374 = vld [vmem:[%s1324 + $0x1c] sm:$0xf]
      %v4375 = vld [vmem:[%s1324 + $0x20] sm:$0xf]
      %v4376 = vld [vmem:[%s1324 + $0x24] sm:$0xf]
      %v4377 = vld [vmem:[%s1324 + $0x28] sm:$0xf]
      %v4378 = vld [vmem:[%s1324 + $0x2c] sm:$0xf]
      %v4379 = vld [vmem:[%s1324 + $0x30] sm:$0xf]
      %v4380 = vld [vmem:[%s1324 + $0x34] sm:$0xf]
      %v4381 = vld [vmem:[%s1324 + $0x38] sm:$0xf]
      %v4382 = vld [vmem:[%s1324 + $0x3c] sm:$0xf]
      %v4383 = vld [vmem:[%s1324 + $0x40] sm:$0xf]
      %v4384 = vld [vmem:[%s1324 + $0x44] sm:$0xf]
      %v4385 = vld [vmem:[%s1324 + $0x48] sm:$0xf]
      %v4386 = vld [vmem:[%s1324 + $0x4c] sm:$0xf]
      %v4387 = vld [vmem:[%s1324 + $0x50] sm:$0xf]
      %v4388 = vld [vmem:[%s1324 + $0x54] sm:$0xf]
      %v4389 = vld [vmem:[%s1324 + $0x58] sm:$0xf]
      %v4390 = vld [vmem:[%s1324 + $0x5c] sm:$0xf]
      %v4391 = vld [vmem:[%s1324 + $0x60] sm:$0xf]
      %v4392 = vld [vmem:[%s1324 + $0x64] sm:$0xf]
      %v4393 = vld [vmem:[%s1324 + $0x68] sm:$0xf]
      %v4394 = vld [vmem:[%s1324 + $0x6c] sm:$0xf]
      %v4395 = vld [vmem:[%s1324 + $0x70] sm:$0xf]
      %v4396 = vld [vmem:[%s1324 + $0x74] sm:$0xf]
      %v4397 = vld [vmem:[%s1324 + $0x78] sm:$0xf]
      %v4398 = vld [vmem:[%s1324 + $0x7c] sm:$0xf]
      %v4399 = vld [vmem:[%s1324 + $0x80] sm:$0xf]
      %v4400 = vld [vmem:[%s1324 + $0x84] sm:$0xf]
      %v4401 = vld [vmem:[%s1324 + $0x88] sm:$0xf]
      %v4402 = vld [vmem:[%s1324 + $0x8c] sm:$0xf]
      %v4403 = vld [vmem:[%s1324 + $0x90] sm:$0xf]
      %v4404 = vld [vmem:[%s1324 + $0x94] sm:$0xf]
      %v4405 = vld [vmem:[%s1324 + $0x98] sm:$0xf]
      %v4406 = vld [vmem:[%s1324 + $0x9c] sm:$0xf]
      %v4407 = vld [vmem:[%s1324 + $0xa0] sm:$0xf]
      %v4408 = vld [vmem:[%s1324 + $0xa4] sm:$0xf]
      %v4409 = vld [vmem:[%s1324 + $0xa8] sm:$0xf]
      %v4410 = vld [vmem:[%s1324 + $0xac] sm:$0xf]
      %v4411 = vld [vmem:[%s1324 + $0xb0] sm:$0xf]
      %v4412 = vld [vmem:[%s1324 + $0xb4] sm:$0xf]
      %v4413 = vld [vmem:[%s1324 + $0xb8] sm:$0xf]
      %v4414 = vld [vmem:[%s1324 + $0xbc] sm:$0xf]
      %v4463 = vunpack.c.l.b16 %v4367
      %v4464 = vunpack.c.l.b16 %v4368
      %v4465 = vunpack.c.l.b16 %v4369
      %v4466 = vunpack.c.l.b16 %v4370
      %v4467 = vunpack.c.l.b16 %v4371
      %v4468 = vunpack.c.l.b16 %v4372
      %v4469 = vunpack.c.l.b16 %v4373
      %v4470 = vunpack.c.l.b16 %v4374
      %v4471 = vunpack.c.l.b16 %v4375
      %v4472 = vunpack.c.l.b16 %v4376
      %v4473 = vunpack.c.l.b16 %v4377
      %v4474 = vunpack.c.l.b16 %v4378
      %v4475 = vunpack.c.l.b16 %v4379
      %v4476 = vunpack.c.l.b16 %v4380
      %v4477 = vunpack.c.l.b16 %v4381
      %v4478 = vunpack.c.l.b16 %v4382
      %v4479 = vunpack.c.l.b16 %v4383
      %v4480 = vunpack.c.l.b16 %v4384
      %v4481 = vunpack.c.l.b16 %v4385
      %v4482 = vunpack.c.l.b16 %v4386
      %v4483 = vunpack.c.l.b16 %v4387
      %v4484 = vunpack.c.l.b16 %v4388
      %v4485 = vunpack.c.l.b16 %v4389
      %v4486 = vunpack.c.l.b16 %v4390
      %v4487 = vunpack.c.l.b16 %v4391
      %v4488 = vunpack.c.l.b16 %v4392
      %v4489 = vunpack.c.l.b16 %v4393
      %v4490 = vunpack.c.l.b16 %v4394
      %v4491 = vunpack.c.l.b16 %v4395
      %v4492 = vunpack.c.l.b16 %v4396
      %v4493 = vunpack.c.l.b16 %v4397
      %v4494 = vunpack.c.l.b16 %v4398
      %v4495 = vunpack.c.l.b16 %v4399
      %v4496 = vunpack.c.l.b16 %v4400
      %v4497 = vunpack.c.l.b16 %v4401
      %v4498 = vunpack.c.l.b16 %v4402
      %v4499 = vunpack.c.l.b16 %v4403
      %v4500 = vunpack.c.l.b16 %v4404
      %v4501 = vunpack.c.l.b16 %v4405
      %v4502 = vunpack.c.l.b16 %v4406
      %v4503 = vunpack.c.l.b16 %v4407
      %v4504 = vunpack.c.l.b16 %v4408
      %v4505 = vunpack.c.l.b16 %v4409
      %v4506 = vunpack.c.l.b16 %v4410
      %v4507 = vunpack.c.l.b16 %v4411
      %v4508 = vunpack.c.l.b16 %v4412
      %v4509 = vunpack.c.l.b16 %v4413
      %v4510 = vunpack.c.l.b16 %v4414
      %v4511 = vpack.c.b16 %v4464, %v4463
      %v4512 = vpack.c.b16 %v4466, %v4465
      %v4513 = vpack.c.b16 %v4468, %v4467
      %v4514 = vpack.c.b16 %v4470, %v4469
      %v4515 = vpack.c.b16 %v4472, %v4471
      %v4516 = vpack.c.b16 %v4474, %v4473
      %v4517 = vpack.c.b16 %v4476, %v4475
      %v4518 = vpack.c.b16 %v4478, %v4477
      %v4519 = vpack.c.b16 %v4480, %v4479
      %v4520 = vpack.c.b16 %v4482, %v4481
      %v4521 = vpack.c.b16 %v4484, %v4483
      %v4522 = vpack.c.b16 %v4486, %v4485
      %v4523 = vpack.c.b16 %v4488, %v4487
      %v4524 = vpack.c.b16 %v4490, %v4489
      %v4525 = vpack.c.b16 %v4492, %v4491
      %v4526 = vpack.c.b16 %v4494, %v4493
      %v4527 = vpack.c.b16 %v4496, %v4495
      %v4528 = vpack.c.b16 %v4498, %v4497
      %v4529 = vpack.c.b16 %v4500, %v4499
      %v4530 = vpack.c.b16 %v4502, %v4501
      %v4531 = vpack.c.b16 %v4504, %v4503
      %v4532 = vpack.c.b16 %v4506, %v4505
      %v4533 = vpack.c.b16 %v4508, %v4507
      %v4534 = vpack.c.b16 %v4510, %v4509
      %4559 = vmatpush.bf16.msra.mxu0 %v4518
      %4560 = vmatpush.bf16.msra.mxu0 %v4517
      %4561 = vmatpush.bf16.msra.mxu0 %v4516
      %4562 = vmatpush.bf16.msra.mxu0 %v4515
      %4563 = vmatpush.bf16.msra.mxu0 %v4514
      %4564 = vmatpush.bf16.msra.mxu0 %v4513
      %4565 = vmatpush.bf16.msra.mxu0 %v4512
      %4566 = vmatpush.bf16.msra.mxu0 %v4511
      %4567 = vmatmul.bf16.gmra.mxu0 %v4355
      %v4568 = vpop.f32.mrf.mxu0
      %v4569 = vadd.f32 0.0, %v4568
      %v4570 = vpop.f32.mrf.mxu0
      %v4571 = vadd.f32 0.0, %v4570
      %4572 = vmatmul.bf16.gmra.mxu0 %v4358
      %v4573 = vpop.f32.mrf.mxu0
      %v4574 = vadd.f32 0.0, %v4573
      %v4575 = vpop.f32.mrf.mxu0
      %v4576 = vadd.f32 0.0, %v4575
      %4577 = vmatmul.bf16.gmra.mxu0 %v4361
      %v4578 = vpop.f32.mrf.mxu0
      %v4579 = vadd.f32 0.0, %v4578
      %v4580 = vpop.f32.mrf.mxu0
      %v4581 = vadd.f32 0.0, %v4580
      %4582 = vmatmul.bf16.gmra.mxu0 %v4364
      %v4583 = vpop.f32.mrf.mxu0
      %v4584 = vadd.f32 0.0, %v4583
      %v4585 = vpop.f32.mrf.mxu0
      %v4586 = vadd.f32 0.0, %v4585
      %4587 = vdwg.mxu0
      %4588 = vmatpush.bf16.msra.mxu0 %v4526
      %4589 = vmatpush.bf16.msra.mxu0 %v4525
      %4590 = vmatpush.bf16.msra.mxu0 %v4524
      %4591 = vmatpush.bf16.msra.mxu0 %v4523
      %4592 = vmatpush.bf16.msra.mxu0 %v4522
      %4593 = vmatpush.bf16.msra.mxu0 %v4521
      %4594 = vmatpush.bf16.msra.mxu0 %v4520
      %4595 = vmatpush.bf16.msra.mxu0 %v4519
      %4596 = vmatmul.bf16.gmra.mxu0 %v4356
      %v4597 = vpop.f32.mrf.mxu0
      %v4598 = vadd.f32 %v4569, %v4597
      %v4599 = vpop.f32.mrf.mxu0
      %v4600 = vadd.f32 %v4571, %v4599
      %4601 = vmatmul.bf16.gmra.mxu0 %v4359
      %v4602 = vpop.f32.mrf.mxu0
      %v4603 = vadd.f32 %v4574, %v4602
      %v4604 = vpop.f32.mrf.mxu0
      %v4605 = vadd.f32 %v4576, %v4604
      %4606 = vmatmul.bf16.gmra.mxu0 %v4362
      %v4607 = vpop.f32.mrf.mxu0
      %v4608 = vadd.f32 %v4579, %v4607
      %v4609 = vpop.f32.mrf.mxu0
      %v4610 = vadd.f32 %v4581, %v4609
      %4611 = vmatmul.bf16.gmra.mxu0 %v4365
      %v4612 = vpop.f32.mrf.mxu0
      %v4613 = vadd.f32 %v4584, %v4612
      %v4614 = vpop.f32.mrf.mxu0
      %v4615 = vadd.f32 %v4586, %v4614
      %4616 = vdwg.mxu0
      %4617 = vmatpush.bf16.msra.mxu0 %v4534
      %4618 = vmatpush.bf16.msra.mxu0 %v4533
      %4619 = vmatpush.bf16.msra.mxu0 %v4532
      %4620 = vmatpush.bf16.msra.mxu0 %v4531
      %4621 = vmatpush.bf16.msra.mxu0 %v4530
      %4622 = vmatpush.bf16.msra.mxu0 %v4529
      %4623 = vmatpush.bf16.msra.mxu0 %v4528
      %4624 = vmatpush.bf16.msra.mxu0 %v4527
      %4625 = vmatmul.bf16.gmra.mxu0 %v4357
      %v4626 = vpop.f32.mrf.mxu0
      %v4627 = vadd.f32 %v4598, %v4626
      %v4628 = vpop.f32.mrf.mxu0
      %v4629 = vadd.f32 %v4600, %v4628
      %4630 = vmatmul.bf16.gmra.mxu0 %v4360
      %v4631 = vpop.f32.mrf.mxu0
      %v4632 = vadd.f32 %v4603, %v4631
      %v4633 = vpop.f32.mrf.mxu0
      %v4634 = vadd.f32 %v4605, %v4633
      %4635 = vmatmul.bf16.gmra.mxu0 %v4363
      %v4636 = vpop.f32.mrf.mxu0
      %v4637 = vadd.f32 %v4608, %v4636
      %v4638 = vpop.f32.mrf.mxu0
      %v4639 = vadd.f32 %v4610, %v4638
      %4640 = vmatmul.bf16.gmra.mxu0 %v4366
      %v4641 = vpop.f32.mrf.mxu0
      %v4642 = vadd.f32 %v4613, %v4641
      %v4643 = vpop.f32.mrf.mxu0
      %v4644 = vadd.f32 %v4615, %v4643
      %4645 = vdwg.mxu0
      %v4694 = vunpack.c.l.b16 %v4283
      %v4695 = vunpack.c.l.b16 %v4284
      %v4696 = vunpack.c.l.b16 %v4285
      %v4697 = vunpack.c.l.b16 %v4286
      %v4698 = vunpack.c.l.b16 %v4287
      %v4699 = vunpack.c.l.b16 %v4288
      %v4700 = vunpack.c.l.b16 %v4289
      %v4701 = vunpack.c.l.b16 %v4290
      %v4702 = vunpack.c.l.b16 %v4291
      %v4703 = vunpack.c.l.b16 %v4292
      %v4704 = vunpack.c.l.b16 %v4293
      %v4705 = vunpack.c.l.b16 %v4294
      %v4706 = vunpack.c.l.b16 %v4295
      %v4707 = vunpack.c.l.b16 %v4296
      %v4708 = vunpack.c.l.b16 %v4297
      %v4709 = vunpack.c.l.b16 %v4298
      %v4710 = vunpack.c.l.b16 %v4299
      %v4711 = vunpack.c.l.b16 %v4300
      %v4712 = vunpack.c.l.b16 %v4301
      %v4713 = vunpack.c.l.b16 %v4302
      %v4714 = vunpack.c.l.b16 %v4303
      %v4715 = vunpack.c.l.b16 %v4304
      %v4716 = vunpack.c.l.b16 %v4305
      %v4717 = vunpack.c.l.b16 %v4306
      %v4718 = vunpack.c.l.b16 %v4307
      %v4719 = vunpack.c.l.b16 %v4308
      %v4720 = vunpack.c.l.b16 %v4309
      %v4721 = vunpack.c.l.b16 %v4310
      %v4722 = vunpack.c.l.b16 %v4311
      %v4723 = vunpack.c.l.b16 %v4312
      %v4724 = vunpack.c.l.b16 %v4313
      %v4725 = vunpack.c.l.b16 %v4314
      %v4726 = vunpack.c.l.b16 %v4315
      %v4727 = vunpack.c.l.b16 %v4316
      %v4728 = vunpack.c.l.b16 %v4317
      %v4729 = vunpack.c.l.b16 %v4318
      %v4730 = vunpack.c.l.b16 %v4319
      %v4731 = vunpack.c.l.b16 %v4320
      %v4732 = vunpack.c.l.b16 %v4321
      %v4733 = vunpack.c.l.b16 %v4322
      %v4734 = vunpack.c.l.b16 %v4323
      %v4735 = vunpack.c.l.b16 %v4324
      %v4736 = vunpack.c.l.b16 %v4325
      %v4737 = vunpack.c.l.b16 %v4326
      %v4738 = vunpack.c.l.b16 %v4327
      %v4739 = vunpack.c.l.b16 %v4328
      %v4740 = vunpack.c.l.b16 %v4329
      %v4741 = vunpack.c.l.b16 %v4330
      %v4742 = vpack.c.b16 %v4695, %v4694
      %v4743 = vpack.c.b16 %v4697, %v4696
      %v4744 = vpack.c.b16 %v4699, %v4698
      %v4745 = vpack.c.b16 %v4701, %v4700
      %v4746 = vpack.c.b16 %v4703, %v4702
      %v4747 = vpack.c.b16 %v4705, %v4704
      %v4748 = vpack.c.b16 %v4707, %v4706
      %v4749 = vpack.c.b16 %v4709, %v4708
      %v4750 = vpack.c.b16 %v4711, %v4710
      %v4751 = vpack.c.b16 %v4713, %v4712
      %v4752 = vpack.c.b16 %v4715, %v4714
      %v4753 = vpack.c.b16 %v4717, %v4716
      %v4754 = vpack.c.b16 %v4719, %v4718
      %v4755 = vpack.c.b16 %v4721, %v4720
      %v4756 = vpack.c.b16 %v4723, %v4722
      %v4757 = vpack.c.b16 %v4725, %v4724
      %v4758 = vpack.c.b16 %v4727, %v4726
      %v4759 = vpack.c.b16 %v4729, %v4728
      %v4760 = vpack.c.b16 %v4731, %v4730
      %v4761 = vpack.c.b16 %v4733, %v4732
      %v4762 = vpack.c.b16 %v4735, %v4734
      %v4763 = vpack.c.b16 %v4737, %v4736
      %v4764 = vpack.c.b16 %v4739, %v4738
      %v4765 = vpack.c.b16 %v4741, %v4740
      %4790 = vmatpush.bf16.msra.mxu0 %v4749
      %4791 = vmatpush.bf16.msra.mxu0 %v4748
      %4792 = vmatpush.bf16.msra.mxu0 %v4747
      %4793 = vmatpush.bf16.msra.mxu0 %v4746
      %4794 = vmatpush.bf16.msra.mxu0 %v4745
      %4795 = vmatpush.bf16.msra.mxu0 %v4744
      %4796 = vmatpush.bf16.msra.mxu0 %v4743
      %4797 = vmatpush.bf16.msra.mxu0 %v4742
      %4798 = vmatmul.bf16.gmra.mxu0 %v4271
      %v4799 = vpop.f32.mrf.mxu0
      %v4800 = vadd.f32 %v4627, %v4799
      %v4801 = vpop.f32.mrf.mxu0
      %v4802 = vadd.f32 %v4629, %v4801
      %4803 = vmatmul.bf16.gmra.mxu0 %v4274
      %v4804 = vpop.f32.mrf.mxu0
      %v4805 = vadd.f32 %v4632, %v4804
      %v4806 = vpop.f32.mrf.mxu0
      %v4807 = vadd.f32 %v4634, %v4806
      %4808 = vmatmul.bf16.gmra.mxu0 %v4277
      %v4809 = vpop.f32.mrf.mxu0
      %v4810 = vadd.f32 %v4637, %v4809
      %v4811 = vpop.f32.mrf.mxu0
      %v4812 = vadd.f32 %v4639, %v4811
      %4813 = vmatmul.bf16.gmra.mxu0 %v4280
      %v4814 = vpop.f32.mrf.mxu0
      %v4815 = vadd.f32 %v4642, %v4814
      %v4816 = vpop.f32.mrf.mxu0
      %v4817 = vadd.f32 %v4644, %v4816
      %4818 = vdwg.mxu0
      %4819 = vmatpush.bf16.msra.mxu0 %v4757
      %4820 = vmatpush.bf16.msra.mxu0 %v4756
      %4821 = vmatpush.bf16.msra.mxu0 %v4755
      %4822 = vmatpush.bf16.msra.mxu0 %v4754
      %4823 = vmatpush.bf16.msra.mxu0 %v4753
      %4824 = vmatpush.bf16.msra.mxu0 %v4752
      %4825 = vmatpush.bf16.msra.mxu0 %v4751
      %4826 = vmatpush.bf16.msra.mxu0 %v4750
      %4827 = vmatmul.bf16.gmra.mxu0 %v4272
      %v4828 = vpop.f32.mrf.mxu0
      %v4829 = vadd.f32 %v4800, %v4828
      %v4830 = vpop.f32.mrf.mxu0
      %v4831 = vadd.f32 %v4802, %v4830
      %4832 = vmatmul.bf16.gmra.mxu0 %v4275
      %v4833 = vpop.f32.mrf.mxu0
      %v4834 = vadd.f32 %v4805, %v4833
      %v4835 = vpop.f32.mrf.mxu0
      %v4836 = vadd.f32 %v4807, %v4835
      %4837 = vmatmul.bf16.gmra.mxu0 %v4278
      %v4838 = vpop.f32.mrf.mxu0
      %v4839 = vadd.f32 %v4810, %v4838
      %v4840 = vpop.f32.mrf.mxu0
      %v4841 = vadd.f32 %v4812, %v4840
      %4842 = vmatmul.bf16.gmra.mxu0 %v4281
      %v4843 = vpop.f32.mrf.mxu0
      %v4844 = vadd.f32 %v4815, %v4843
      %v4845 = vpop.f32.mrf.mxu0
      %v4846 = vadd.f32 %v4817, %v4845
      %4847 = vdwg.mxu0
      %4848 = vmatpush.bf16.msra.mxu0 %v4765
      %4849 = vmatpush.bf16.msra.mxu0 %v4764
      %4850 = vmatpush.bf16.msra.mxu0 %v4763
      %4851 = vmatpush.bf16.msra.mxu0 %v4762
      %4852 = vmatpush.bf16.msra.mxu0 %v4761
      %4853 = vmatpush.bf16.msra.mxu0 %v4760
      %4854 = vmatpush.bf16.msra.mxu0 %v4759
      %4855 = vmatpush.bf16.msra.mxu0 %v4758
      %4856 = vmatmul.bf16.gmra.mxu0 %v4273
      %v4857 = vpop.f32.mrf.mxu0
      %v4858 = vadd.f32 %v4829, %v4857
      %v4859 = vpop.f32.mrf.mxu0
      %v4860 = vadd.f32 %v4831, %v4859
      %4861 = vmatmul.bf16.gmra.mxu0 %v4276
      %v4862 = vpop.f32.mrf.mxu0
      %v4863 = vadd.f32 %v4834, %v4862
      %v4864 = vpop.f32.mrf.mxu0
      %v4865 = vadd.f32 %v4836, %v4864
      %4866 = vmatmul.bf16.gmra.mxu0 %v4279
      %v4867 = vpop.f32.mrf.mxu0
      %v4868 = vadd.f32 %v4839, %v4867
      %v4869 = vpop.f32.mrf.mxu0
      %v4870 = vadd.f32 %v4841, %v4869
      %4871 = vmatmul.bf16.gmra.mxu0 %v4282
      %v4872 = vpop.f32.mrf.mxu0
      %v4873 = vadd.f32 %v4844, %v4872
      %v4874 = vpop.f32.mrf.mxu0
      %v4875 = vadd.f32 %v4846, %v4874
      %4876 = vdwg.mxu0
      %v4877 = vld [vmem:[%s3876 + $0x1] sm:$0xff]
      %v4878 = vld [vmem:[%s3876 + $0x11] sm:$0xff]
      %v4879 = vld [vmem:[%s3876 + $0x21] sm:$0xff]
      %v4880 = vld [vmem:[%s3876 + $0x31] sm:$0xff]
      %v4881 = vld [vmem:[%s3876 + $0x41] sm:$0xff]
      %v4882 = vld [vmem:[%s3876 + $0x51] sm:$0xff]
      %v4883 = vld [vmem:[%s3876 + $0x61] sm:$0xff]
      %v4884 = vld [vmem:[%s3876 + $0x71] sm:$0xff]
      %v4885 = vld [vmem:[%s3867 + $0x1] sm:$0xff]
      %v4886 = vld [vmem:[%s3867 + $0x11] sm:$0xff]
      %v4887 = vld [vmem:[%s3867 + $0x21] sm:$0xff]
      %v4888 = vld [vmem:[%s3867 + $0x31] sm:$0xff]
      %v4889 = vld [vmem:[%s3867 + $0x41] sm:$0xff]
      %v4890 = vld [vmem:[%s3867 + $0x51] sm:$0xff]
      %v4891 = vld [vmem:[%s3867 + $0x61] sm:$0xff]
      %v4892 = vld [vmem:[%s3867 + $0x71] sm:$0xff]
      %v4893 = vld [vmem:[%s3876 + $0x2] sm:$0xff]
      %v4894 = vld [vmem:[%s3876 + $0x12] sm:$0xff]
      %v4895 = vld [vmem:[%s3876 + $0x22] sm:$0xff]
      %v4896 = vld [vmem:[%s3876 + $0x32] sm:$0xff]
      %v4897 = vld [vmem:[%s3876 + $0x42] sm:$0xff]
      %v4898 = vld [vmem:[%s3876 + $0x52] sm:$0xff]
      %v4899 = vld [vmem:[%s3876 + $0x62] sm:$0xff]
      %v4900 = vld [vmem:[%s3876 + $0x72] sm:$0xff]
      %v4901 = vpack.c.bf16 %v4878, %v4877
      %v4902 = vpack.c.bf16 %v4886, %v4885
      %v4903 = vpack.c.bf16 %v4894, %v4893
      %v4904 = vpack.c.bf16 %v4880, %v4879
      %v4905 = vpack.c.bf16 %v4888, %v4887
      %v4906 = vpack.c.bf16 %v4896, %v4895
      %v4907 = vpack.c.bf16 %v4882, %v4881
      %v4908 = vpack.c.bf16 %v4890, %v4889
      %v4909 = vpack.c.bf16 %v4898, %v4897
      %v4910 = vpack.c.bf16 %v4884, %v4883
      %v4911 = vpack.c.bf16 %v4892, %v4891
      %v4912 = vpack.c.bf16 %v4900, %v4899
      %v4913 = vld [vmem:[%s1871] sm:$0xf]
      %v4914 = vld [vmem:[%s1871 + $0x4] sm:$0xf]
      %v4915 = vld [vmem:[%s1871 + $0x8] sm:$0xf]
      %v4916 = vld [vmem:[%s1871 + $0xc] sm:$0xf]
      %v4917 = vld [vmem:[%s1871 + $0x10] sm:$0xf]
      %v4918 = vld [vmem:[%s1871 + $0x14] sm:$0xf]
      %v4919 = vld [vmem:[%s1871 + $0x18] sm:$0xf]
      %v4920 = vld [vmem:[%s1871 + $0x1c] sm:$0xf]
      %v4921 = vld [vmem:[%s1871 + $0x20] sm:$0xf]
      %v4922 = vld [vmem:[%s1871 + $0x24] sm:$0xf]
      %v4923 = vld [vmem:[%s1871 + $0x28] sm:$0xf]
      %v4924 = vld [vmem:[%s1871 + $0x2c] sm:$0xf]
      %v4925 = vld [vmem:[%s1871 + $0x30] sm:$0xf]
      %v4926 = vld [vmem:[%s1871 + $0x34] sm:$0xf]
      %v4927 = vld [vmem:[%s1871 + $0x38] sm:$0xf]
      %v4928 = vld [vmem:[%s1871 + $0x3c] sm:$0xf]
      %v4929 = vld [vmem:[%s1871 + $0x40] sm:$0xf]
      %v4930 = vld [vmem:[%s1871 + $0x44] sm:$0xf]
      %v4931 = vld [vmem:[%s1871 + $0x48] sm:$0xf]
      %v4932 = vld [vmem:[%s1871 + $0x4c] sm:$0xf]
      %v4933 = vld [vmem:[%s1871 + $0x50] sm:$0xf]
      %v4934 = vld [vmem:[%s1871 + $0x54] sm:$0xf]
      %v4935 = vld [vmem:[%s1871 + $0x58] sm:$0xf]
      %v4936 = vld [vmem:[%s1871 + $0x5c] sm:$0xf]
      %v4937 = vld [vmem:[%s1871 + $0x60] sm:$0xf]
      %v4938 = vld [vmem:[%s1871 + $0x64] sm:$0xf]
      %v4939 = vld [vmem:[%s1871 + $0x68] sm:$0xf]
      %v4940 = vld [vmem:[%s1871 + $0x6c] sm:$0xf]
      %v4941 = vld [vmem:[%s1871 + $0x70] sm:$0xf]
      %v4942 = vld [vmem:[%s1871 + $0x74] sm:$0xf]
      %v4943 = vld [vmem:[%s1871 + $0x78] sm:$0xf]
      %v4944 = vld [vmem:[%s1871 + $0x7c] sm:$0xf]
      %v4945 = vld [vmem:[%s1871 + $0x80] sm:$0xf]
      %v4946 = vld [vmem:[%s1871 + $0x84] sm:$0xf]
      %v4947 = vld [vmem:[%s1871 + $0x88] sm:$0xf]
      %v4948 = vld [vmem:[%s1871 + $0x8c] sm:$0xf]
      %v4949 = vld [vmem:[%s1871 + $0x90] sm:$0xf]
      %v4950 = vld [vmem:[%s1871 + $0x94] sm:$0xf]
      %v4951 = vld [vmem:[%s1871 + $0x98] sm:$0xf]
      %v4952 = vld [vmem:[%s1871 + $0x9c] sm:$0xf]
      %v4953 = vld [vmem:[%s1871 + $0xa0] sm:$0xf]
      %v4954 = vld [vmem:[%s1871 + $0xa4] sm:$0xf]
      %v4955 = vld [vmem:[%s1871 + $0xa8] sm:$0xf]
      %v4956 = vld [vmem:[%s1871 + $0xac] sm:$0xf]
      %v4957 = vld [vmem:[%s1871 + $0xb0] sm:$0xf]
      %v4958 = vld [vmem:[%s1871 + $0xb4] sm:$0xf]
      %v4959 = vld [vmem:[%s1871 + $0xb8] sm:$0xf]
      %v4960 = vld [vmem:[%s1871 + $0xbc] sm:$0xf]
      %v5009 = vunpack.c.l.b16 %v4913
      %v5010 = vunpack.c.l.b16 %v4914
      %v5011 = vunpack.c.l.b16 %v4915
      %v5012 = vunpack.c.l.b16 %v4916
      %v5013 = vunpack.c.l.b16 %v4917
      %v5014 = vunpack.c.l.b16 %v4918
      %v5015 = vunpack.c.l.b16 %v4919
      %v5016 = vunpack.c.l.b16 %v4920
      %v5017 = vunpack.c.l.b16 %v4921
      %v5018 = vunpack.c.l.b16 %v4922
      %v5019 = vunpack.c.l.b16 %v4923
      %v5020 = vunpack.c.l.b16 %v4924
      %v5021 = vunpack.c.l.b16 %v4925
      %v5022 = vunpack.c.l.b16 %v4926
      %v5023 = vunpack.c.l.b16 %v4927
      %v5024 = vunpack.c.l.b16 %v4928
      %v5025 = vunpack.c.l.b16 %v4929
      %v5026 = vunpack.c.l.b16 %v4930
      %v5027 = vunpack.c.l.b16 %v4931
      %v5028 = vunpack.c.l.b16 %v4932
      %v5029 = vunpack.c.l.b16 %v4933
      %v5030 = vunpack.c.l.b16 %v4934
      %v5031 = vunpack.c.l.b16 %v4935
      %v5032 = vunpack.c.l.b16 %v4936
      %v5033 = vunpack.c.l.b16 %v4937
      %v5034 = vunpack.c.l.b16 %v4938
      %v5035 = vunpack.c.l.b16 %v4939
      %v5036 = vunpack.c.l.b16 %v4940
      %v5037 = vunpack.c.l.b16 %v4941
      %v5038 = vunpack.c.l.b16 %v4942
      %v5039 = vunpack.c.l.b16 %v4943
      %v5040 = vunpack.c.l.b16 %v4944
      %v5041 = vunpack.c.l.b16 %v4945
      %v5042 = vunpack.c.l.b16 %v4946
      %v5043 = vunpack.c.l.b16 %v4947
      %v5044 = vunpack.c.l.b16 %v4948
      %v5045 = vunpack.c.l.b16 %v4949
      %v5046 = vunpack.c.l.b16 %v4950
      %v5047 = vunpack.c.l.b16 %v4951
      %v5048 = vunpack.c.l.b16 %v4952
      %v5049 = vunpack.c.l.b16 %v4953
      %v5050 = vunpack.c.l.b16 %v4954
      %v5051 = vunpack.c.l.b16 %v4955
      %v5052 = vunpack.c.l.b16 %v4956
      %v5053 = vunpack.c.l.b16 %v4957
      %v5054 = vunpack.c.l.b16 %v4958
      %v5055 = vunpack.c.l.b16 %v4959
      %v5056 = vunpack.c.l.b16 %v4960
      %v5057 = vpack.c.b16 %v5010, %v5009
      %v5058 = vpack.c.b16 %v5012, %v5011
      %v5059 = vpack.c.b16 %v5014, %v5013
      %v5060 = vpack.c.b16 %v5016, %v5015
      %v5061 = vpack.c.b16 %v5018, %v5017
      %v5062 = vpack.c.b16 %v5020, %v5019
      %v5063 = vpack.c.b16 %v5022, %v5021
      %v5064 = vpack.c.b16 %v5024, %v5023
      %v5065 = vpack.c.b16 %v5026, %v5025
      %v5066 = vpack.c.b16 %v5028, %v5027
      %v5067 = vpack.c.b16 %v5030, %v5029
      %v5068 = vpack.c.b16 %v5032, %v5031
      %v5069 = vpack.c.b16 %v5034, %v5033
      %v5070 = vpack.c.b16 %v5036, %v5035
      %v5071 = vpack.c.b16 %v5038, %v5037
      %v5072 = vpack.c.b16 %v5040, %v5039
      %v5073 = vpack.c.b16 %v5042, %v5041
      %v5074 = vpack.c.b16 %v5044, %v5043
      %v5075 = vpack.c.b16 %v5046, %v5045
      %v5076 = vpack.c.b16 %v5048, %v5047
      %v5077 = vpack.c.b16 %v5050, %v5049
      %v5078 = vpack.c.b16 %v5052, %v5051
      %v5079 = vpack.c.b16 %v5054, %v5053
      %v5080 = vpack.c.b16 %v5056, %v5055
      %5105 = vmatpush.bf16.msra.mxu0 %v5064
      %5106 = vmatpush.bf16.msra.mxu0 %v5063
      %5107 = vmatpush.bf16.msra.mxu0 %v5062
      %5108 = vmatpush.bf16.msra.mxu0 %v5061
      %5109 = vmatpush.bf16.msra.mxu0 %v5060
      %5110 = vmatpush.bf16.msra.mxu0 %v5059
      %5111 = vmatpush.bf16.msra.mxu0 %v5058
      %5112 = vmatpush.bf16.msra.mxu0 %v5057
      %5113 = vmatmul.bf16.gmra.mxu0 %v4901
      %v5114 = vpop.f32.mrf.mxu0
      %v5115 = vadd.f32 0.0, %v5114
      %v5116 = vpop.f32.mrf.mxu0
      %v5117 = vadd.f32 0.0, %v5116
      %5118 = vmatmul.bf16.gmra.mxu0 %v4904
      %v5119 = vpop.f32.mrf.mxu0
      %v5120 = vadd.f32 0.0, %v5119
      %v5121 = vpop.f32.mrf.mxu0
      %v5122 = vadd.f32 0.0, %v5121
      %5123 = vmatmul.bf16.gmra.mxu0 %v4907
      %v5124 = vpop.f32.mrf.mxu0
      %v5125 = vadd.f32 0.0, %v5124
      %v5126 = vpop.f32.mrf.mxu0
      %v5127 = vadd.f32 0.0, %v5126
      %5128 = vmatmul.bf16.gmra.mxu0 %v4910
      %v5129 = vpop.f32.mrf.mxu0
      %v5130 = vadd.f32 0.0, %v5129
      %v5131 = vpop.f32.mrf.mxu0
      %v5132 = vadd.f32 0.0, %v5131
      %5133 = vdwg.mxu0
      %5134 = vmatpush.bf16.msra.mxu0 %v5072
      %5135 = vmatpush.bf16.msra.mxu0 %v5071
      %5136 = vmatpush.bf16.msra.mxu0 %v5070
      %5137 = vmatpush.bf16.msra.mxu0 %v5069
      %5138 = vmatpush.bf16.msra.mxu0 %v5068
      %5139 = vmatpush.bf16.msra.mxu0 %v5067
      %5140 = vmatpush.bf16.msra.mxu0 %v5066
      %5141 = vmatpush.bf16.msra.mxu0 %v5065
      %5142 = vmatmul.bf16.gmra.mxu0 %v4902
      %v5143 = vpop.f32.mrf.mxu0
      %v5144 = vadd.f32 %v5115, %v5143
      %v5145 = vpop.f32.mrf.mxu0
      %v5146 = vadd.f32 %v5117, %v5145
      %5147 = vmatmul.bf16.gmra.mxu0 %v4905
      %v5148 = vpop.f32.mrf.mxu0
      %v5149 = vadd.f32 %v5120, %v5148
      %v5150 = vpop.f32.mrf.mxu0
      %v5151 = vadd.f32 %v5122, %v5150
      %5152 = vmatmul.bf16.gmra.mxu0 %v4908
      %v5153 = vpop.f32.mrf.mxu0
      %v5154 = vadd.f32 %v5125, %v5153
      %v5155 = vpop.f32.mrf.mxu0
      %v5156 = vadd.f32 %v5127, %v5155
      %5157 = vmatmul.bf16.gmra.mxu0 %v4911
      %v5158 = vpop.f32.mrf.mxu0
      %v5159 = vadd.f32 %v5130, %v5158
      %v5160 = vpop.f32.mrf.mxu0
      %v5161 = vadd.f32 %v5132, %v5160
      %5162 = vdwg.mxu0
      %5163 = vmatpush.bf16.msra.mxu0 %v5080
      %5164 = vmatpush.bf16.msra.mxu0 %v5079
      %5165 = vmatpush.bf16.msra.mxu0 %v5078
      %5166 = vmatpush.bf16.msra.mxu0 %v5077
      %5167 = vmatpush.bf16.msra.mxu0 %v5076
      %5168 = vmatpush.bf16.msra.mxu0 %v5075
      %5169 = vmatpush.bf16.msra.mxu0 %v5074
      %5170 = vmatpush.bf16.msra.mxu0 %v5073
      %5171 = vmatmul.bf16.gmra.mxu0 %v4903
      %v5172 = vpop.f32.mrf.mxu0
      %v5173 = vadd.f32 %v5144, %v5172
      %v5174 = vpop.f32.mrf.mxu0
      %v5175 = vadd.f32 %v5146, %v5174
      %5176 = vmatmul.bf16.gmra.mxu0 %v4906
      %v5177 = vpop.f32.mrf.mxu0
      %v5178 = vadd.f32 %v5149, %v5177
      %v5179 = vpop.f32.mrf.mxu0
      %v5180 = vadd.f32 %v5151, %v5179
      %5181 = vmatmul.bf16.gmra.mxu0 %v4909
      %v5182 = vpop.f32.mrf.mxu0
      %v5183 = vadd.f32 %v5154, %v5182
      %v5184 = vpop.f32.mrf.mxu0
      %v5185 = vadd.f32 %v5156, %v5184
      %5186 = vmatmul.bf16.gmra.mxu0 %v4912
      %v5187 = vpop.f32.mrf.mxu0
      %v5188 = vadd.f32 %v5159, %v5187
      %v5189 = vpop.f32.mrf.mxu0
      %v5190 = vadd.f32 %v5161, %v5189
      %5191 = vdwg.mxu0
      %v5192 = vadd.f32 %v4858, %v5173
      %v5193 = vadd.f32 %v4860, %v5175
      %v5194 = vadd.f32 %v4863, %v5178
      %v5195 = vadd.f32 %v4865, %v5180
      %v5196 = vadd.f32 %v4868, %v5183
      %v5197 = vadd.f32 %v4870, %v5185
      %v5198 = vadd.f32 %v4873, %v5188
      %v5199 = vadd.f32 %v4875, %v5190
      %v5200 = vmul.f32 %v5192, %v2160
      %v5201 = vmul.f32 %v5193, %v2160
      %v5202 = vmul.f32 %v5194, %v2160
      %v5203 = vmul.f32 %v5195, %v2160
      %v5204 = vmul.f32 %v5196, %v2160
      %v5205 = vmul.f32 %v5197, %v2160
      %v5206 = vmul.f32 %v5198, %v2160
      %v5207 = vmul.f32 %v5199, %v2160
      %v5208 = vadd.f32 %v5200, %v2171
      %v5209 = vadd.f32 %v5201, %v2171
      %v5210 = vadd.f32 %v5202, %v2171
      %v5211 = vadd.f32 %v5203, %v2171
      %v5212 = vadd.f32 %v5204, %v2171
      %v5213 = vadd.f32 %v5205, %v2171
      %v5214 = vadd.f32 %v5206, %v2171
      %v5215 = vadd.f32 %v5207, %v2171
      %v5216 = vmax.f32 %v5208, 0.0
      %v5217 = vmax.f32 %v5209, 0.0
      %v5218 = vmax.f32 %v5210, 0.0
      %v5219 = vmax.f32 %v5211, 0.0
      %v5220 = vmax.f32 %v5212, 0.0
      %v5221 = vmax.f32 %v5213, 0.0
      %v5222 = vmax.f32 %v5214, 0.0
      %v5223 = vmax.f32 %v5215, 0.0
      %v5224 = vpack.c.bf16 %v5217, %v5216
      %v5225 = vpack.c.bf16 %v5219, %v5218
      %v5226 = vpack.c.bf16 %v5221, %v5220
      %v5227 = vpack.c.bf16 %v5223, %v5222
      %v5229 = vsel %vm2198, %v5224, 0
      %v5232 = vsel %vm2198, %v5225, 0
      %v5235 = vsel %vm2198, %v5226, 0
      %v5238 = vsel %vm2198, %v5227, 0
      %5240 = vmatpush.bf16.xpose.msra.mxu0 0
      %5241 = vmatpush.bf16.xpose.msra.mxu0 0
      %5242 = vmatpush.bf16.xpose.msra.mxu0 0
      %5243 = vmatpush.bf16.xpose.msra.mxu0 0
      %5244 = vmatpush.bf16.xpose.msra.mxu0 %v5238
      %5245 = vmatpush.bf16.xpose.msra.mxu0 %v5235
      %5246 = vmatpush.bf16.xpose.msra.mxu0 %v5232
      %5247 = vmatpush.bf16.xpose.msra.mxu0 %v5229
      %5248 = vmatmul.bf16.gmra.mxu0 %v2200
      %v5249 = vpop.f32.mrf.mxu0
      %v5250 = vadd.f32 %v2196, %v5249
      %v5251 = vpop.f32.mrf.mxu0
      %5252 = vdwg.mxu0
      %s5253 = scalar_lea.vmem %s359, 12
      %5254 = vst.msk [vmem:[%s5253] sm:$0x7] %vm2227, %v5250
      %p5255 = scmp.lt.s32.totalorder %s21, 1
      %s5256 = scalar_select %p5255, %s21, 1
      %s5257 = smul.addr %s5256, 4
      %s5258 = smul.addr %s5257, 4
      %s5259 = scalar_lea.vmem %s10, %s5258
      // Predicated region
      $region61: #{tpu_custom_call.1} parent=59 // pred_check
        %p5260 = pneg %p254
      $region62: #{tpu_custom_call.1} parent=59 // pred_check_branch
        %5262 = sbr.rel (%p5260) target = $region64
      $region63: #{tpu_custom_call.1} parent=59 // pred_region
        _
      $region64: #{tpu_custom_call.1} parent=59 // pred_fallthru
        _
    $region60: #{tpu_custom_call.1} parent=5 // pred_fallthru
      _
    %p5263 = scmp.le.s32.totalorder 2, %s16
    // Predicated region
    $region65: #{tpu_custom_call.1} parent=5 // pred_check
      %p5264 = pneg %p5263
    $region66: #{tpu_custom_call.1} parent=5 // pred_check_branch
      %5266 = sbr.rel (%p5264) target = $region68
    $region67: #{tpu_custom_call.1} parent=5 // pred_region
      %s5267 = ssub.s32 %s16, 2
      // Predicated region
      $region69: #{tpu_custom_call.1} parent=67 // pred_check
        %p5268 = pneg %p260
      $region70: #{tpu_custom_call.1} parent=67 // pred_check_branch
        %5270 = sbr.rel (%p5268) target = $region72
      $region71: #{tpu_custom_call.1} parent=67 // pred_region
        %p5271 = scmp.lt.s32.totalorder %s22, 1
        %s5272 = scalar_select %p5271, %s22, 1
        %s5273 = smul.addr %s5272, 4
        %s5274 = smul.addr %s5273, 4
        %s5275 = scalar_lea.vmem %s10, %s5274
      $region72: #{tpu_custom_call.1} parent=67 // pred_fallthru
        _
    $region68: #{tpu_custom_call.1} parent=5 // pred_fallthru
      _
  $region6: #{tpu_custom_call.1} parent=0 // loop_footer
    %s20 = sadd.s32 1, %s16
  $region7: #{tpu_custom_call.1} parent=0 // loop_footer_branch
    %15 = sbr.rel target = $region3
  $region8: #{tpu_custom_call.1} parent=0 // loop_exit
    _

</llo_original>
